<compile_context>
chip_gen: v5e
topology: v5e:2x2
jax: 0.10.0
libtpu: 0.0.40
codegen_flags: <defaults>
</compile_context>

<pallas_src>
import functools

import jax
import jax.numpy as jnp
from jax.experimental import pallas as pl
from jax.experimental.pallas import tpu as pltpu

_LANE = 128
_MAX_TILE = 32768  # points per N tile (lane-dense => ~1 MiB per (8, n_tile) f32 buffer)


def _round_up(x, m):
    return (x + m - 1) // m * m


def _det3(m):
    """Closed-form 3x3 determinant (no LU dispatch), batched over leading dims."""
    return (m[..., 0, 0] * (m[..., 1, 1] * m[..., 2, 2] - m[..., 1, 2] * m[..., 2, 1])
            - m[..., 0, 1] * (m[..., 1, 0] * m[..., 2, 2] - m[..., 1, 2] * m[..., 2, 0])
            + m[..., 0, 2] * (m[..., 1, 0] * m[..., 2, 1] - m[..., 1, 1] * m[..., 2, 0]))


def _moments_kernel(w_ref, x_ref, y_ref, out_ref, *, ncols: int):
    """Accumulate all point-cloud moments with a single MXU contraction per tile.

    Lane-dense blocks (points on the lane axis):
      w_ref  : (1, n_tile) f32   weights
      x_ref  : (3, n_tile) f32   cloud_t0, shifted by its first point
      y_ref  : (3, n_tile) f32   cloud_t1, shifted by its first point
      out_ref: (8, 128)    f32   raw-moment accumulator (block resident over N):
        out[0:3, 0:3] = Σ w·ys·xsᵀ     out[0:3, 3] = Σ w·ys
        out[3:6, 0:3] = Σ   ys·xsᵀ     out[3:6, 3] = Σ   ys
        out[6  , 0:3] = Σ w·xs         out[6  , 3] = Σ w
        out[7  , 0:3] = Σ   xs         out[7  , 4] = count(w > 0)   (ncols == 5)
    Padded points are all-zero (w = xs = ys = 0), so no masking is needed.
    """
    n = pl.program_id(2)

    @pl.when(n == 0)
    def _init():
        out_ref[...] = jnp.zeros_like(out_ref)

    w = w_ref[...]                        # (1, n_tile)
    x = x_ref[...]                        # (3, n_tile)
    y = y_ref[...]                        # (3, n_tile)
    ones = jnp.ones_like(w)               # (1, n_tile)

    # left @ rightᵀ over the point (lane) axis: all first & second moments in one
    # MXU contraction; VPU only does the w*y / (w>0) prep, XLU stays idle.
    left = jnp.concatenate([w * y, y, w, ones], axis=0)              # (8, n_tile)
    if ncols == 5:  # need count(w > 0): use_epsilon_on_weights == False path
        right = jnp.concatenate(
            [x, ones, (w > 0.0).astype(jnp.float32)], axis=0)        # (5, n_tile)
    else:
        right = jnp.concatenate([x, ones], axis=0)                   # (4, n_tile)

    moments = jax.lax.dot_general(
        left, right, (((1,), (1,)), ((), ())),
        preferred_element_type=jnp.float32)                          # (8, ncols)

    out_ref[:, 0:ncols] += moments


@functools.partial(jax.jit, static_argnames=("use_epsilon_on_weights", "max_tile"))
def weighted_kabsch(cloud_t0, cloud_t1, weights, use_epsilon_on_weights=False,
                    max_tile=_MAX_TILE):
    """Returns (T, not_enough_points) matching the PyTorch module (per-batch semantics)."""
    B, N, dims = cloud_t0.shape
    assert dims == 3
    assert cloud_t1.shape == (B, N, 3)
    assert weights.shape == (B, N)
    assert N >= 1 and max_tile % _LANE == 0
    # TODO(synk): the reference's data-dependent host checks ((weights >= 0).all()
    # assert and the rank < 2 "Rank deterioration!" RuntimeError) cannot raise under
    # jit; they are omitted to keep the whole function sync-free / jittable.

    f32 = jnp.float32
    eps = float(jnp.finfo(f32).eps)
    x = cloud_t0.astype(f32)
    y = cloud_t1.astype(f32)
    w = weights.astype(f32)

    # Provisional centers (first point of each cloud): accumulating moments of the
    # shifted clouds avoids the cancellation risk of a naive one-pass covariance
    # when |centroid| >> spread.  The subtraction fuses into the lane-dense
    # transpose copy below (one XLA pass either way).
    c0 = x[:, 0, :]                                   # (B, 3)
    c1 = y[:, 0, :]
    xs = jnp.swapaxes(x - c0[:, None, :], 1, 2)       # (B, 3, N)   lane-dense
    ys = jnp.swapaxes(y - c1[:, None, :], 1, 2)       # (B, 3, N)
    wl = w[:, None, :]                                # (B, 1, N)

    # Tiling: points on the lane axis, n_tile a multiple of 128.
    n_tile = min(max_tile, _round_up(N, _LANE))
    n_tiles = -(-N // n_tile)
    # v7x has two TensorCores; for single-batch calls split the N axis across them.
    n_split = 2 if (B == 1 and n_tiles >= 2) else 1
    n_tiles = _round_up(n_tiles, n_split)
    tps = n_tiles // n_split                          # tiles per split
    n_pad = n_tiles * n_tile
    if n_pad != N:
        pad = ((0, 0), (0, 0), (0, n_pad - N))
        xs = jnp.pad(xs, pad)
        ys = jnp.pad(ys, pad)
        wl = jnp.pad(wl, pad)

    ncols = 4 if use_epsilon_on_weights else 5
    kernel = functools.partial(_moments_kernel, ncols=ncols)

    # NOTE: if a profile ever shows exposed DMA, pipeline_mode=pl.Buffered(3) on the
    # cloud/weight specs is cheap with these lane-dense tiles.
    slab = pl.pallas_call(
        kernel,
        out_shape=jax.ShapeDtypeStruct((n_split, B, 8, 128), f32),
        grid_spec=pltpu.PrefetchScalarGridSpec(
            num_scalar_prefetch=0,
            grid=(n_split, B, tps),
            in_specs=[
                pl.BlockSpec((None, 1, n_tile), lambda s, b, n: (b, 0, s * tps + n)),
                pl.BlockSpec((None, 3, n_tile), lambda s, b, n: (b, 0, s * tps + n)),
                pl.BlockSpec((None, 3, n_tile), lambda s, b, n: (b, 0, s * tps + n)),
            ],
            out_specs=pl.BlockSpec((None, None, 8, 128),
                                   lambda s, b, n: (s, b, 0, 0)),
        ),
        compiler_params=pltpu.CompilerParams(
            dimension_semantics=("parallel", "parallel", "arbitrary"),
            vmem_limit_bytes=32 * 1024 * 1024,
        ),
        cost_estimate=pl.CostEstimate(
            flops=2 * 8 * ncols * B * n_pad,
            transcendentals=0,
            bytes_accessed=4 * (7 * B * n_pad + n_split * B * 8 * 128)),
    )(wl, xs, ys)

    # ---- glue: combine split partials, finalize moments, SVD, rigid transform ----
    m = jnp.sum(slab, axis=0)                         # (B, 8, 128) raw moments
    s_wyx = m[:, 0:3, 0:3]                            # Σ w·ys·xsᵀ
    sum_wy = m[:, 0:3, 3]                             # Σ w·ys
    s_yx = m[:, 3:6, 0:3]                             # Σ   ys·xsᵀ
    sum_y = m[:, 3:6, 3]                              # Σ   ys
    sum_wx = m[:, 6, 0:3]                             # Σ w·xs
    sum_w = m[:, 6, 3]                                # Σ w
    sum_x = m[:, 7, 0:3]                              # Σ   xs

    if use_epsilon_on_weights:
        # weights += eps for every point => count(w+eps > 0) == N statically.
        not_enough_points = jnp.full((B,), N < 3)
        eps_add = jnp.full((B,), eps, f32)
    else:
        count = m[:, 7, 4]                            # count(w > 0)
        not_enough_points = count < 3.0
        eps_add = jnp.where(not_enough_points, f32(eps), f32(0.0))

    cum = sum_w + eps_add * f32(N)                                         # (B,)
    inv = 1.0 / cum
    mx_s = (sum_wx + eps_add[:, None] * sum_x) * inv[:, None]              # (B, 3)
    my_s = (sum_wy + eps_add[:, None] * sum_y) * inv[:, None]              # (B, 3)
    Sxy = ((s_wyx + eps_add[:, None, None] * s_yx) * inv[:, None, None]
           - my_s[:, :, None] * mx_s[:, None, :])                          # (B, 3, 3)
    mx = mx_s + c0
    my = my_s + c1

    # TODO(synk): no Pallas SVD primitive; the 3x3 batched SVD stays in XLA.
    U, _D, Vh = jnp.linalg.svd(Sxy)
    det_uv = _det3(U) * _det3(Vh)                     # det(V) == det(Vᵀ)
    # Reference flips S[2,2] iff (rank 3 and det(Sxy) < 0) or (rank 2 and
    # det(U)·det(V) ≈ -1); both reduce to det(U)·det(V) < 0 (singular values ≥ 0),
    # so rank / det(Sxy) are not recomputed.
    s_last = jnp.where(det_uv < 0.0, -1.0, 1.0).astype(f32)
    s = jnp.concatenate([jnp.ones((B, 2), f32), s_last[:, None]], axis=-1)
    R = jnp.matmul(U * s[:, None, :], Vh)             # U @ diag(s) @ Vᵀ
    t = my - jnp.einsum("boc,bc->bo", R, mx)

    R4 = jnp.concatenate([R, jnp.zeros((B, 1, 3), f32)], axis=1)           # (B, 4, 3)
    t4 = jnp.concatenate([t, jnp.ones((B, 1), f32)], axis=-1)              # (B, 4)
    T = jnp.concatenate([R4, t4[:, :, None]], axis=-1)                     # (B, 4, 4)
    return T, not_enough_points


def _reference_kabsch(cloud_t0, cloud_t1, weights, use_epsilon_on_weights=False):
    """Pure-JAX transcription of the PyTorch forward (per-batch, two-pass centering)."""
    f32 = jnp.float32
    eps = jnp.finfo(f32).eps
    w = weights.astype(f32)
    if use_epsilon_on_weights:
        w = w + eps
        nep = jnp.sum(w > 0, axis=-1) < 3
    else:
        nep = jnp.sum(w > 0, axis=-1) < 3
        w = w + (nep.astype(f32) * eps)[:, None]
    cum = jnp.sum(w, axis=-1)
    mx = jnp.sum(cloud_t0 * w[..., None], axis=1) / cum[:, None]
    my = jnp.sum(cloud_t1 * w[..., None], axis=1) / cum[:, None]
    Xc = cloud_t0 - mx[:, None, :]
    Yc = cloud_t1 - my[:, None, :]
    Sxy = jnp.einsum('bno,bni->boi', Yc * w[..., None], Xc) / cum[:, None, None]
    U, _D, Vh = jnp.linalg.svd(Sxy)
    flip = (_det3(U) * _det3(Vh)) < 0.0
    s = jnp.concatenate([jnp.ones((Sxy.shape[0], 2), f32),
                         jnp.where(flip, -1.0, 1.0)[:, None].astype(f32)], axis=-1)
    R = jnp.matmul(U * s[:, None, :], Vh)
    t = my - jnp.einsum('boc,bc->bo', R, mx)
    R4 = jnp.concatenate([R, jnp.zeros_like(R[:, :1, :])], axis=1)
    t4 = jnp.concatenate([t, jnp.ones_like(t[:, :1])], axis=-1)
    T = jnp.concatenate([R4, t4[:, :, None]], axis=-1)
    return T, nep


if __name__ == "__main__":
    key = jax.random.PRNGKey(0)
    k0, k1, kw, k2 = jax.random.split(key, 4)

    # ---- small single-tile case (B=1, N=16), default eps branch ----
    B, N = 1, 16
    cloud_t0 = jax.random.normal(k0, (B, N, 3), dtype=jnp.float32)
    cloud_t1 = (cloud_t0[:, :, ::-1] + 0.5
                + 0.01 * jax.random.normal(k1, (B, N, 3), dtype=jnp.float32))
    weights = jax.random.uniform(kw, (B, N), dtype=jnp.float32)          # >= 0

    T, nep = weighted_kabsch(cloud_t0, cloud_t1, weights,
                             use_epsilon_on_weights=False)
    T = jax.block_until_ready(T)
    nep = jax.block_until_ready(nep)
    assert T.shape == (B, 4, 4) and nep.shape == (B,)
    assert bool(jnp.all(jnp.isfinite(T)))
    T_ref, nep_ref = _reference_kabsch(cloud_t0, cloud_t1, weights, False)
    assert bool(jnp.allclose(T, T_ref, atol=2e-3, rtol=2e-3)), (T, T_ref)
    assert bool(jnp.all(nep == nep_ref))

    # ---- use_epsilon_on_weights=True static branch ----
    T2, nep2 = weighted_kabsch(cloud_t0, cloud_t1, weights,
                               use_epsilon_on_weights=True)
    jax.block_until_ready(T2)
    T2_ref, nep2_ref = _reference_kabsch(cloud_t0, cloud_t1, weights, True)
    assert bool(jnp.allclose(T2, T2_ref, atol=2e-3, rtol=2e-3))
    assert bool(jnp.all(nep2 == nep2_ref))

    # ---- multi-tile + N-split accumulation path (small max_tile forces 4 tiles /
    #      2 splits), with a large centroid offset exercising the provisional
    #      centering and zero-padding of a ragged last tile ----
    B2, N2 = 1, 1000
    base = jax.random.normal(k2, (B2, N2, 3), dtype=jnp.float32)
    center = jnp.array([[100.0, -50.0, 30.0]], dtype=jnp.float32)
    cl0 = base + center[:, None, :]
    ang = 0.3
    R_true = jnp.array([[jnp.cos(ang), -jnp.sin(ang), 0.0],
                        [jnp.sin(ang), jnp.cos(ang), 0.0],
                        [0.0, 0.0, 1.0]], dtype=jnp.float32)
    cl1 = jnp.einsum("bnc,oc->bno", cl0, R_true) + jnp.array([0.5, -1.0, 2.0],
                                                             dtype=jnp.float32)
    w2 = jax.random.uniform(kw, (B2, N2), dtype=jnp.float32)
    T3, nep3 = weighted_kabsch(cl0, cl1, w2, use_epsilon_on_weights=False,
                               max_tile=256)
    jax.block_until_ready(T3)
    T3_ref, nep3_ref = _reference_kabsch(cl0, cl1, w2, False)
    assert bool(jnp.allclose(T3, T3_ref, atol=5e-3, rtol=5e-3)), (T3, T3_ref)
    assert bool(jnp.all(nep3 == nep3_ref))

    print("KERNEL_OK")
</pallas_src>

<mosaic_0001>
module attributes {stable_mosaic.version = 11 : i64} {
  func.func @_moments_kernel(%arg0: i32, %arg1: i32, %arg2: i32, %arg3: memref<1x1x128xf32, #tpu.memory_space<vmem>>, %arg4: memref<1x3x128xf32, #tpu.memory_space<vmem>>, %arg5: memref<1x3x128xf32, #tpu.memory_space<vmem>>, %arg6: memref<1x1x8x128xf32, #tpu.memory_space<vmem>>) attributes {dimension_semantics = [#tpu.dimension_semantics<parallel>, #tpu.dimension_semantics<parallel>, #tpu.dimension_semantics<arbitrary>], iteration_bounds = array<i64: 1, 1, 1>, scalar_prefetch = 0 : i64, scratch_operands = 0 : i64, tpu.core_type = #tpu.core_type<tc>, window_params = [{transform_indices = @transform_0, window_bounds = array<i64: 1, 1, 128>}, {transform_indices = @transform_1, window_bounds = array<i64: 1, 3, 128>}, {transform_indices = @transform_2, window_bounds = array<i64: 1, 3, 128>}, {transform_indices = @transform_3, window_bounds = array<i64: 1, 1, 8, 128>}]} {
    %c0_i32 = arith.constant 0 : i32
    %0 = arith.cmpi eq, %arg2, %c0_i32 : i32
    %1 = arith.extui %0 : i1 to i32
    %c0_i32_0 = arith.constant 0 : i32
    %2 = arith.cmpi ne, %1, %c0_i32_0 : i32
    scf.if %2 {
      %cst_19 = arith.constant 0.000000e+00 : f32
      %25 = vector.broadcast %cst_19 : f32 to vector<8x128xf32>
      %c0_20 = arith.constant 0 : index
      %c0_21 = arith.constant 0 : index
      %c0_22 = arith.constant 0 : index
      %c0_23 = arith.constant 0 : index
      %26 = vector.load %arg6[%c0_20, %c0_21, %c0_22, %c0_23] : memref<1x1x8x128xf32, #tpu.memory_space<vmem>>, vector<1x1x8x128xf32>
      %27 = vector.shape_cast %26 : vector<1x1x8x128xf32> to vector<8x128xf32>
      %28 = vector.shape_cast %25 : vector<8x128xf32> to vector<1x1x8x128xf32>
      tpu.vector_store %arg6[%c0_20, %c0_21, %c0_22, %c0_23], %28 {strides = array<i32>} : memref<1x1x8x128xf32, #tpu.memory_space<vmem>>, vector<1x1x8x128xf32>,
    } else {
    }
    %c0 = arith.constant 0 : index
    %c0_1 = arith.constant 0 : index
    %c0_2 = arith.constant 0 : index
    %3 = vector.load %arg3[%c0, %c0_1, %c0_2] : memref<1x1x128xf32, #tpu.memory_space<vmem>>, vector<1x1x128xf32>
    %4 = vector.shape_cast %3 : vector<1x1x128xf32> to vector<1x128xf32>
    %c0_3 = arith.constant 0 : index
    %c0_4 = arith.constant 0 : index
    %c0_5 = arith.constant 0 : index
    %5 = vector.load %arg4[%c0_3, %c0_4, %c0_5] : memref<1x3x128xf32, #tpu.memory_space<vmem>>, vector<1x3x128xf32>
    %6 = vector.shape_cast %5 : vector<1x3x128xf32> to vector<3x128xf32>
    %c0_6 = arith.constant 0 : index
    %c0_7 = arith.constant 0 : index
    %c0_8 = arith.constant 0 : index
    %7 = vector.load %arg5[%c0_6, %c0_7, %c0_8] : memref<1x3x128xf32, #tpu.memory_space<vmem>>, vector<1x3x128xf32>
    %8 = vector.shape_cast %7 : vector<1x3x128xf32> to vector<3x128xf32>
    %cst = arith.constant 1.000000e+00 : f32
    %9 = vector.broadcast %cst : f32 to vector<1x128xf32>
    %10 = vector.broadcast %4 : vector<1x128xf32> to vector<3x128xf32>
    %11 = arith.mulf %10, %8 : vector<3x128xf32>
    %12 = tpu.concatenate %11, %8, %4, %9 in 0 : vector<3x128xf32>, vector<3x128xf32>, vector<1x128xf32>, vector<1x128xf32> -> vector<8x128xf32>
    %cst_9 = arith.constant 0.000000e+00 : f32
    %13 = vector.broadcast %cst_9 : f32 to vector<1x128xf32>
    %14 = arith.cmpf ogt, %4, %13 : vector<1x128xf32>
    %15 = arith.extui %14 : vector<1x128xi1> to vector<1x128xi32>
    %16 = arith.sitofp %15 : vector<1x128xi32> to vector<1x128xf32>
    %17 = tpu.concatenate %6, %9, %16 in 0 : vector<3x128xf32>, vector<1x128xf32>, vector<1x128xf32> -> vector<5x128xf32>
    %cst_10 = arith.constant dense<0.000000e+00> : vector<8x5xf32>
    %18 = tpu.matmul %12, %17, %cst_10 {dimension_numbers = #tpu.dot_dimension_numbers<[1], [1], [0], [0], [0, 0, 1, 0], [], []>} : vector<8x128xf32>, vector<5x128xf32>, vector<8x5xf32> -> vector<8x5xf32>
    %c0_11 = arith.constant 0 : index
    %c0_12 = arith.constant 0 : index
    %c0_13 = arith.constant 0 : index
    %c0_14 = arith.constant 0 : index
    %19 = vector.load %arg6[%c0_11, %c0_12, %c0_13, %c0_14] : memref<1x1x8x128xf32, #tpu.memory_space<vmem>>, vector<1x1x8x5xf32>
    %20 = vector.shape_cast %19 : vector<1x1x8x5xf32> to vector<8x5xf32>
    %21 = arith.addf %20, %18 : vector<8x5xf32>
    %c0_15 = arith.constant 0 : index
    %c0_16 = arith.constant 0 : index
    %c0_17 = arith.constant 0 : index
    %c0_18 = arith.constant 0 : index
    %22 = vector.load %arg6[%c0_15, %c0_16, %c0_17, %c0_18] : memref<1x1x8x128xf32, #tpu.memory_space<vmem>>, vector<1x1x8x5xf32>
    %23 = vector.shape_cast %22 : vector<1x1x8x5xf32> to vector<8x5xf32>
    %24 = vector.shape_cast %21 : vector<8x5xf32> to vector<1x1x8x5xf32>
    tpu.vector_store %arg6[%c0_15, %c0_16, %c0_17, %c0_18], %24 {strides = array<i32>} : memref<1x1x8x128xf32, #tpu.memory_space<vmem>>, vector<1x1x8x5xf32>,
    return
  }
  func.func @transform_0(%arg0: i32, %arg1: i32, %arg2: i32) -> (i32, i32, i32) {
    %c1_i32 = arith.constant 1 : i32
    %0 = arith.muli %arg0, %c1_i32 : i32
    %1 = arith.addi %0, %arg2 : i32
    %c0_i32 = arith.constant 0 : i32
    %c0_i32_0 = arith.constant 0 : i32
    return %arg1, %c0_i32, %1 : i32, i32, i32
  }
  func.func @transform_1(%arg0: i32, %arg1: i32, %arg2: i32) -> (i32, i32, i32) {
    %c1_i32 = arith.constant 1 : i32
    %0 = arith.muli %arg0, %c1_i32 : i32
    %1 = arith.addi %0, %arg2 : i32
    %c0_i32 = arith.constant 0 : i32
    %c0_i32_0 = arith.constant 0 : i32
    return %arg1, %c0_i32, %1 : i32, i32, i32
  }
  func.func @transform_2(%arg0: i32, %arg1: i32, %arg2: i32) -> (i32, i32, i32) {
    %c1_i32 = arith.constant 1 : i32
    %0 = arith.muli %arg0, %c1_i32 : i32
    %1 = arith.addi %0, %arg2 : i32
    %c0_i32 = arith.constant 0 : i32
    %c0_i32_0 = arith.constant 0 : i32
    return %arg1, %c0_i32, %1 : i32, i32, i32
  }
  func.func @transform_3(%arg0: i32, %arg1: i32, %arg2: i32) -> (i32, i32, i32, i32) {
    %c0_i32 = arith.constant 0 : i32
    %c0_i32_0 = arith.constant 0 : i32
    %c0_i32_1 = arith.constant 0 : i32
    return %arg0, %arg1, %c0_i32, %c0_i32_0 : i32, i32, i32, i32
  }
}

</mosaic_0001>

<llo_original>
// kernel: custom-call.63
$region0: #{custom-call.63}
  %s0 = inlined_call_operand.vmem [shape: f32[1,6,3], index: 0, kind: input, shape index: {}]
  %s1 = inlined_call_operand.vmem [shape: f32[1,6,3], index: 1, kind: output, shape index: {0}]
  %s2 = inlined_call_operand.vmem [shape: f32[1,3], index: 2, kind: output, shape index: {1}]
  %3 = xla_tuple %s1, %s2
  $region1: #{custom-call.63} parent=0
    #allocation0 [shape = 'u8[4096]{0}', space=vmem, size = 0x1000, scoped, tag = 'operand span for operand 0']
    #allocation1 [shape = 'u8[4096]{0}', space=vmem, size = 0x1000, scoped, tag = 'operand span for operand 1']
    #allocation2 [shape = 'u8[4096]{0}', space=vmem, size = 0x1000, scoped, tag = 'operand span for operand 2']
    #allocation3 [shape = 'u8[512]{0}', space=vmem, size = 0x400, scoped, tag = 'packed  for operand 2']
    #allocation4 [shape = 'f32[6,128]{1,0}', space=vmem, size = 0x1000, scoped, tag = 'scratch for Householder reflectors']
    // Predicated region
    $region2: #{custom-call.63} parent=1 // pred_check
      _
    $region3: #{custom-call.63} parent=1 // pred_check_branch
      %5 = sbr.rel (0) target = $region5
    $region4: #{custom-call.63} parent=1 // pred_region
      // Predicated region
      $region6: #{custom-call.63} parent=4 // pred_check
        _
      $region7: #{custom-call.63} parent=4 // pred_check_branch
        %7 = sbr.rel (0) target = $region9
      $region8: #{custom-call.63} parent=4 // pred_region
        // Predicated region
        $region21: #{custom-call.63} parent=8 // pred_check
          _
        $region22: #{custom-call.63} parent=8 // pred_check_branch
          %23 = sbr.rel (0) target = $region24
        $region23: #{custom-call.63} parent=8 // pred_region
          loop: start=0, step=1, limit=1
          $region25: #{custom-call.63} parent=23 // loop_pre_header
            _
          $region26: #{custom-call.63} parent=23 // loop_header
            %s25 = sphi 0, %s29
            %p26 = scmp.ge.s32.totalorder %s25, 1
            %s30 = sphi %s0, %s0
            %s31 = sphi [#allocation0], [#allocation0]
          $region27: #{custom-call.63} parent=23 // loop_header_branch
            %28 = sbr.rel (%p26) target = $region31
          $region28: #{custom-call.63} parent=23 // loop_body
            %v32 = vld [vmem:[%s30] sm:$0xff]
            %33 = vst [vmem:[%s31] sm:$0xff] %v32
          $region29: #{custom-call.63} parent=23 // loop_footer
            %s29 = sadd.s32 1, %s25
          $region30: #{custom-call.63} parent=23 // loop_footer_branch
            %24 = sbr.rel target = $region26
          $region31: #{custom-call.63} parent=23 // loop_exit
            _
        $region24: #{custom-call.63} parent=8 // pred_fallthru
          _
        // Predicated region
        $region32: #{custom-call.63} parent=8 // pred_check
          _
        $region33: #{custom-call.63} parent=8 // pred_check_branch
          %35 = sbr.rel target = $region35
        $region34: #{custom-call.63} parent=8 // pred_region
          _
        $region35: #{custom-call.63} parent=8 // pred_fallthru
          _
      $region9: #{custom-call.63} parent=4 // pred_fallthru
        _
      // Predicated region
      $region10: #{custom-call.63} parent=4 // pred_check
        _
      $region11: #{custom-call.63} parent=4 // pred_check_branch
        %9 = sbr.rel target = $region13
      $region12: #{custom-call.63} parent=4 // pred_region
        %s11 = ssub.s32 256, 1
        loop: start=0, step=1, limit=1
        $region14: #{custom-call.63} parent=12 // loop_pre_header
          _
        $region15: #{custom-call.63} parent=12 // loop_header
          %s13 = sphi 0, %s17
          %p14 = scmp.ge.s32.totalorder %s13, 1
          %s18 = sphi %s0, %s0
          %s19 = sphi [#allocation0], [#allocation0]
        $region16: #{custom-call.63} parent=12 // loop_header_branch
          %16 = sbr.rel (%p14) target = $region20
        $region17: #{custom-call.63} parent=12 // loop_body
          %v20 = vld [vmem:[%s18] sm:%s11]
          %21 = vst [vmem:[%s19] sm:%s11] %v20
        $region18: #{custom-call.63} parent=12 // loop_footer
          %s17 = sadd.s32 1, %s13
        $region19: #{custom-call.63} parent=12 // loop_footer_branch
          %12 = sbr.rel target = $region15
        $region20: #{custom-call.63} parent=12 // loop_exit
          _
      $region13: #{custom-call.63} parent=4 // pred_fallthru
        _
    $region5: #{custom-call.63} parent=1 // pred_fallthru
      _
    %36 = vnop
    %s37 = ssub.s32 0, 0
    %s38 = ssub.s32 0, 0
    %v39 = vld [vmem:[#allocation0] sm:$0xff]
    %40 = vst [vmem:[#allocation1] sm:$0xff] %v39
    %41 = vst [vmem:[#allocation2] sm:$0x1] 0.0
    loop: start=0, step=1, limit=3
    $region36: #{custom-call.63} parent=1 // loop_pre_header
      _
    $region37: #{custom-call.63} parent=1 // loop_header
      %s43 = sphi 0, %s47
      %p44 = scmp.ge.s32.totalorder %s43, 3
    $region38: #{custom-call.63} parent=1 // loop_header_branch
      %46 = sbr.rel (%p44) target = $region42
    $region39: #{custom-call.63} parent=1 // loop_body
      %v48 = vld [vmem:[#allocation1] sm:$0xff]
      %v49 = vlaneseq
      %v50 = vshrl.u32 %v49, 7
      %v52 = vstv %s43
      %vm53 = vcmp.gt.s32.totalorder %v50, %v52
      %vm54 = vcmp.lt.s32.totalorder %v50, 6
      %vm55 = vmand %vm53, %vm54
      %v56 = vsel %vm55, %v48, 0.0
      %v57 = vmul.f32 %v56, %v56
      %v58 = vrot.slane %v57, 4
      %v59 = vadd.f32 %v57, %v58
      %v60 = vrot.slane %v59, 2
      %v61 = vadd.f32 %v59, %v60
      %v62 = vrot.slane %v61, 1
      %v63 = vadd.f32 %v61, %v62
      %v64 = vrsqrt.pop %v63
      %v65 = vmul.f32 %v64, %v63
      %v66 = vmul.f32 %v65, %v64
      %v67 = vmul.f32 0.5, %v66
      %v68 = vsub.f32 1.5, %v67
      %v69 = vmul.f32 %v64, %v68
      %v70 = vmul.f32 %v63, %v69
      %vm71 = vcmp.eq.f32.partialorder %v63, inf
      %v72 = vsel %vm71, %v63, %v70
      %vm73 = vcmp.eq.f32.partialorder %v63, 0.0
      %v74 = vand.u32 %v63, 2147483648
      %v75 = vsel %vm73, %v74, %v72
      %vm76 = vcmp.eq.f32.partialorder %v63, 0.0
      %s77 = sshrl.u32 %s43, 3
      %s78 = sand.u32 %s43, 7
      %s79 = smul.addr %s77, 8
      %s80 = sadd.s32 %s78, %s79
      %s81 = scalar_lea.vmem [#allocation1], %s80
      %v82 = vld [vmem:[%s81] ss:$0 sm:$0xff]
      %v83 = vand.u32 2147483647, %v82
      %v84 = vmax.f32 %v83, 0.0
      %v85 = vand.u32 2147483647, %v75
      %v86 = vmax.f32 %v84, %v85
      %v87 = vrcp.pop %v86
      %v88 = vmul.f32 %v86, %v87
      %v89 = vsub.f32 1.0, %v88
      %v90 = vmul.f32 %v87, %v89
      %v91 = vadd.f32 %v87, %v90
      %vm92 = vweird.f32 %v86
      %vm93 = vweird.f32 %v87
      %vm94 = vmor %vm92, %vm93
      %v95 = vsel %vm94, %v87, %v91
      %v96 = vand.u32 2147483647, %v86
      %vm97 = vcmp.eq.f32.partialorder %v96, 8.507059e+37
      %v98 = vand.u32 %v86, 2147483648
      %v99 = vor.u32 1.1754944e-38, %v98
      %v100 = vsel %vm97, %v99, %v95
      %v101 = vmul.f32 %v83, %v100
      %v102 = vmul.f32 %v101, %v101
      %v103 = vrcp.pop %v86
      %v104 = vmul.f32 %v86, %v103
      %v105 = vsub.f32 1.0, %v104
      %v106 = vmul.f32 %v103, %v105
      %v107 = vadd.f32 %v103, %v106
      %vm108 = vweird.f32 %v86
      %vm109 = vweird.f32 %v103
      %vm110 = vmor %vm108, %vm109
      %v111 = vsel %vm110, %v103, %v107
      %v112 = vand.u32 2147483647, %v86
      %vm113 = vcmp.eq.f32.partialorder %v112, 8.507059e+37
      %v114 = vand.u32 %v86, 2147483648
      %v115 = vor.u32 1.1754944e-38, %v114
      %v116 = vsel %vm113, %v115, %v111
      %v117 = vmul.f32 0.0, %v116
      %v118 = vmul.f32 %v117, %v117
      %v119 = vadd.f32 %v102, %v118
      %v120 = vrcp.pop %v86
      %v121 = vmul.f32 %v86, %v120
      %v122 = vsub.f32 1.0, %v121
      %v123 = vmul.f32 %v120, %v122
      %v124 = vadd.f32 %v120, %v123
      %vm125 = vweird.f32 %v86
      %vm126 = vweird.f32 %v120
      %vm127 = vmor %vm125, %vm126
      %v128 = vsel %vm127, %v120, %v124
      %v129 = vand.u32 2147483647, %v86
      %vm130 = vcmp.eq.f32.partialorder %v129, 8.507059e+37
      %v131 = vand.u32 %v86, 2147483648
      %v132 = vor.u32 1.1754944e-38, %v131
      %v133 = vsel %vm130, %v132, %v128
      %v134 = vmul.f32 %v85, %v133
      %v135 = vmul.f32 %v134, %v134
      %v136 = vadd.f32 %v119, %v135
      %vm137 = vcmp.eq.f32.partialorder %v86, 0.0
      %v138 = vrsqrt.pop %v136
      %v139 = vmul.f32 %v138, %v136
      %v140 = vmul.f32 %v139, %v138
      %v141 = vmul.f32 0.5, %v140
      %v142 = vsub.f32 1.5, %v141
      %v143 = vmul.f32 %v138, %v142
      %v144 = vmul.f32 %v136, %v143
      %vm145 = vcmp.eq.f32.partialorder %v136, inf
      %v146 = vsel %vm145, %v136, %v144
      %vm147 = vcmp.eq.f32.partialorder %v136, 0.0
      %v148 = vand.u32 %v136, 2147483648
      %v149 = vsel %vm147, %v148, %v146
      %v150 = vmul.f32 %v86, %v149
      %v151 = vsel %vm137, 0.0, %v150
      %vm152 = vcmp.lt.f32.partialorder %v82, 0.0
      %v153 = vxor.u32 %v151, 2147483648
      %v154 = vsel %vm152, %v151, %v153
      %v155 = vsub.f32 %v154, %v82
      %v156 = vrcp.pop %v154
      %v157 = vmul.f32 %v154, %v156
      %v158 = vsub.f32 1.0, %v157
      %v159 = vmul.f32 %v156, %v158
      %v160 = vadd.f32 %v156, %v159
      %vm161 = vweird.f32 %v154
      %vm162 = vweird.f32 %v156
      %vm163 = vmor %vm161, %vm162
      %v164 = vsel %vm163, %v156, %v160
      %v165 = vand.u32 2147483647, %v154
      %vm166 = vcmp.eq.f32.partialorder %v165, 8.507059e+37
      %v167 = vand.u32 %v154, 2147483648
      %v168 = vor.u32 1.1754944e-38, %v167
      %v169 = vsel %vm166, %v168, %v164
      %v170 = vmul.f32 %v155, %v169
      %v171 = vsel %vm76, %v82, %v154
      %v172 = vsel %vm76, 0.0, %v170
      %v173 = vsub.f32 %v82, %v171
      %s174 = smov [#allocation1]
      %v175 = vlaneseq
      %v176 = vshrl.u32 %v175, 7
      %v177 = vmov %v176
      %v178 = vld [vmem:[%s174] sm:$0xff]
      %v180 = vstv %s43
      %vm181 = vcmp.gt.s32.totalorder %v177, %v180
      %vm182 = vcmp.lt.s32.totalorder %v177, 6
      %vm183 = vmand %vm181, %vm182
      %v184 = vsel %vm183, %v178, 0.0
      %v185 = vrcp.pop %v173
      %v186 = vmul.f32 %v173, %v185
      %v187 = vsub.f32 1.0, %v186
      %v188 = vmul.f32 %v185, %v187
      %v189 = vadd.f32 %v185, %v188
      %vm190 = vweird.f32 %v173
      %vm191 = vweird.f32 %v185
      %vm192 = vmor %vm190, %vm191
      %v193 = vsel %vm192, %v185, %v189
      %v194 = vand.u32 2147483647, %v173
      %vm195 = vcmp.eq.f32.partialorder %v194, 8.507059e+37
      %v196 = vand.u32 %v173, 2147483648
      %v197 = vor.u32 1.1754944e-38, %v196
      %v198 = vsel %vm195, %v197, %v193
      %v199 = vmul.f32 %v184, %v198
      %v200 = vsel %vm76, 0.0, %v199
      %v201 = vstv %s43
      %v202 = vlaneseq
      %v203 = vand.u32 %v202, 127
      %vm204 = vcmp.eq.s32.totalorder %v203, %v201
      %v205 = vsel %vm204, %v200, 0.0
      %206 = vadd.xlane.f32.xlu0 %v205
      %v207 = vpop.xlane.xlu0 %206
      %208 = vst [vmem:[#allocation4] sm:$0xff] %v207
      %s209 = scalar_lea.vmem [#allocation4], %s43
      %210 = vst [vmem:[%s209] sm:$0x1] 1.0
      %v211 = vstv %s43
      %v212 = vlaneseq
      %v213 = vand.u32 %v212, 127
      %vm214 = vcmp.eq.s32.totalorder %v213, %v211
      %v215 = vsel %vm214, %v172, 0.0
      %216 = vadd.xlane.f32.xlu0 %v215
      %v217 = vpop.xlane.xlu0 %216
      %v218 = vstv %s43
      %v219 = vlaneseq
      %v220 = vand.u32 %v219, 127
      %vm221 = vcmp.eq.s32.totalorder %v220, %v218
      %v222 = vld [vmem:[#allocation2] ss:$0 sm:$0xff]
      %v223 = vsel %vm221, %v217, %v222
      %224 = vst [vmem:[#allocation2] sm:$0x1] %v223
      %s225 = smov [#allocation1]
      %s226 = smov [#allocation4]
      %v227 = vlaneseq
      %v228 = vshrl.u32 %v227, 7
      %v229 = vmov %v228
      %v231 = vld [vmem:[%s226] sm:$0xff]
      %v232 = vld [vmem:[%s225] sm:$0xff]
      %v233 = vmul.f32 %v231, %v232
      %vm234 = vcmp.lt.s32.totalorder %v229, 6
      %v235 = vsel %vm234, %v233, 0.0
      %v236 = vrot.slane %v235, 4
      %v237 = vadd.f32 %v235, %v236
      %v238 = vrot.slane %v237, 2
      %v239 = vadd.f32 %v237, %v238
      %v240 = vrot.slane %v239, 1
      %v241 = vadd.f32 %v239, %v240
      %s242 = smov %s225
      %s243 = smov %s226
      %v244 = vlaneseq
      %v245 = vshrl.u32 %v244, 7
      %v246 = vmov %v245
      %v247 = vmul.f32 %v241, %v217
      %v249 = vlaneseq
      %v250 = vand.u32 %v249, 127
      %v251 = vld [vmem:[%s243] sm:$0xff]
      %v252 = vmul.f32 %v251, %v247
      %v253 = vld [vmem:[%s242] sm:$0xff]
      %v254 = vstv %s43
      %vm255 = vcmp.gt.s32.totalorder %v250, %v254
      %v256 = vsub.f32 %v253, %v252
      %v257 = vsel %vm255, %v256, %v253
      %v258 = vstv %s43
      %v259 = vlaneseq
      %v260 = vand.u32 %v259, 127
      %vm261 = vcmp.eq.s32.totalorder %v260, %v258
      %v262 = vstv %s43
      %vm263 = vcmp.ge.s32.totalorder %v246, %v262
      %vm264 = vmand %vm261, %vm263
      %v265 = vsel %vm264, %v251, %v257
      %266 = vst [vmem:[%s242] sm:$0xff] %v265
      %s267 = scalar_lea.vmem %s242, %s43
      %v268 = vld [vmem:[%s267] ss:$0 sm:$0xff]
      %v269 = vstv %s43
      %v270 = vlaneseq
      %v271 = vand.u32 %v270, 127
      %vm272 = vcmp.eq.s32.totalorder %v271, %v269
      %v273 = vsel %vm272, %v171, %v268
      %274 = vst [vmem:[%s267] sm:$0x1] %v273
    $region40: #{custom-call.63} parent=1 // loop_footer
      %s47 = sadd.s32 1, %s43
    $region41: #{custom-call.63} parent=1 // loop_footer_branch
      %42 = sbr.rel target = $region37
    $region42: #{custom-call.63} parent=1 // loop_exit
      _
    %s276 = ssub.s32 2, 1
    %v277 = vld [vmem:[#allocation2] sm:%s276]
    %s279 = ssub.s32 2, 1
    %280 = vst [vmem:[#allocation3] sm:%s279] %v277
    // Predicated region
    $region43: #{custom-call.63} parent=1 // pred_check
      _
    $region44: #{custom-call.63} parent=1 // pred_check_branch
      %282 = sbr.rel (0) target = $region46
    $region45: #{custom-call.63} parent=1 // pred_region
      // Predicated region
      $region47: #{custom-call.63} parent=45 // pred_check
        _
      $region48: #{custom-call.63} parent=45 // pred_check_branch
        %284 = sbr.rel (0) target = $region50
      $region49: #{custom-call.63} parent=45 // pred_region
        // Predicated region
        $region62: #{custom-call.63} parent=49 // pred_check
          _
        $region63: #{custom-call.63} parent=49 // pred_check_branch
          %300 = sbr.rel (0) target = $region65
        $region64: #{custom-call.63} parent=49 // pred_region
          loop: start=0, step=1, limit=1
          $region66: #{custom-call.63} parent=64 // loop_pre_header
            _
          $region67: #{custom-call.63} parent=64 // loop_header
            %s302 = sphi 0, %s306
            %p303 = scmp.ge.s32.totalorder %s302, 1
            %s307 = sphi [#allocation1], [#allocation1]
            %s308 = sphi %s1, %s1
          $region68: #{custom-call.63} parent=64 // loop_header_branch
            %305 = sbr.rel (%p303) target = $region72
          $region69: #{custom-call.63} parent=64 // loop_body
            %v309 = vld [vmem:[%s307] sm:$0xff]
            %310 = vst [vmem:[%s308] sm:$0xff] %v309
          $region70: #{custom-call.63} parent=64 // loop_footer
            %s306 = sadd.s32 1, %s302
          $region71: #{custom-call.63} parent=64 // loop_footer_branch
            %301 = sbr.rel target = $region67
          $region72: #{custom-call.63} parent=64 // loop_exit
            _
        $region65: #{custom-call.63} parent=49 // pred_fallthru
          _
        // Predicated region
        $region73: #{custom-call.63} parent=49 // pred_check
          _
        $region74: #{custom-call.63} parent=49 // pred_check_branch
          %312 = sbr.rel target = $region76
        $region75: #{custom-call.63} parent=49 // pred_region
          _
        $region76: #{custom-call.63} parent=49 // pred_fallthru
          _
      $region50: #{custom-call.63} parent=45 // pred_fallthru
        _
      // Predicated region
      $region51: #{custom-call.63} parent=45 // pred_check
        _
      $region52: #{custom-call.63} parent=45 // pred_check_branch
        %286 = sbr.rel target = $region54
      $region53: #{custom-call.63} parent=45 // pred_region
        %s288 = ssub.s32 256, 1
        loop: start=0, step=1, limit=1
        $region55: #{custom-call.63} parent=53 // loop_pre_header
          _
        $region56: #{custom-call.63} parent=53 // loop_header
          %s290 = sphi 0, %s294
          %p291 = scmp.ge.s32.totalorder %s290, 1
          %s295 = sphi [#allocation1], [#allocation1]
          %s296 = sphi %s1, %s1
        $region57: #{custom-call.63} parent=53 // loop_header_branch
          %293 = sbr.rel (%p291) target = $region61
        $region58: #{custom-call.63} parent=53 // loop_body
          %v297 = vld [vmem:[%s295] sm:%s288]
          %298 = vst [vmem:[%s296] sm:%s288] %v297
        $region59: #{custom-call.63} parent=53 // loop_footer
          %s294 = sadd.s32 1, %s290
        $region60: #{custom-call.63} parent=53 // loop_footer_branch
          %289 = sbr.rel target = $region56
        $region61: #{custom-call.63} parent=53 // loop_exit
          _
      $region54: #{custom-call.63} parent=45 // pred_fallthru
        _
    $region46: #{custom-call.63} parent=1 // pred_fallthru
      _
    %313 = vnop
    // Predicated region
    $region77: #{custom-call.63} parent=1 // pred_check
      _
    $region78: #{custom-call.63} parent=1 // pred_check_branch
      %315 = sbr.rel (0) target = $region80
    $region79: #{custom-call.63} parent=1 // pred_region
      %s316 = ssub.s32 0, 0
      %s317 = ssub.s32 0, 0
      // Predicated region
      $region81: #{custom-call.63} parent=79 // pred_check
        _
      $region82: #{custom-call.63} parent=79 // pred_check_branch
        %319 = sbr.rel (0) target = $region84
      $region83: #{custom-call.63} parent=79 // pred_region
        // Predicated region
        $region85: #{custom-call.63} parent=83 // pred_check
          _
        $region86: #{custom-call.63} parent=83 // pred_check_branch
          %321 = sbr.rel target = $region88
        $region87: #{custom-call.63} parent=83 // pred_region
          // Predicated region
          $region100: #{custom-call.63} parent=87 // pred_check
            _
          $region101: #{custom-call.63} parent=87 // pred_check_branch
            %337 = sbr.rel (0) target = $region103
          $region102: #{custom-call.63} parent=87 // pred_region
            %s339 = ssub.s32 2, 1
            loop: start=0, step=1, limit=1
            $region104: #{custom-call.63} parent=102 // loop_pre_header
              _
            $region105: #{custom-call.63} parent=102 // loop_header
              %s341 = sphi 0, %s345
              %p342 = scmp.ge.s32.totalorder %s341, 1
              %s346 = sphi [#allocation3], [#allocation3]
              %s347 = sphi %s2, %s2
            $region106: #{custom-call.63} parent=102 // loop_header_branch
              %344 = sbr.rel (%p342) target = $region110
            $region107: #{custom-call.63} parent=102 // loop_body
              %v348 = vld [vmem:[%s346] sm:%s339]
              %349 = vst [vmem:[%s347] sm:%s339] %v348
            $region108: #{custom-call.63} parent=102 // loop_footer
              %s345 = sadd.s32 1, %s341
            $region109: #{custom-call.63} parent=102 // loop_footer_branch
              %340 = sbr.rel target = $region105
            $region110: #{custom-call.63} parent=102 // loop_exit
              _
          $region103: #{custom-call.63} parent=87 // pred_fallthru
            _
        $region88: #{custom-call.63} parent=83 // pred_fallthru
          _
        // Predicated region
        $region89: #{custom-call.63} parent=83 // pred_check
          _
        $region90: #{custom-call.63} parent=83 // pred_check_branch
          %323 = sbr.rel (0) target = $region92
        $region91: #{custom-call.63} parent=83 // pred_region
          %s325 = ssub.s32 2, 1
          loop: start=0, step=1, limit=1
          $region93: #{custom-call.63} parent=91 // loop_pre_header
            _
          $region94: #{custom-call.63} parent=91 // loop_header
            %s327 = sphi 0, %s331
            %p328 = scmp.ge.s32.totalorder %s327, 1
            %s332 = sphi [#allocation3], [#allocation3]
            %s333 = sphi %s2, %s2
          $region95: #{custom-call.63} parent=91 // loop_header_branch
            %330 = sbr.rel (%p328) target = $region99
          $region96: #{custom-call.63} parent=91 // loop_body
            %v334 = vld [vmem:[%s332] sm:%s325]
            %335 = vst [vmem:[%s333] sm:%s325] %v334
          $region97: #{custom-call.63} parent=91 // loop_footer
            %s331 = sadd.s32 1, %s327
          $region98: #{custom-call.63} parent=91 // loop_footer_branch
            %326 = sbr.rel target = $region94
          $region99: #{custom-call.63} parent=91 // loop_exit
            _
        $region92: #{custom-call.63} parent=83 // pred_fallthru
          _
      $region84: #{custom-call.63} parent=79 // pred_fallthru
        _
      %350 = vnop
    $region80: #{custom-call.63} parent=1 // pred_fallthru
      _
    // Predicated region
    $region111: #{custom-call.63} parent=1 // pred_check
      _
    $region112: #{custom-call.63} parent=1 // pred_check_branch
      %352 = sbr.rel (0) target = $region114
    $region113: #{custom-call.63} parent=1 // pred_region
      _
    $region114: #{custom-call.63} parent=1 // pred_fallthru
      _

// kernel: custom-call.64
$region0: #{custom-call.64}
  %s0 = inlined_call_operand.vmem [shape: f32[1,3,3], index: 0, kind: input, shape index: {}]
  %s1 = inlined_call_operand.vmem [shape: f32[1,3,3], index: 1, kind: output, shape index: {}]
  $region1: #{custom-call.64} parent=0
    #allocation0 [shape = 'u8[4096]{0}', space=vmem, size = 0x1000, scoped, tag = 'operand span for operand 0']
    #allocation1 [shape = 'u8[2048]{0}', space=vmem, size = 0x800, scoped, tag = 'packed  for operand 0']
    #allocation2 [shape = 'u8[4096]{0}', space=vmem, size = 0x1000, scoped, tag = 'operand span for operand 1']
    #allocation3 [shape = 'u8[2048]{0}', space=vmem, size = 0x800, scoped, tag = 'packed  for operand 1']
    // Predicated region
    $region2: #{custom-call.64} parent=1 // pred_check
      _
    $region3: #{custom-call.64} parent=1 // pred_check_branch
      %3 = sbr.rel (0) target = $region5
    $region4: #{custom-call.64} parent=1 // pred_region
      // Predicated region
      $region6: #{custom-call.64} parent=4 // pred_check
        _
      $region7: #{custom-call.64} parent=4 // pred_check_branch
        %5 = sbr.rel target = $region9
      $region8: #{custom-call.64} parent=4 // pred_region
        // Predicated region
        $region21: #{custom-call.64} parent=8 // pred_check
          _
        $region22: #{custom-call.64} parent=8 // pred_check_branch
          %21 = sbr.rel (0) target = $region24
        $region23: #{custom-call.64} parent=8 // pred_region
          %s23 = ssub.s32 16, 1
          loop: start=0, step=1, limit=1
          $region25: #{custom-call.64} parent=23 // loop_pre_header
            _
          $region26: #{custom-call.64} parent=23 // loop_header
            %s25 = sphi 0, %s29
            %p26 = scmp.ge.s32.totalorder %s25, 1
            %s30 = sphi %s0, %s0
            %s31 = sphi [#allocation1], [#allocation1]
          $region27: #{custom-call.64} parent=23 // loop_header_branch
            %28 = sbr.rel (%p26) target = $region31
          $region28: #{custom-call.64} parent=23 // loop_body
            %v32 = vld [vmem:[%s30] sm:%s23]
            %33 = vst [vmem:[%s31] sm:%s23] %v32
          $region29: #{custom-call.64} parent=23 // loop_footer
            %s29 = sadd.s32 1, %s25
          $region30: #{custom-call.64} parent=23 // loop_footer_branch
            %24 = sbr.rel target = $region26
          $region31: #{custom-call.64} parent=23 // loop_exit
            _
        $region24: #{custom-call.64} parent=8 // pred_fallthru
          _
      $region9: #{custom-call.64} parent=4 // pred_fallthru
        _
      // Predicated region
      $region10: #{custom-call.64} parent=4 // pred_check
        _
      $region11: #{custom-call.64} parent=4 // pred_check_branch
        %7 = sbr.rel (0) target = $region13
      $region12: #{custom-call.64} parent=4 // pred_region
        %s9 = ssub.s32 16, 1
        loop: start=0, step=1, limit=1
        $region14: #{custom-call.64} parent=12 // loop_pre_header
          _
        $region15: #{custom-call.64} parent=12 // loop_header
          %s11 = sphi 0, %s15
          %p12 = scmp.ge.s32.totalorder %s11, 1
          %s16 = sphi %s0, %s0
          %s17 = sphi [#allocation1], [#allocation1]
        $region16: #{custom-call.64} parent=12 // loop_header_branch
          %14 = sbr.rel (%p12) target = $region20
        $region17: #{custom-call.64} parent=12 // loop_body
          %v18 = vld [vmem:[%s16] sm:%s9]
          %19 = vst [vmem:[%s17] sm:%s9] %v18
        $region18: #{custom-call.64} parent=12 // loop_footer
          %s15 = sadd.s32 1, %s11
        $region19: #{custom-call.64} parent=12 // loop_footer_branch
          %10 = sbr.rel target = $region15
        $region20: #{custom-call.64} parent=12 // loop_exit
          _
      $region13: #{custom-call.64} parent=4 // pred_fallthru
        _
    $region5: #{custom-call.64} parent=1 // pred_fallthru
      _
    %34 = vnop
    %s36 = ssub.s32 16, 1
    %v37 = vld [vmem:[#allocation1] sm:%s36]
    %38 = vst [vmem:[#allocation0] sm:%s36] %v37
    %v39 = vlaneseq
    %v40 = vand.u32 %v39, 127
    %v41 = vlaneseq
    %v42 = vshrl.u32 %v41, 7
    %vm44 = vcmp.eq.s32.totalorder %v40, %v42
    %v45 = vld [vmem:[#allocation0] sm:$0xff]
    %v46 = vlaneseq
    %v47 = vand.u32 %v46, 127
    %vm48 = vcmp.eq.s32.totalorder %v47, 0
    %v49 = vsel %vm48, %v45, 1.0
    %v50 = vsel %vm44, %v49, 0.0
    %s51 = scalar_lea.vmem [#allocation0], 1
    %v52 = vld [vmem:[%s51] ss:$0 sm:$0xff]
    %vm53 = vcmask 23552
    %v54 = vsel %vm53, %v52, 0.0
    %v55 = vlaneseq
    %v56 = vand.u32 %v55, 127
    %vm57 = vcmp.eq.s32.totalorder %v56, 1
    %v58 = vmul.f32 %v54, %v50
    %59 = vadd.xlane.f32.xlu0 %v58
    %v60 = vpop.xlane.xlu0 %59
    %v61 = vsel %vm57, %v60, %v50
    %s62 = scalar_lea.vmem [#allocation0], 2
    %v63 = vld [vmem:[%s62] ss:$0 sm:$0xff]
    %vm64 = vcmask 23552
    %v65 = vsel %vm64, %v63, 0.0
    %v66 = vlaneseq
    %v67 = vand.u32 %v66, 127
    %vm68 = vcmp.eq.s32.totalorder %v67, 2
    %v69 = vmul.f32 %v65, %v61
    %70 = vadd.xlane.f32.xlu0 %v69
    %v71 = vpop.xlane.xlu0 %70
    %v72 = vsel %vm68, %v71, %v61
    %73 = vst [vmem:[#allocation2] sm:$0xff] %v72
    %s75 = ssub.s32 16, 1
    %v76 = vld [vmem:[#allocation2] sm:%s75]
    %s78 = ssub.s32 16, 1
    %79 = vst [vmem:[#allocation3] sm:%s78] %v76
    // Predicated region
    $region32: #{custom-call.64} parent=1 // pred_check
      _
    $region33: #{custom-call.64} parent=1 // pred_check_branch
      %81 = sbr.rel (0) target = $region35
    $region34: #{custom-call.64} parent=1 // pred_region
      // Predicated region
      $region36: #{custom-call.64} parent=34 // pred_check
        _
      $region37: #{custom-call.64} parent=34 // pred_check_branch
        %83 = sbr.rel target = $region39
      $region38: #{custom-call.64} parent=34 // pred_region
        // Predicated region
        $region51: #{custom-call.64} parent=38 // pred_check
          _
        $region52: #{custom-call.64} parent=38 // pred_check_branch
          %99 = sbr.rel (0) target = $region54
        $region53: #{custom-call.64} parent=38 // pred_region
          %s101 = ssub.s32 16, 1
          loop: start=0, step=1, limit=1
          $region55: #{custom-call.64} parent=53 // loop_pre_header
            _
          $region56: #{custom-call.64} parent=53 // loop_header
            %s103 = sphi 0, %s107
            %p104 = scmp.ge.s32.totalorder %s103, 1
            %s108 = sphi [#allocation3], [#allocation3]
            %s109 = sphi %s1, %s1
          $region57: #{custom-call.64} parent=53 // loop_header_branch
            %106 = sbr.rel (%p104) target = $region61
          $region58: #{custom-call.64} parent=53 // loop_body
            %v110 = vld [vmem:[%s108] sm:%s101]
            %111 = vst [vmem:[%s109] sm:%s101] %v110
          $region59: #{custom-call.64} parent=53 // loop_footer
            %s107 = sadd.s32 1, %s103
          $region60: #{custom-call.64} parent=53 // loop_footer_branch
            %102 = sbr.rel target = $region56
          $region61: #{custom-call.64} parent=53 // loop_exit
            _
        $region54: #{custom-call.64} parent=38 // pred_fallthru
          _
      $region39: #{custom-call.64} parent=34 // pred_fallthru
        _
      // Predicated region
      $region40: #{custom-call.64} parent=34 // pred_check
        _
      $region41: #{custom-call.64} parent=34 // pred_check_branch
        %85 = sbr.rel (0) target = $region43
      $region42: #{custom-call.64} parent=34 // pred_region
        %s87 = ssub.s32 16, 1
        loop: start=0, step=1, limit=1
        $region44: #{custom-call.64} parent=42 // loop_pre_header
          _
        $region45: #{custom-call.64} parent=42 // loop_header
          %s89 = sphi 0, %s93
          %p90 = scmp.ge.s32.totalorder %s89, 1
          %s94 = sphi [#allocation3], [#allocation3]
          %s95 = sphi %s1, %s1
        $region46: #{custom-call.64} parent=42 // loop_header_branch
          %92 = sbr.rel (%p90) target = $region50
        $region47: #{custom-call.64} parent=42 // loop_body
          %v96 = vld [vmem:[%s94] sm:%s87]
          %97 = vst [vmem:[%s95] sm:%s87] %v96
        $region48: #{custom-call.64} parent=42 // loop_footer
          %s93 = sadd.s32 1, %s89
        $region49: #{custom-call.64} parent=42 // loop_footer_branch
          %88 = sbr.rel target = $region45
        $region50: #{custom-call.64} parent=42 // loop_exit
          _
      $region43: #{custom-call.64} parent=34 // pred_fallthru
        _
    $region35: #{custom-call.64} parent=1 // pred_fallthru
      _
    %112 = vnop

// kernel: custom-call.61
$region0: #{custom-call.61}
  %s0 = inlined_call_operand.vmem [shape: f32[1,3,3], index: 0, kind: input, shape index: {}]
  %s1 = inlined_call_operand.vmem [shape: f32[1,3,3], index: 1, kind: output, shape index: {}]
  $region1: #{custom-call.61} parent=0
    #allocation0 [shape = 'u8[4096]{0}', space=vmem, size = 0x1000, scoped, tag = 'operand span for operand 0']
    #allocation1 [shape = 'u8[2048]{0}', space=vmem, size = 0x800, scoped, tag = 'packed  for operand 0']
    #allocation2 [shape = 'u8[4096]{0}', space=vmem, size = 0x1000, scoped, tag = 'operand span for operand 1']
    #allocation3 [shape = 'u8[2048]{0}', space=vmem, size = 0x800, scoped, tag = 'packed  for operand 1']
    // Predicated region
    $region2: #{custom-call.61} parent=1 // pred_check
      _
    $region3: #{custom-call.61} parent=1 // pred_check_branch
      %3 = sbr.rel (0) target = $region5
    $region4: #{custom-call.61} parent=1 // pred_region
      // Predicated region
      $region6: #{custom-call.61} parent=4 // pred_check
        _
      $region7: #{custom-call.61} parent=4 // pred_check_branch
        %5 = sbr.rel target = $region9
      $region8: #{custom-call.61} parent=4 // pred_region
        // Predicated region
        $region21: #{custom-call.61} parent=8 // pred_check
          _
        $region22: #{custom-call.61} parent=8 // pred_check_branch
          %21 = sbr.rel (0) target = $region24
        $region23: #{custom-call.61} parent=8 // pred_region
          %s23 = ssub.s32 16, 1
          loop: start=0, step=1, limit=1
          $region25: #{custom-call.61} parent=23 // loop_pre_header
            _
          $region26: #{custom-call.61} parent=23 // loop_header
            %s25 = sphi 0, %s29
            %p26 = scmp.ge.s32.totalorder %s25, 1
            %s30 = sphi %s0, %s0
            %s31 = sphi [#allocation1], [#allocation1]
          $region27: #{custom-call.61} parent=23 // loop_header_branch
            %28 = sbr.rel (%p26) target = $region31
          $region28: #{custom-call.61} parent=23 // loop_body
            %v32 = vld [vmem:[%s30] sm:%s23]
            %33 = vst [vmem:[%s31] sm:%s23] %v32
          $region29: #{custom-call.61} parent=23 // loop_footer
            %s29 = sadd.s32 1, %s25
          $region30: #{custom-call.61} parent=23 // loop_footer_branch
            %24 = sbr.rel target = $region26
          $region31: #{custom-call.61} parent=23 // loop_exit
            _
        $region24: #{custom-call.61} parent=8 // pred_fallthru
          _
      $region9: #{custom-call.61} parent=4 // pred_fallthru
        _
      // Predicated region
      $region10: #{custom-call.61} parent=4 // pred_check
        _
      $region11: #{custom-call.61} parent=4 // pred_check_branch
        %7 = sbr.rel (0) target = $region13
      $region12: #{custom-call.61} parent=4 // pred_region
        %s9 = ssub.s32 16, 1
        loop: start=0, step=1, limit=1
        $region14: #{custom-call.61} parent=12 // loop_pre_header
          _
        $region15: #{custom-call.61} parent=12 // loop_header
          %s11 = sphi 0, %s15
          %p12 = scmp.ge.s32.totalorder %s11, 1
          %s16 = sphi %s0, %s0
          %s17 = sphi [#allocation1], [#allocation1]
        $region16: #{custom-call.61} parent=12 // loop_header_branch
          %14 = sbr.rel (%p12) target = $region20
        $region17: #{custom-call.61} parent=12 // loop_body
          %v18 = vld [vmem:[%s16] sm:%s9]
          %19 = vst [vmem:[%s17] sm:%s9] %v18
        $region18: #{custom-call.61} parent=12 // loop_footer
          %s15 = sadd.s32 1, %s11
        $region19: #{custom-call.61} parent=12 // loop_footer_branch
          %10 = sbr.rel target = $region15
        $region20: #{custom-call.61} parent=12 // loop_exit
          _
      $region13: #{custom-call.61} parent=4 // pred_fallthru
        _
    $region5: #{custom-call.61} parent=1 // pred_fallthru
      _
    %34 = vnop
    %s36 = ssub.s32 16, 1
    %v37 = vld [vmem:[#allocation1] sm:%s36]
    %38 = vst [vmem:[#allocation0] sm:%s36] %v37
    %39 = vst [vmem:[#allocation2] sm:$0xff] 0.0
    %vm40 = vcmask 7168
    %v41 = vld [vmem:[#allocation2] ss:$0 sm:$0xff]
    %v42 = vld [vmem:[#allocation0] ss:$0 sm:$0xff]
    %v43 = vmul.f32 %v41, %v41
    %44 = vadd.xlane.f32.xlu0 %v43
    %v45 = vpop.xlane.xlu0 %44
    %v46 = vsub.f32 %v42, %v45
    %v47 = vrsqrt.pop %v46
    %v48 = vmul.f32 %v47, %v46
    %v49 = vmul.f32 %v48, %v47
    %v50 = vmul.f32 0.5, %v49
    %v51 = vsub.f32 1.5, %v50
    %v52 = vmul.f32 %v47, %v51
    %vm53 = vweird.f32 %v46
    %vm54 = vweird.f32 %v47
    %vm55 = vmor %vm53, %vm54
    %v56 = vsel %vm55, %v47, %v52
    %v57 = vld [vmem:[#allocation0] sm:$0xff]
    %v58 = vld [vmem:[#allocation2] sm:$0xff]
    %v59 = vmul.f32 %v58, %v41
    %60 = vadd.xlane.f32.xlu0 %v59
    %v61 = vpop.xlane.xlu0 %60
    %v62 = vsub.f32 %v57, %v61
    %v63 = vmul.f32 %v62, %v56
    %v64 = vsel %vm40, %v63, 0.0
    %v65 = vadd.f32 %v58, %v64
    %66 = vst [vmem:[#allocation2] sm:$0xff] %v65
    %vm67 = vcmask 15368
    %s68 = scalar_lea.vmem [#allocation2], 1
    %v69 = vld [vmem:[%s68] ss:$0 sm:$0xff]
    %s70 = scalar_lea.vmem [#allocation0], 1
    %v71 = vld [vmem:[%s70] ss:$0 sm:$0xff]
    %v72 = vmul.f32 %v69, %v69
    %73 = vadd.xlane.f32.xlu0 %v72
    %v74 = vpop.xlane.xlu0 %73
    %v75 = vsub.f32 %v71, %v74
    %v76 = vrsqrt.pop %v75
    %v77 = vmul.f32 %v76, %v75
    %v78 = vmul.f32 %v77, %v76
    %v79 = vmul.f32 0.5, %v78
    %v80 = vsub.f32 1.5, %v79
    %v81 = vmul.f32 %v76, %v80
    %vm82 = vweird.f32 %v75
    %vm83 = vweird.f32 %v76
    %vm84 = vmor %vm82, %vm83
    %v85 = vsel %vm84, %v76, %v81
    %v86 = vld [vmem:[#allocation0] sm:$0xff]
    %v87 = vld [vmem:[#allocation2] sm:$0xff]
    %v88 = vmul.f32 %v87, %v69
    %89 = vadd.xlane.f32.xlu0 %v88
    %v90 = vpop.xlane.xlu0 %89
    %v91 = vsub.f32 %v86, %v90
    %v92 = vmul.f32 %v91, %v85
    %vm93 = vcmask 1047553
    %vm94 = vmand %vm67, %vm93
    %v95 = vsel %vm94, %v92, 0.0
    %v96 = vadd.f32 %v87, %v95
    %97 = vst [vmem:[#allocation2] sm:$0xff] %v96
    %vm98 = vcmask 23568
    %s99 = scalar_lea.vmem [#allocation2], 2
    %v100 = vld [vmem:[%s99] ss:$0 sm:$0xff]
    %s101 = scalar_lea.vmem [#allocation0], 2
    %v102 = vld [vmem:[%s101] ss:$0 sm:$0xff]
    %v103 = vmul.f32 %v100, %v100
    %104 = vadd.xlane.f32.xlu0 %v103
    %v105 = vpop.xlane.xlu0 %104
    %v106 = vsub.f32 %v102, %v105
    %v107 = vrsqrt.pop %v106
    %v108 = vmul.f32 %v107, %v106
    %v109 = vmul.f32 %v108, %v107
    %v110 = vmul.f32 0.5, %v109
    %v111 = vsub.f32 1.5, %v110
    %v112 = vmul.f32 %v107, %v111
    %vm113 = vweird.f32 %v106
    %vm114 = vweird.f32 %v107
    %vm115 = vmor %vm113, %vm114
    %v116 = vsel %vm115, %v107, %v112
    %v117 = vld [vmem:[#allocation0] sm:$0xff]
    %v118 = vld [vmem:[#allocation2] sm:$0xff]
    %v119 = vmul.f32 %v118, %v100
    %120 = vadd.xlane.f32.xlu0 %v119
    %v121 = vpop.xlane.xlu0 %120
    %v122 = vsub.f32 %v117, %v121
    %v123 = vmul.f32 %v122, %v116
    %vm124 = vcmask 1047554
    %vm125 = vmand %vm98, %vm124
    %v126 = vsel %vm125, %v123, 0.0
    %v127 = vadd.f32 %v118, %v126
    %128 = vst [vmem:[#allocation2] sm:$0xff] %v127
    %s130 = ssub.s32 16, 1
    %v131 = vld [vmem:[#allocation2] sm:%s130]
    %s133 = ssub.s32 16, 1
    %134 = vst [vmem:[#allocation3] sm:%s133] %v131
    // Predicated region
    $region32: #{custom-call.61} parent=1 // pred_check
      _
    $region33: #{custom-call.61} parent=1 // pred_check_branch
      %136 = sbr.rel (0) target = $region35
    $region34: #{custom-call.61} parent=1 // pred_region
      // Predicated region
      $region36: #{custom-call.61} parent=34 // pred_check
        _
      $region37: #{custom-call.61} parent=34 // pred_check_branch
        %138 = sbr.rel target = $region39
      $region38: #{custom-call.61} parent=34 // pred_region
        // Predicated region
        $region51: #{custom-call.61} parent=38 // pred_check
          _
        $region52: #{custom-call.61} parent=38 // pred_check_branch
          %154 = sbr.rel (0) target = $region54
        $region53: #{custom-call.61} parent=38 // pred_region
          %s156 = ssub.s32 16, 1
          loop: start=0, step=1, limit=1
          $region55: #{custom-call.61} parent=53 // loop_pre_header
            _
          $region56: #{custom-call.61} parent=53 // loop_header
            %s158 = sphi 0, %s162
            %p159 = scmp.ge.s32.totalorder %s158, 1
            %s163 = sphi [#allocation3], [#allocation3]
            %s164 = sphi %s1, %s1
          $region57: #{custom-call.61} parent=53 // loop_header_branch
            %161 = sbr.rel (%p159) target = $region61
          $region58: #{custom-call.61} parent=53 // loop_body
            %v165 = vld [vmem:[%s163] sm:%s156]
            %166 = vst [vmem:[%s164] sm:%s156] %v165
          $region59: #{custom-call.61} parent=53 // loop_footer
            %s162 = sadd.s32 1, %s158
          $region60: #{custom-call.61} parent=53 // loop_footer_branch
            %157 = sbr.rel target = $region56
          $region61: #{custom-call.61} parent=53 // loop_exit
            _
        $region54: #{custom-call.61} parent=38 // pred_fallthru
          _
      $region39: #{custom-call.61} parent=34 // pred_fallthru
        _
      // Predicated region
      $region40: #{custom-call.61} parent=34 // pred_check
        _
      $region41: #{custom-call.61} parent=34 // pred_check_branch
        %140 = sbr.rel (0) target = $region43
      $region42: #{custom-call.61} parent=34 // pred_region
        %s142 = ssub.s32 16, 1
        loop: start=0, step=1, limit=1
        $region44: #{custom-call.61} parent=42 // loop_pre_header
          _
        $region45: #{custom-call.61} parent=42 // loop_header
          %s144 = sphi 0, %s148
          %p145 = scmp.ge.s32.totalorder %s144, 1
          %s149 = sphi [#allocation3], [#allocation3]
          %s150 = sphi %s1, %s1
        $region46: #{custom-call.61} parent=42 // loop_header_branch
          %147 = sbr.rel (%p145) target = $region50
        $region47: #{custom-call.61} parent=42 // loop_body
          %v151 = vld [vmem:[%s149] sm:%s142]
          %152 = vst [vmem:[%s150] sm:%s142] %v151
        $region48: #{custom-call.61} parent=42 // loop_footer
          %s148 = sadd.s32 1, %s144
        $region49: #{custom-call.61} parent=42 // loop_footer_branch
          %143 = sbr.rel target = $region45
        $region50: #{custom-call.61} parent=42 // loop_exit
          _
      $region43: #{custom-call.61} parent=34 // pred_fallthru
        _
    $region35: #{custom-call.61} parent=1 // pred_fallthru
      _
    %167 = vnop

// kernel: custom-call.62
$region0: #{custom-call.62}
  %s0 = inlined_call_operand.vmem [shape: f32[1,1,3,3], index: 0, kind: input, shape index: {}]
  %s1 = inlined_call_operand.vmem [shape: f32[1,1,3,3], index: 1, kind: output, shape index: {}]
  $region1: #{custom-call.62} parent=0
    #allocation0 [shape = 'u8[4096]{0}', space=vmem, size = 0x1000, scoped, tag = 'operand span for operand 0']
    #allocation1 [shape = 'u8[2048]{0}', space=vmem, size = 0x800, scoped, tag = 'packed  for operand 0']
    #allocation2 [shape = 'u8[4096]{0}', space=vmem, size = 0x1000, scoped, tag = 'operand span for operand 1']
    #allocation3 [shape = 'u8[2048]{0}', space=vmem, size = 0x800, scoped, tag = 'packed  for operand 1']
    #allocation4 [shape = 'f32[3,3]{1,0}', space=vmem, size = 0x1000, scoped, tag = 'rescaled input a']
    // Predicated region
    $region2: #{custom-call.62} parent=1 // pred_check
      _
    $region3: #{custom-call.62} parent=1 // pred_check_branch
      %3 = sbr.rel (0) target = $region5
    $region4: #{custom-call.62} parent=1 // pred_region
      // Predicated region
      $region6: #{custom-call.62} parent=4 // pred_check
        _
      $region7: #{custom-call.62} parent=4 // pred_check_branch
        %5 = sbr.rel target = $region9
      $region8: #{custom-call.62} parent=4 // pred_region
        // Predicated region
        $region21: #{custom-call.62} parent=8 // pred_check
          _
        $region22: #{custom-call.62} parent=8 // pred_check_branch
          %21 = sbr.rel (0) target = $region24
        $region23: #{custom-call.62} parent=8 // pred_region
          %s23 = ssub.s32 16, 1
          loop: start=0, step=1, limit=1
          $region25: #{custom-call.62} parent=23 // loop_pre_header
            _
          $region26: #{custom-call.62} parent=23 // loop_header
            %s25 = sphi 0, %s29
            %p26 = scmp.ge.s32.totalorder %s25, 1
            %s30 = sphi %s0, %s0
            %s31 = sphi [#allocation1], [#allocation1]
          $region27: #{custom-call.62} parent=23 // loop_header_branch
            %28 = sbr.rel (%p26) target = $region31
          $region28: #{custom-call.62} parent=23 // loop_body
            %v32 = vld [vmem:[%s30] sm:%s23]
            %33 = vst [vmem:[%s31] sm:%s23] %v32
          $region29: #{custom-call.62} parent=23 // loop_footer
            %s29 = sadd.s32 1, %s25
          $region30: #{custom-call.62} parent=23 // loop_footer_branch
            %24 = sbr.rel target = $region26
          $region31: #{custom-call.62} parent=23 // loop_exit
            _
        $region24: #{custom-call.62} parent=8 // pred_fallthru
          _
      $region9: #{custom-call.62} parent=4 // pred_fallthru
        _
      // Predicated region
      $region10: #{custom-call.62} parent=4 // pred_check
        _
      $region11: #{custom-call.62} parent=4 // pred_check_branch
        %7 = sbr.rel (0) target = $region13
      $region12: #{custom-call.62} parent=4 // pred_region
        %s9 = ssub.s32 16, 1
        loop: start=0, step=1, limit=1
        $region14: #{custom-call.62} parent=12 // loop_pre_header
          _
        $region15: #{custom-call.62} parent=12 // loop_header
          %s11 = sphi 0, %s15
          %p12 = scmp.ge.s32.totalorder %s11, 1
          %s16 = sphi %s0, %s0
          %s17 = sphi [#allocation1], [#allocation1]
        $region16: #{custom-call.62} parent=12 // loop_header_branch
          %14 = sbr.rel (%p12) target = $region20
        $region17: #{custom-call.62} parent=12 // loop_body
          %v18 = vld [vmem:[%s16] sm:%s9]
          %19 = vst [vmem:[%s17] sm:%s9] %v18
        $region18: #{custom-call.62} parent=12 // loop_footer
          %s15 = sadd.s32 1, %s11
        $region19: #{custom-call.62} parent=12 // loop_footer_branch
          %10 = sbr.rel target = $region15
        $region20: #{custom-call.62} parent=12 // loop_exit
          _
      $region13: #{custom-call.62} parent=4 // pred_fallthru
        _
    $region5: #{custom-call.62} parent=1 // pred_fallthru
      _
    %34 = vnop
    %s36 = ssub.s32 16, 1
    %v37 = vld [vmem:[#allocation1] sm:%s36]
    %38 = vst [vmem:[#allocation0] sm:%s36] %v37
    %v39 = vlaneseq
    %v40 = vand.u32 %v39, 127
    %vm41 = vcmp.lt.s32.totalorder %v40, 3
    %v42 = vlaneseq
    %v43 = vshrl.u32 %v42, 7
    %vm45 = vcmp.eq.s32.totalorder %v43, %v40
    %v46 = vld [vmem:[#allocation0] sm:$0xff]
    %v47 = vsel %vm45, %v46, 0.0
    %48 = vadd.xlane.f32.xlu0 %v47
    %v49 = vpop.xlane.xlu0 %48
    %vm50 = vcmp.ge.s32.totalorder %v43, %v40
    %vm51 = vmand %vm50, %vm41
    %v52 = vsel %vm51, %v46, 0.0
    %v53 = vrcp.pop %v49
    %v54 = vmul.f32 %v49, %v53
    %v55 = vsub.f32 1.0, %v54
    %v56 = vmul.f32 %v53, %v55
    %v57 = vadd.f32 %v53, %v56
    %vm58 = vweird.f32 %v49
    %vm59 = vweird.f32 %v53
    %vm60 = vmor %vm58, %vm59
    %v61 = vsel %vm60, %v53, %v57
    %v62 = vand.u32 2147483647, %v49
    %vm63 = vcmp.eq.f32.partialorder %v62, 8.507059e+37
    %v64 = vand.u32 %v49, 2147483648
    %v65 = vor.u32 1.1754944e-38, %v64
    %v66 = vsel %vm63, %v65, %v61
    %v67 = vmul.f32 %v52, %v66
    %68 = vst [vmem:[#allocation4] sm:$0xff] %v67
    %v69 = vlaneseq
    %v70 = vand.u32 %v69, 127
    %v71 = vlaneseq
    %v72 = vshrl.u32 %v71, 7
    %vm74 = vcmp.eq.s32.totalorder %v70, %v72
    %v75 = vlaneseq
    %v76 = vand.u32 %v75, 127
    %vm77 = vcmp.eq.s32.totalorder %v76, 0
    %v78 = vsel %vm77, 1.0, -1.0
    %v79 = vsel %vm74, %v78, 0.0
    %s80 = scalar_lea.vmem [#allocation4], 1
    %v81 = vld [vmem:[%s80] ss:$0 sm:$0xff]
    %v82 = vxor.u32 %v81, 2147483648
    %v83 = vlaneseq
    %v84 = vand.u32 %v83, 127
    %vm85 = vcmp.eq.s32.totalorder %v84, 1
    %v86 = vmul.f32 %v82, %v79
    %87 = vadd.xlane.f32.xlu0 %v86
    %v88 = vpop.xlane.xlu0 %87
    %v89 = vsel %vm85, %v88, %v79
    %s90 = scalar_lea.vmem [#allocation4], 2
    %v91 = vld [vmem:[%s90] ss:$0 sm:$0xff]
    %v92 = vxor.u32 %v91, 2147483648
    %v93 = vlaneseq
    %v94 = vand.u32 %v93, 127
    %vm95 = vcmp.eq.s32.totalorder %v94, 2
    %v96 = vmul.f32 %v92, %v89
    %97 = vadd.xlane.f32.xlu0 %v96
    %v98 = vpop.xlane.xlu0 %97
    %v99 = vsel %vm95, %v98, %v89
    %v100 = vrcp.pop %v49
    %v101 = vmul.f32 %v49, %v100
    %v102 = vsub.f32 1.0, %v101
    %v103 = vmul.f32 %v100, %v102
    %v104 = vadd.f32 %v100, %v103
    %vm105 = vweird.f32 %v49
    %vm106 = vweird.f32 %v100
    %vm107 = vmor %vm105, %vm106
    %v108 = vsel %vm107, %v100, %v104
    %v109 = vand.u32 2147483647, %v49
    %vm110 = vcmp.eq.f32.partialorder %v109, 8.507059e+37
    %v111 = vand.u32 %v49, 2147483648
    %v112 = vor.u32 1.1754944e-38, %v111
    %v113 = vsel %vm110, %v112, %v108
    %v114 = vmul.f32 %v99, %v113
    %vm115 = vweird.f32 %v49
    %v116 = vsel %vm115, %v99, %v114
    %117 = vst [vmem:[#allocation2] sm:$0xff] %v116
    %s119 = ssub.s32 16, 1
    %v120 = vld [vmem:[#allocation2] sm:%s119]
    %s122 = ssub.s32 16, 1
    %123 = vst [vmem:[#allocation3] sm:%s122] %v120
    // Predicated region
    $region32: #{custom-call.62} parent=1 // pred_check
      _
    $region33: #{custom-call.62} parent=1 // pred_check_branch
      %125 = sbr.rel (0) target = $region35
    $region34: #{custom-call.62} parent=1 // pred_region
      // Predicated region
      $region36: #{custom-call.62} parent=34 // pred_check
        _
      $region37: #{custom-call.62} parent=34 // pred_check_branch
        %127 = sbr.rel target = $region39
      $region38: #{custom-call.62} parent=34 // pred_region
        // Predicated region
        $region51: #{custom-call.62} parent=38 // pred_check
          _
        $region52: #{custom-call.62} parent=38 // pred_check_branch
          %143 = sbr.rel (0) target = $region54
        $region53: #{custom-call.62} parent=38 // pred_region
          %s145 = ssub.s32 16, 1
          loop: start=0, step=1, limit=1
          $region55: #{custom-call.62} parent=53 // loop_pre_header
            _
          $region56: #{custom-call.62} parent=53 // loop_header
            %s147 = sphi 0, %s151
            %p148 = scmp.ge.s32.totalorder %s147, 1
            %s152 = sphi [#allocation3], [#allocation3]
            %s153 = sphi %s1, %s1
          $region57: #{custom-call.62} parent=53 // loop_header_branch
            %150 = sbr.rel (%p148) target = $region61
          $region58: #{custom-call.62} parent=53 // loop_body
            %v154 = vld [vmem:[%s152] sm:%s145]
            %155 = vst [vmem:[%s153] sm:%s145] %v154
          $region59: #{custom-call.62} parent=53 // loop_footer
            %s151 = sadd.s32 1, %s147
          $region60: #{custom-call.62} parent=53 // loop_footer_branch
            %146 = sbr.rel target = $region56
          $region61: #{custom-call.62} parent=53 // loop_exit
            _
        $region54: #{custom-call.62} parent=38 // pred_fallthru
          _
      $region39: #{custom-call.62} parent=34 // pred_fallthru
        _
      // Predicated region
      $region40: #{custom-call.62} parent=34 // pred_check
        _
      $region41: #{custom-call.62} parent=34 // pred_check_branch
        %129 = sbr.rel (0) target = $region43
      $region42: #{custom-call.62} parent=34 // pred_region
        %s131 = ssub.s32 16, 1
        loop: start=0, step=1, limit=1
        $region44: #{custom-call.62} parent=42 // loop_pre_header
          _
        $region45: #{custom-call.62} parent=42 // loop_header
          %s133 = sphi 0, %s137
          %p134 = scmp.ge.s32.totalorder %s133, 1
          %s138 = sphi [#allocation3], [#allocation3]
          %s139 = sphi %s1, %s1
        $region46: #{custom-call.62} parent=42 // loop_header_branch
          %136 = sbr.rel (%p134) target = $region50
        $region47: #{custom-call.62} parent=42 // loop_body
          %v140 = vld [vmem:[%s138] sm:%s131]
          %141 = vst [vmem:[%s139] sm:%s131] %v140
        $region48: #{custom-call.62} parent=42 // loop_footer
          %s137 = sadd.s32 1, %s133
        $region49: #{custom-call.62} parent=42 // loop_footer_branch
          %132 = sbr.rel target = $region45
        $region50: #{custom-call.62} parent=42 // loop_exit
          _
      $region43: #{custom-call.62} parent=34 // pred_fallthru
        _
    $region35: #{custom-call.62} parent=1 // pred_fallthru
      _
    %156 = vnop

// kernel: reverse
$region0: #{reverse}
  %s0 = inlined_call_operand.vmem [shape: f32[1,3], index: 0, kind: input, shape index: {}]
  %s1 = inlined_call_operand.vmem [shape: f32[1,3], index: 1, kind: output, shape index: {}]
  %v2 = vlaneseq
  %v3 = vsub.s32 2, %v2
  %4 = vset.pattern.permute.xlu0 %v3
  $region1: #{reverse} parent=0
    #allocation0 [shape = 'u8[4096]{0}', space=vmem, size = 0x1000, scoped, tag = 'operand span for operand 0']
    #allocation1 [shape = 'u8[512]{0}', space=vmem, size = 0x400, scoped, tag = 'packed  for operand 0']
    #allocation2 [shape = 'u8[4096]{0}', space=vmem, size = 0x1000, scoped, tag = 'operand span for operand 1']
    #allocation3 [shape = 'u8[512]{0}', space=vmem, size = 0x400, scoped, tag = 'packed  for operand 1']
    // Predicated region
    $region2: #{reverse} parent=1 // pred_check
      _
    $region3: #{reverse} parent=1 // pred_check_branch
      %6 = sbr.rel (0) target = $region5
    $region4: #{reverse} parent=1 // pred_region
      // Predicated region
      $region6: #{reverse} parent=4 // pred_check
        _
      $region7: #{reverse} parent=4 // pred_check_branch
        %8 = sbr.rel target = $region9
      $region8: #{reverse} parent=4 // pred_region
        // Predicated region
        $region21: #{reverse} parent=8 // pred_check
          _
        $region22: #{reverse} parent=8 // pred_check_branch
          %24 = sbr.rel (0) target = $region24
        $region23: #{reverse} parent=8 // pred_region
          %s26 = ssub.s32 2, 1
          loop: start=0, step=1, limit=1
          $region25: #{reverse} parent=23 // loop_pre_header
            _
          $region26: #{reverse} parent=23 // loop_header
            %s28 = sphi 0, %s32
            %p29 = scmp.ge.s32.totalorder %s28, 1
            %s33 = sphi %s0, %s0
            %s34 = sphi [#allocation1], [#allocation1]
          $region27: #{reverse} parent=23 // loop_header_branch
            %31 = sbr.rel (%p29) target = $region31
          $region28: #{reverse} parent=23 // loop_body
            %v35 = vld [vmem:[%s33] sm:%s26]
            %36 = vst [vmem:[%s34] sm:%s26] %v35
          $region29: #{reverse} parent=23 // loop_footer
            %s32 = sadd.s32 1, %s28
          $region30: #{reverse} parent=23 // loop_footer_branch
            %27 = sbr.rel target = $region26
          $region31: #{reverse} parent=23 // loop_exit
            _
        $region24: #{reverse} parent=8 // pred_fallthru
          _
      $region9: #{reverse} parent=4 // pred_fallthru
        _
      // Predicated region
      $region10: #{reverse} parent=4 // pred_check
        _
      $region11: #{reverse} parent=4 // pred_check_branch
        %10 = sbr.rel (0) target = $region13
      $region12: #{reverse} parent=4 // pred_region
        %s12 = ssub.s32 2, 1
        loop: start=0, step=1, limit=1
        $region14: #{reverse} parent=12 // loop_pre_header
          _
        $region15: #{reverse} parent=12 // loop_header
          %s14 = sphi 0, %s18
          %p15 = scmp.ge.s32.totalorder %s14, 1
          %s19 = sphi %s0, %s0
          %s20 = sphi [#allocation1], [#allocation1]
        $region16: #{reverse} parent=12 // loop_header_branch
          %17 = sbr.rel (%p15) target = $region20
        $region17: #{reverse} parent=12 // loop_body
          %v21 = vld [vmem:[%s19] sm:%s12]
          %22 = vst [vmem:[%s20] sm:%s12] %v21
        $region18: #{reverse} parent=12 // loop_footer
          %s18 = sadd.s32 1, %s14
        $region19: #{reverse} parent=12 // loop_footer_branch
          %13 = sbr.rel target = $region15
        $region20: #{reverse} parent=12 // loop_exit
          _
      $region13: #{reverse} parent=4 // pred_fallthru
        _
    $region5: #{reverse} parent=1 // pred_fallthru
      _
    %37 = vnop
    %s39 = ssub.s32 2, 1
    %v40 = vld [vmem:[#allocation1] sm:%s39]
    %41 = vst [vmem:[#allocation0] sm:%s39] %v40
    %v42 = vld [vmem:[#allocation0] sm:$0xff]
    %43 = vperm.xlu0 %4, %v42
    %v44 = vpop.permute.xlu0 %43
    %45 = vst [vmem:[#allocation2] sm:$0xff] %v44
    %s47 = ssub.s32 2, 1
    %v48 = vld [vmem:[#allocation2] sm:%s47]
    %s50 = ssub.s32 2, 1
    %51 = vst [vmem:[#allocation3] sm:%s50] %v48
    // Predicated region
    $region32: #{reverse} parent=1 // pred_check
      _
    $region33: #{reverse} parent=1 // pred_check_branch
      %53 = sbr.rel (0) target = $region35
    $region34: #{reverse} parent=1 // pred_region
      // Predicated region
      $region36: #{reverse} parent=34 // pred_check
        _
      $region37: #{reverse} parent=34 // pred_check_branch
        %55 = sbr.rel target = $region39
      $region38: #{reverse} parent=34 // pred_region
        // Predicated region
        $region51: #{reverse} parent=38 // pred_check
          _
        $region52: #{reverse} parent=38 // pred_check_branch
          %71 = sbr.rel (0) target = $region54
        $region53: #{reverse} parent=38 // pred_region
          %s73 = ssub.s32 2, 1
          loop: start=0, step=1, limit=1
          $region55: #{reverse} parent=53 // loop_pre_header
            _
          $region56: #{reverse} parent=53 // loop_header
            %s75 = sphi 0, %s79
            %p76 = scmp.ge.s32.totalorder %s75, 1
            %s80 = sphi [#allocation3], [#allocation3]
            %s81 = sphi %s1, %s1
          $region57: #{reverse} parent=53 // loop_header_branch
            %78 = sbr.rel (%p76) target = $region61
          $region58: #{reverse} parent=53 // loop_body
            %v82 = vld [vmem:[%s80] sm:%s73]
            %83 = vst [vmem:[%s81] sm:%s73] %v82
          $region59: #{reverse} parent=53 // loop_footer
            %s79 = sadd.s32 1, %s75
          $region60: #{reverse} parent=53 // loop_footer_branch
            %74 = sbr.rel target = $region56
          $region61: #{reverse} parent=53 // loop_exit
            _
        $region54: #{reverse} parent=38 // pred_fallthru
          _
      $region39: #{reverse} parent=34 // pred_fallthru
        _
      // Predicated region
      $region40: #{reverse} parent=34 // pred_check
        _
      $region41: #{reverse} parent=34 // pred_check_branch
        %57 = sbr.rel (0) target = $region43
      $region42: #{reverse} parent=34 // pred_region
        %s59 = ssub.s32 2, 1
        loop: start=0, step=1, limit=1
        $region44: #{reverse} parent=42 // loop_pre_header
          _
        $region45: #{reverse} parent=42 // loop_header
          %s61 = sphi 0, %s65
          %p62 = scmp.ge.s32.totalorder %s61, 1
          %s66 = sphi [#allocation3], [#allocation3]
          %s67 = sphi %s1, %s1
        $region46: #{reverse} parent=42 // loop_header_branch
          %64 = sbr.rel (%p62) target = $region50
        $region47: #{reverse} parent=42 // loop_body
          %v68 = vld [vmem:[%s66] sm:%s59]
          %69 = vst [vmem:[%s67] sm:%s59] %v68
        $region48: #{reverse} parent=42 // loop_footer
          %s65 = sadd.s32 1, %s61
        $region49: #{reverse} parent=42 // loop_footer_branch
          %60 = sbr.rel target = $region45
        $region50: #{reverse} parent=42 // loop_exit
          _
      $region43: #{reverse} parent=34 // pred_fallthru
        _
    $region35: #{reverse} parent=1 // pred_fallthru
      _
    %84 = vnop

// kernel: custom-call.22
$region0: #{custom-call.22}
  %s0 = inlined_call_operand.vmem [shape: f32[1,2,2], index: 0, kind: input, shape index: {}]
  %s1 = inlined_call_operand.vmem [shape: f32[1,2,2], index: 1, kind: input, shape index: {}]
  %s2 = inlined_call_operand.vmem [shape: f32[1,2,2], index: 2, kind: input, shape index: {}]
  %s3 = inlined_call_operand.vmem [shape: f32[1,2,2], index: 3, kind: input, shape index: {}]
  %s4 = inlined_call_operand.vmem [shape: f32[1,2], index: 4, kind: output, shape index: {0}]
  %s5 = inlined_call_operand.vmem [shape: f32[1,2], index: 5, kind: output, shape index: {1}]
  %s6 = inlined_call_operand.vmem [shape: f32[1,2,2], index: 6, kind: output, shape index: {2}]
  %s7 = inlined_call_operand.vmem [shape: f32[1,2,2], index: 7, kind: output, shape index: {3}]
  %s8 = inlined_call_operand.vmem [shape: f32[1,2,2], index: 8, kind: output, shape index: {4}]
  %s9 = inlined_call_operand.vmem [shape: f32[1,2,2], index: 9, kind: output, shape index: {5}]
  %10 = xla_tuple %s4, %s5, %s6, %s7, %s8, %s9
  $region1: #{custom-call.22} parent=0
    #allocation0 [shape = 'u8[4096]{0}', space=vmem, size = 0x1000, scoped, tag = 'operand span for operand 0']
    #allocation1 [shape = 'u8[1024]{0}', space=vmem, size = 0x400, scoped, tag = 'packed  for operand 0']
    #allocation2 [shape = 'u8[4096]{0}', space=vmem, size = 0x1000, scoped, tag = 'operand span for operand 1']
    #allocation3 [shape = 'u8[1024]{0}', space=vmem, size = 0x400, scoped, tag = 'packed  for operand 1']
    #allocation4 [shape = 'u8[4096]{0}', space=vmem, size = 0x1000, scoped, tag = 'operand span for operand 2']
    #allocation5 [shape = 'u8[1024]{0}', space=vmem, size = 0x400, scoped, tag = 'packed  for operand 2']
    #allocation6 [shape = 'u8[4096]{0}', space=vmem, size = 0x1000, scoped, tag = 'operand span for operand 3']
    #allocation7 [shape = 'u8[1024]{0}', space=vmem, size = 0x400, scoped, tag = 'packed  for operand 3']
    #allocation8 [shape = 'u8[4096]{0}', space=vmem, size = 0x1000, scoped, tag = 'operand span for operand 4']
    #allocation9 [shape = 'u8[512]{0}', space=vmem, size = 0x400, scoped, tag = 'packed  for operand 4']
    #allocation10 [shape = 'u8[4096]{0}', space=vmem, size = 0x1000, scoped, tag = 'operand span for operand 5']
    #allocation11 [shape = 'u8[512]{0}', space=vmem, size = 0x400, scoped, tag = 'packed  for operand 5']
    #allocation12 [shape = 'u8[4096]{0}', space=vmem, size = 0x1000, scoped, tag = 'operand span for operand 6']
    #allocation13 [shape = 'u8[1024]{0}', space=vmem, size = 0x400, scoped, tag = 'packed  for operand 6']
    #allocation14 [shape = 'u8[4096]{0}', space=vmem, size = 0x1000, scoped, tag = 'operand span for operand 7']
    #allocation15 [shape = 'u8[1024]{0}', space=vmem, size = 0x400, scoped, tag = 'packed  for operand 7']
    #allocation16 [shape = 'u8[4096]{0}', space=vmem, size = 0x1000, scoped, tag = 'operand span for operand 8']
    #allocation17 [shape = 'u8[1024]{0}', space=vmem, size = 0x400, scoped, tag = 'packed  for operand 8']
    #allocation18 [shape = 'u8[4096]{0}', space=vmem, size = 0x1000, scoped, tag = 'operand span for operand 9']
    #allocation19 [shape = 'u8[1024]{0}', space=vmem, size = 0x400, scoped, tag = 'packed  for operand 9']
    #allocation20 [shape = 'f32[2,2]{1,0}', space=vmem, size = 0x1000, scoped, tag = 'a top-left matrix']
    #allocation21 [shape = 'f32[2,2]{1,0}', space=vmem, size = 0x1000, scoped, tag = 'a top-right matrix']
    #allocation22 [shape = 'f32[2,2]{1,0}', space=vmem, size = 0x1000, scoped, tag = 'a bottom-left matrix']
    #allocation23 [shape = 'f32[2,2]{1,0}', space=vmem, size = 0x1000, scoped, tag = 'a bottom-right matrix']
    // Predicated region
    $region2: #{custom-call.22} parent=1 // pred_check
      _
    $region3: #{custom-call.22} parent=1 // pred_check_branch
      %12 = sbr.rel (0) target = $region5
    $region4: #{custom-call.22} parent=1 // pred_region
      // Predicated region
      $region6: #{custom-call.22} parent=4 // pred_check
        _
      $region7: #{custom-call.22} parent=4 // pred_check_branch
        %14 = sbr.rel target = $region9
      $region8: #{custom-call.22} parent=4 // pred_region
        // Predicated region
        $region21: #{custom-call.22} parent=8 // pred_check
          _
        $region22: #{custom-call.22} parent=8 // pred_check_branch
          %30 = sbr.rel (0) target = $region24
        $region23: #{custom-call.22} parent=8 // pred_region
          %s32 = ssub.s32 4, 1
          loop: start=0, step=1, limit=1
          $region25: #{custom-call.22} parent=23 // loop_pre_header
            _
          $region26: #{custom-call.22} parent=23 // loop_header
            %s34 = sphi 0, %s38
            %p35 = scmp.ge.s32.totalorder %s34, 1
            %s39 = sphi %s0, %s0
            %s40 = sphi [#allocation1], [#allocation1]
          $region27: #{custom-call.22} parent=23 // loop_header_branch
            %37 = sbr.rel (%p35) target = $region31
          $region28: #{custom-call.22} parent=23 // loop_body
            %v41 = vld [vmem:[%s39] sm:%s32]
            %42 = vst [vmem:[%s40] sm:%s32] %v41
          $region29: #{custom-call.22} parent=23 // loop_footer
            %s38 = sadd.s32 1, %s34
          $region30: #{custom-call.22} parent=23 // loop_footer_branch
            %33 = sbr.rel target = $region26
          $region31: #{custom-call.22} parent=23 // loop_exit
            _
        $region24: #{custom-call.22} parent=8 // pred_fallthru
          _
      $region9: #{custom-call.22} parent=4 // pred_fallthru
        _
      // Predicated region
      $region10: #{custom-call.22} parent=4 // pred_check
        _
      $region11: #{custom-call.22} parent=4 // pred_check_branch
        %16 = sbr.rel (0) target = $region13
      $region12: #{custom-call.22} parent=4 // pred_region
        %s18 = ssub.s32 4, 1
        loop: start=0, step=1, limit=1
        $region14: #{custom-call.22} parent=12 // loop_pre_header
          _
        $region15: #{custom-call.22} parent=12 // loop_header
          %s20 = sphi 0, %s24
          %p21 = scmp.ge.s32.totalorder %s20, 1
          %s25 = sphi %s0, %s0
          %s26 = sphi [#allocation1], [#allocation1]
        $region16: #{custom-call.22} parent=12 // loop_header_branch
          %23 = sbr.rel (%p21) target = $region20
        $region17: #{custom-call.22} parent=12 // loop_body
          %v27 = vld [vmem:[%s25] sm:%s18]
          %28 = vst [vmem:[%s26] sm:%s18] %v27
        $region18: #{custom-call.22} parent=12 // loop_footer
          %s24 = sadd.s32 1, %s20
        $region19: #{custom-call.22} parent=12 // loop_footer_branch
          %19 = sbr.rel target = $region15
        $region20: #{custom-call.22} parent=12 // loop_exit
          _
      $region13: #{custom-call.22} parent=4 // pred_fallthru
        _
    $region5: #{custom-call.22} parent=1 // pred_fallthru
      _
    %43 = vnop
    // Predicated region
    $region32: #{custom-call.22} parent=1 // pred_check
      _
    $region33: #{custom-call.22} parent=1 // pred_check_branch
      %45 = sbr.rel (0) target = $region35
    $region34: #{custom-call.22} parent=1 // pred_region
      // Predicated region
      $region36: #{custom-call.22} parent=34 // pred_check
        _
      $region37: #{custom-call.22} parent=34 // pred_check_branch
        %47 = sbr.rel target = $region39
      $region38: #{custom-call.22} parent=34 // pred_region
        // Predicated region
        $region51: #{custom-call.22} parent=38 // pred_check
          _
        $region52: #{custom-call.22} parent=38 // pred_check_branch
          %63 = sbr.rel (0) target = $region54
        $region53: #{custom-call.22} parent=38 // pred_region
          %s65 = ssub.s32 4, 1
          loop: start=0, step=1, limit=1
          $region55: #{custom-call.22} parent=53 // loop_pre_header
            _
          $region56: #{custom-call.22} parent=53 // loop_header
            %s67 = sphi 0, %s71
            %p68 = scmp.ge.s32.totalorder %s67, 1
            %s72 = sphi %s1, %s1
            %s73 = sphi [#allocation3], [#allocation3]
          $region57: #{custom-call.22} parent=53 // loop_header_branch
            %70 = sbr.rel (%p68) target = $region61
          $region58: #{custom-call.22} parent=53 // loop_body
            %v74 = vld [vmem:[%s72] sm:%s65]
            %75 = vst [vmem:[%s73] sm:%s65] %v74
          $region59: #{custom-call.22} parent=53 // loop_footer
            %s71 = sadd.s32 1, %s67
          $region60: #{custom-call.22} parent=53 // loop_footer_branch
            %66 = sbr.rel target = $region56
          $region61: #{custom-call.22} parent=53 // loop_exit
            _
        $region54: #{custom-call.22} parent=38 // pred_fallthru
          _
      $region39: #{custom-call.22} parent=34 // pred_fallthru
        _
      // Predicated region
      $region40: #{custom-call.22} parent=34 // pred_check
        _
      $region41: #{custom-call.22} parent=34 // pred_check_branch
        %49 = sbr.rel (0) target = $region43
      $region42: #{custom-call.22} parent=34 // pred_region
        %s51 = ssub.s32 4, 1
        loop: start=0, step=1, limit=1
        $region44: #{custom-call.22} parent=42 // loop_pre_header
          _
        $region45: #{custom-call.22} parent=42 // loop_header
          %s53 = sphi 0, %s57
          %p54 = scmp.ge.s32.totalorder %s53, 1
          %s58 = sphi %s1, %s1
          %s59 = sphi [#allocation3], [#allocation3]
        $region46: #{custom-call.22} parent=42 // loop_header_branch
          %56 = sbr.rel (%p54) target = $region50
        $region47: #{custom-call.22} parent=42 // loop_body
          %v60 = vld [vmem:[%s58] sm:%s51]
          %61 = vst [vmem:[%s59] sm:%s51] %v60
        $region48: #{custom-call.22} parent=42 // loop_footer
          %s57 = sadd.s32 1, %s53
        $region49: #{custom-call.22} parent=42 // loop_footer_branch
          %52 = sbr.rel target = $region45
        $region50: #{custom-call.22} parent=42 // loop_exit
          _
      $region43: #{custom-call.22} parent=34 // pred_fallthru
        _
    $region35: #{custom-call.22} parent=1 // pred_fallthru
      _
    %76 = vnop
    // Predicated region
    $region62: #{custom-call.22} parent=1 // pred_check
      _
    $region63: #{custom-call.22} parent=1 // pred_check_branch
      %78 = sbr.rel (0) target = $region65
    $region64: #{custom-call.22} parent=1 // pred_region
      // Predicated region
      $region66: #{custom-call.22} parent=64 // pred_check
        _
      $region67: #{custom-call.22} parent=64 // pred_check_branch
        %80 = sbr.rel target = $region69
      $region68: #{custom-call.22} parent=64 // pred_region
        // Predicated region
        $region81: #{custom-call.22} parent=68 // pred_check
          _
        $region82: #{custom-call.22} parent=68 // pred_check_branch
          %96 = sbr.rel (0) target = $region84
        $region83: #{custom-call.22} parent=68 // pred_region
          %s98 = ssub.s32 4, 1
          loop: start=0, step=1, limit=1
          $region85: #{custom-call.22} parent=83 // loop_pre_header
            _
          $region86: #{custom-call.22} parent=83 // loop_header
            %s100 = sphi 0, %s104
            %p101 = scmp.ge.s32.totalorder %s100, 1
            %s105 = sphi %s2, %s2
            %s106 = sphi [#allocation5], [#allocation5]
          $region87: #{custom-call.22} parent=83 // loop_header_branch
            %103 = sbr.rel (%p101) target = $region91
          $region88: #{custom-call.22} parent=83 // loop_body
            %v107 = vld [vmem:[%s105] sm:%s98]
            %108 = vst [vmem:[%s106] sm:%s98] %v107
          $region89: #{custom-call.22} parent=83 // loop_footer
            %s104 = sadd.s32 1, %s100
          $region90: #{custom-call.22} parent=83 // loop_footer_branch
            %99 = sbr.rel target = $region86
          $region91: #{custom-call.22} parent=83 // loop_exit
            _
        $region84: #{custom-call.22} parent=68 // pred_fallthru
          _
      $region69: #{custom-call.22} parent=64 // pred_fallthru
        _
      // Predicated region
      $region70: #{custom-call.22} parent=64 // pred_check
        _
      $region71: #{custom-call.22} parent=64 // pred_check_branch
        %82 = sbr.rel (0) target = $region73
      $region72: #{custom-call.22} parent=64 // pred_region
        %s84 = ssub.s32 4, 1
        loop: start=0, step=1, limit=1
        $region74: #{custom-call.22} parent=72 // loop_pre_header
          _
        $region75: #{custom-call.22} parent=72 // loop_header
          %s86 = sphi 0, %s90
          %p87 = scmp.ge.s32.totalorder %s86, 1
          %s91 = sphi %s2, %s2
          %s92 = sphi [#allocation5], [#allocation5]
        $region76: #{custom-call.22} parent=72 // loop_header_branch
          %89 = sbr.rel (%p87) target = $region80
        $region77: #{custom-call.22} parent=72 // loop_body
          %v93 = vld [vmem:[%s91] sm:%s84]
          %94 = vst [vmem:[%s92] sm:%s84] %v93
        $region78: #{custom-call.22} parent=72 // loop_footer
          %s90 = sadd.s32 1, %s86
        $region79: #{custom-call.22} parent=72 // loop_footer_branch
          %85 = sbr.rel target = $region75
        $region80: #{custom-call.22} parent=72 // loop_exit
          _
      $region73: #{custom-call.22} parent=64 // pred_fallthru
        _
    $region65: #{custom-call.22} parent=1 // pred_fallthru
      _
    %109 = vnop
    // Predicated region
    $region92: #{custom-call.22} parent=1 // pred_check
      _
    $region93: #{custom-call.22} parent=1 // pred_check_branch
      %111 = sbr.rel (0) target = $region95
    $region94: #{custom-call.22} parent=1 // pred_region
      // Predicated region
      $region96: #{custom-call.22} parent=94 // pred_check
        _
      $region97: #{custom-call.22} parent=94 // pred_check_branch
        %113 = sbr.rel target = $region99
      $region98: #{custom-call.22} parent=94 // pred_region
        // Predicated region
        $region111: #{custom-call.22} parent=98 // pred_check
          _
        $region112: #{custom-call.22} parent=98 // pred_check_branch
          %129 = sbr.rel (0) target = $region114
        $region113: #{custom-call.22} parent=98 // pred_region
          %s131 = ssub.s32 4, 1
          loop: start=0, step=1, limit=1
          $region115: #{custom-call.22} parent=113 // loop_pre_header
            _
          $region116: #{custom-call.22} parent=113 // loop_header
            %s133 = sphi 0, %s137
            %p134 = scmp.ge.s32.totalorder %s133, 1
            %s138 = sphi %s3, %s3
            %s139 = sphi [#allocation7], [#allocation7]
          $region117: #{custom-call.22} parent=113 // loop_header_branch
            %136 = sbr.rel (%p134) target = $region121
          $region118: #{custom-call.22} parent=113 // loop_body
            %v140 = vld [vmem:[%s138] sm:%s131]
            %141 = vst [vmem:[%s139] sm:%s131] %v140
          $region119: #{custom-call.22} parent=113 // loop_footer
            %s137 = sadd.s32 1, %s133
          $region120: #{custom-call.22} parent=113 // loop_footer_branch
            %132 = sbr.rel target = $region116
          $region121: #{custom-call.22} parent=113 // loop_exit
            _
        $region114: #{custom-call.22} parent=98 // pred_fallthru
          _
      $region99: #{custom-call.22} parent=94 // pred_fallthru
        _
      // Predicated region
      $region100: #{custom-call.22} parent=94 // pred_check
        _
      $region101: #{custom-call.22} parent=94 // pred_check_branch
        %115 = sbr.rel (0) target = $region103
      $region102: #{custom-call.22} parent=94 // pred_region
        %s117 = ssub.s32 4, 1
        loop: start=0, step=1, limit=1
        $region104: #{custom-call.22} parent=102 // loop_pre_header
          _
        $region105: #{custom-call.22} parent=102 // loop_header
          %s119 = sphi 0, %s123
          %p120 = scmp.ge.s32.totalorder %s119, 1
          %s124 = sphi %s3, %s3
          %s125 = sphi [#allocation7], [#allocation7]
        $region106: #{custom-call.22} parent=102 // loop_header_branch
          %122 = sbr.rel (%p120) target = $region110
        $region107: #{custom-call.22} parent=102 // loop_body
          %v126 = vld [vmem:[%s124] sm:%s117]
          %127 = vst [vmem:[%s125] sm:%s117] %v126
        $region108: #{custom-call.22} parent=102 // loop_footer
          %s123 = sadd.s32 1, %s119
        $region109: #{custom-call.22} parent=102 // loop_footer_branch
          %118 = sbr.rel target = $region105
        $region110: #{custom-call.22} parent=102 // loop_exit
          _
      $region103: #{custom-call.22} parent=94 // pred_fallthru
        _
    $region95: #{custom-call.22} parent=1 // pred_fallthru
      _
    %142 = vnop
    %s144 = ssub.s32 4, 1
    %v145 = vld [vmem:[#allocation1] sm:%s144]
    %146 = vst [vmem:[#allocation0] sm:%s144] %v145
    %s148 = ssub.s32 4, 1
    %v149 = vld [vmem:[#allocation3] sm:%s148]
    %150 = vst [vmem:[#allocation2] sm:%s148] %v149
    %s152 = ssub.s32 4, 1
    %v153 = vld [vmem:[#allocation5] sm:%s152]
    %154 = vst [vmem:[#allocation4] sm:%s152] %v153
    %s156 = ssub.s32 4, 1
    %v157 = vld [vmem:[#allocation7] sm:%s156]
    %158 = vst [vmem:[#allocation6] sm:%s156] %v157
    %s159 = smov [#allocation20]
    %v160 = vld [vmem:[#allocation0] sm:$0xff]
    %161 = vst [vmem:[%s159] sm:$0xff] %v160
    %s162 = smov [#allocation21]
    %v163 = vld [vmem:[#allocation2] sm:$0xff]
    %164 = vst [vmem:[%s162] sm:$0xff] %v163
    %s165 = smov [#allocation22]
    %v166 = vld [vmem:[#allocation4] sm:$0xff]
    %167 = vst [vmem:[%s165] sm:$0xff] %v166
    %s168 = smov [#allocation23]
    %v169 = vld [vmem:[#allocation6] sm:$0xff]
    %170 = vst [vmem:[%s168] sm:$0xff] %v169
    %171 = vst [vmem:[#allocation12] sm:$0xff] 0.0
    %172 = vst [vmem:[#allocation14] sm:$0xff] 0.0
    %173 = vst [vmem:[#allocation16] sm:$0xff] 0.0
    %174 = vst [vmem:[#allocation18] sm:$0xff] 0.0
    %s175 = smov [#allocation12]
    %v176 = vlaneseq
    %v177 = vand.u32 %v176, 127
    %v178 = vmov %v177
    %v179 = vlaneseq
    %v180 = vshrl.u32 %v179, 7
    %v181 = vmov %v180
    %v182 = vld [vmem:[%s175] sm:$0x3]
    %vm185 = vcmp.eq.s32.totalorder %v181, %v178
    %v186 = vsel %vm185, 1.0, %v182
    %187 = vst [vmem:[%s175] sm:$0x3] %v186
    %s188 = smov [#allocation18]
    %v189 = vlaneseq
    %v190 = vand.u32 %v189, 127
    %v191 = vmov %v190
    %v192 = vlaneseq
    %v193 = vshrl.u32 %v192, 7
    %v194 = vmov %v193
    %v195 = vld [vmem:[%s188] sm:$0x3]
    %vm198 = vcmp.eq.s32.totalorder %v194, %v191
    %v199 = vsel %vm198, 1.0, %v195
    %200 = vst [vmem:[%s188] sm:$0x3] %v199
    // While loop
    $region122: #{custom-call.22} parent=1 // loop_pre_header
      _
    $region123: #{custom-call.22} parent=1 // loop_header
      %s202 = sphi 0, %s784
      %v203 = vlaneseq
      %v204 = vand.u32 %v203, 127
      %v205 = vmov %v204
      %v206 = vlaneseq
      %v207 = vshrl.u32 %v206, 7
      %v208 = vmov %v207
      %s209 = smov [#allocation20]
      %v210 = vlaneseq
      %v211 = vand.u32 %v210, 127
      %vm212 = vcmp.ge.s32.totalorder %v211, 0
      %vm213 = vcmp.lt.s32.totalorder %v211, 2
      %vm214 = vmand %vm212, %vm213
      %v215 = vld [vmem:[%s209] sm:$0x3]
      %v216 = vsel %vm214, %v215, 0.0
      %v217 = vmul.f32 %v216, %v216
      %vm220 = vcmp.eq.s32.totalorder %v208, %v205
      %v221 = vsel %vm220, 0.0, %v217
      %v222 = vlaneseq
      %v223 = vand.u32 %v222, 127
      %v224 = vmov %v223
      %v225 = vlaneseq
      %v226 = vshrl.u32 %v225, 7
      %v227 = vmov %v226
      %s228 = smov [#allocation21]
      %v229 = vlaneseq
      %v230 = vand.u32 %v229, 127
      %vm231 = vcmp.ge.s32.totalorder %v230, 0
      %vm232 = vcmp.lt.s32.totalorder %v230, 2
      %vm233 = vmand %vm231, %vm232
      %v234 = vld [vmem:[%s228] sm:$0x3]
      %v235 = vsel %vm233, %v234, 0.0
      %v236 = vmul.f32 %v235, %v235
      %v237 = vadd.f32 %v221, %v236
      %v238 = vadd.f32 %v217, %v236
      %v239 = vlaneseq
      %v240 = vand.u32 %v239, 127
      %v241 = vmov %v240
      %v242 = vlaneseq
      %v243 = vshrl.u32 %v242, 7
      %v244 = vmov %v243
      %s245 = smov [#allocation22]
      %v246 = vlaneseq
      %v247 = vand.u32 %v246, 127
      %vm248 = vcmp.ge.s32.totalorder %v247, 0
      %vm249 = vcmp.lt.s32.totalorder %v247, 2
      %vm250 = vmand %vm248, %vm249
      %v251 = vld [vmem:[%s245] sm:$0x3]
      %v252 = vsel %vm250, %v251, 0.0
      %v253 = vmul.f32 %v252, %v252
      %v254 = vadd.f32 %v237, %v253
      %v255 = vadd.f32 %v238, %v253
      %v256 = vlaneseq
      %v257 = vand.u32 %v256, 127
      %v258 = vmov %v257
      %v259 = vlaneseq
      %v260 = vshrl.u32 %v259, 7
      %v261 = vmov %v260
      %s262 = smov [#allocation23]
      %v263 = vlaneseq
      %v264 = vand.u32 %v263, 127
      %vm265 = vcmp.ge.s32.totalorder %v264, 0
      %vm266 = vcmp.lt.s32.totalorder %v264, 2
      %vm267 = vmand %vm265, %vm266
      %v268 = vld [vmem:[%s262] sm:$0x3]
      %v269 = vsel %vm267, %v268, 0.0
      %v270 = vmul.f32 %v269, %v269
      %vm273 = vcmp.eq.s32.totalorder %v261, %v258
      %v274 = vsel %vm273, 0.0, %v270
      %v275 = vadd.f32 %v254, %v274
      %v276 = vadd.f32 %v255, %v270
      %277 = vadd.xlane.f32.xlu0 %v276
      %v278 = vpop.xlane.xlu0 %277
      %v279 = vrot.slane %v278, 4
      %v280 = vadd.f32 %v278, %v279
      %v281 = vrot.slane %v280, 2
      %v282 = vadd.f32 %v280, %v281
      %v283 = vrot.slane %v282, 1
      %v284 = vadd.f32 %v282, %v283
      %285 = vadd.xlane.f32.xlu0 %v275
      %v286 = vpop.xlane.xlu0 %285
      %v287 = vrot.slane %v286, 4
      %v288 = vadd.f32 %v286, %v287
      %v289 = vrot.slane %v288, 2
      %v290 = vadd.f32 %v288, %v289
      %v291 = vrot.slane %v290, 1
      %v292 = vadd.f32 %v290, %v291
      %s293 = vtos %v292
      %s294 = vtos %v284
      %s295 = smul.f32 1e-10, %s294
      %p296 = scmp.le.f32.partialorder %s293, %s295
      %p297 = scmp.ge.s32.totalorder %s202, 15
      %p298 = por %p296, %p297
    $region124: #{custom-call.22} parent=1 // loop_header_branch
      %786 = sbr.rel (%p298) target = $region128
    $region125: #{custom-call.22} parent=1 // loop_body
      loop: start=0, step=1, limit=3
      $region129: #{custom-call.22} parent=125 // loop_pre_header
        _
      $region130: #{custom-call.22} parent=125 // loop_header
        %s300 = sphi 0, %s304
        %p301 = scmp.ge.s32.totalorder %s300, 3
      $region131: #{custom-call.22} parent=125 // loop_header_branch
        %303 = sbr.rel (%p301) target = $region135
      $region132: #{custom-call.22} parent=125 // loop_body
        #allocation24 [shape = 'f32[1024]{0}', space=vmem, size = 0x1000, scoped, tag = 'a_tl_diag vmem']
        #allocation25 [shape = 'f32[1024]{0}', space=vmem, size = 0x1000, scoped, tag = 'a_tr_diag vmem']
        #allocation26 [shape = 'f32[1024]{0}', space=vmem, size = 0x1000, scoped, tag = 'a_br_diag vmem']
        #allocation27 [shape = 'f32[1024]{0}', space=vmem, size = 0x1000, scoped, tag = 'rt1 vmem']
        #allocation28 [shape = 'f32[1024]{0}', space=vmem, size = 0x1000, scoped, tag = 'rt2 vmem']
        #allocation29 [shape = 'f32[1024]{0}', space=vmem, size = 0x1000, scoped, tag = 'c vmem']
        #allocation30 [shape = 'f32[1024]{0}', space=vmem, size = 0x1000, scoped, tag = 's vmem']
        #allocation31 [shape = 'f32[4096]{0}', space=vmem, size = 0x4000, scoped, tag = 'c broadcast']
        #allocation32 [shape = 'f32[4096]{0}', space=vmem, size = 0x4000, scoped, tag = 's broadcast']
        %s305 = smov [#allocation20]
        %s306 = smov [#allocation24]
        %v307 = vlaneseq
        %v308 = vand.u32 %v307, 127
        %v309 = vmov %v308
        %v310 = vlaneseq
        %v311 = vshrl.u32 %v310, 7
        %v312 = vmov %v311
        %v313 = vld [vmem:[%s305] sm:$0x3]
        %vm316 = vcmp.eq.s32.totalorder %v312, %v309
        %v317 = vsel %vm316, %v313, 0.0
        %v318 = vrot.slane %v317, 4
        %v319 = vadd.f32 %v317, %v318
        %v320 = vrot.slane %v319, 2
        %v321 = vadd.f32 %v319, %v320
        %v322 = vrot.slane %v321, 1
        %v323 = vadd.f32 %v321, %v322
        %324 = vst [vmem:[%s306] sm:$0x1] %v323
        %s325 = smov [#allocation21]
        %s326 = smov [#allocation25]
        %v327 = vlaneseq
        %v328 = vand.u32 %v327, 127
        %v329 = vmov %v328
        %v330 = vlaneseq
        %v331 = vshrl.u32 %v330, 7
        %v332 = vmov %v331
        %v333 = vld [vmem:[%s325] sm:$0x3]
        %vm336 = vcmp.eq.s32.totalorder %v332, %v329
        %v337 = vsel %vm336, %v333, 0.0
        %v338 = vrot.slane %v337, 4
        %v339 = vadd.f32 %v337, %v338
        %v340 = vrot.slane %v339, 2
        %v341 = vadd.f32 %v339, %v340
        %v342 = vrot.slane %v341, 1
        %v343 = vadd.f32 %v341, %v342
        %344 = vst [vmem:[%s326] sm:$0x1] %v343
        %s345 = smov [#allocation23]
        %s346 = smov [#allocation26]
        %v347 = vlaneseq
        %v348 = vand.u32 %v347, 127
        %v349 = vmov %v348
        %v350 = vlaneseq
        %v351 = vshrl.u32 %v350, 7
        %v352 = vmov %v351
        %v353 = vld [vmem:[%s345] sm:$0x3]
        %vm356 = vcmp.eq.s32.totalorder %v352, %v349
        %v357 = vsel %vm356, %v353, 0.0
        %v358 = vrot.slane %v357, 4
        %v359 = vadd.f32 %v357, %v358
        %v360 = vrot.slane %v359, 2
        %v361 = vadd.f32 %v359, %v360
        %v362 = vrot.slane %v361, 1
        %v363 = vadd.f32 %v361, %v362
        %364 = vst [vmem:[%s346] sm:$0x1] %v363
        %s365 = smov [#allocation29]
        %s366 = smov [#allocation30]
        %s367 = smov [#allocation24]
        %v368 = vld [vmem:[%s367] sm:$0xff]
        %s369 = smov [#allocation25]
        %v370 = vld [vmem:[%s369] sm:$0xff]
        %s371 = smov [#allocation26]
        %v372 = vld [vmem:[%s371] sm:$0xff]
        %v373 = vsub.f32 %v372, %v368
        %v374 = vmul.f32 2.0, %v370
        %v375 = vrcp.pop %v374
        %v376 = vmul.f32 %v374, %v375
        %v377 = vsub.f32 1.0, %v376
        %v378 = vmul.f32 %v375, %v377
        %v379 = vadd.f32 %v375, %v378
        %vm380 = vweird.f32 %v374
        %vm381 = vweird.f32 %v375
        %vm382 = vmor %vm380, %vm381
        %v383 = vsel %vm382, %v375, %v379
        %v384 = vand.u32 2147483647, %v374
        %vm385 = vcmp.eq.f32.partialorder %v384, 8.507059e+37
        %v386 = vand.u32 %v374, 2147483648
        %v387 = vor.u32 1.1754944e-38, %v386
        %v388 = vsel %vm385, %v387, %v383
        %v389 = vmul.f32 %v373, %v388
        %vm390 = vcmp.ge.f32.partialorder %v389, 0.0
        %v391 = vmul.f32 %v389, %v389
        %v392 = vadd.f32 1.0, %v391
        %v393 = vrsqrt.pop %v392
        %v394 = vmul.f32 %v393, %v392
        %v395 = vmul.f32 %v394, %v393
        %v396 = vmul.f32 0.5, %v395
        %v397 = vsub.f32 1.5, %v396
        %v398 = vmul.f32 %v393, %v397
        %v399 = vmul.f32 %v392, %v398
        %vm400 = vcmp.eq.f32.partialorder %v392, inf
        %v401 = vsel %vm400, %v392, %v399
        %vm402 = vcmp.eq.f32.partialorder %v392, 0.0
        %v403 = vand.u32 %v392, 2147483648
        %v404 = vsel %vm402, %v403, %v401
        %v405 = vxor.u32 %v404, 2147483648
        %v406 = vsel %vm390, %v404, %v405
        %v407 = vadd.f32 %v389, %v406
        %v408 = vrcp.pop %v407
        %v409 = vmul.f32 %v407, %v408
        %v410 = vsub.f32 1.0, %v409
        %v411 = vmul.f32 %v408, %v410
        %v412 = vadd.f32 %v408, %v411
        %vm413 = vweird.f32 %v407
        %vm414 = vweird.f32 %v408
        %vm415 = vmor %vm413, %vm414
        %v416 = vsel %vm415, %v408, %v412
        %v417 = vand.u32 2147483647, %v407
        %vm418 = vcmp.eq.f32.partialorder %v417, 8.507059e+37
        %v419 = vand.u32 %v407, 2147483648
        %v420 = vor.u32 1.1754944e-38, %v419
        %v421 = vsel %vm418, %v420, %v416
        %v422 = vand.u32 2147483647, %v368
        %v423 = vand.u32 2147483647, %v370
        %v424 = vand.u32 2147483647, %v372
        %v425 = vmin.f32 %v422, %v424
        %v426 = vmul.f32 1.1920929e-08, %v425
        %vm427 = vcmp.le.f32.partialorder %v423, %v426
        %v428 = vsel %vm427, 0.0, %v421
        %v429 = vmul.f32 %v428, %v428
        %v430 = vadd.f32 1.0, %v429
        %v431 = vrsqrt.pop %v430
        %v432 = vmul.f32 %v431, %v430
        %v433 = vmul.f32 %v432, %v431
        %v434 = vmul.f32 0.5, %v433
        %v435 = vsub.f32 1.5, %v434
        %v436 = vmul.f32 %v431, %v435
        %vm437 = vweird.f32 %v430
        %vm438 = vweird.f32 %v431
        %vm439 = vmor %vm437, %vm438
        %v440 = vsel %vm439, %v431, %v436
        %v441 = vmul.f32 %v428, %v440
        %v442 = vmul.f32 %v428, %v370
        %v443 = vsub.f32 %v368, %v442
        %v444 = vmul.f32 %v428, %v370
        %v445 = vadd.f32 %v372, %v444
        %s446 = smov [#allocation27]
        %447 = vst [vmem:[%s446] sm:$0xff] %v443
        %s448 = smov [#allocation28]
        %449 = vst [vmem:[%s448] sm:$0xff] %v445
        %s450 = smov %s365
        %451 = vst [vmem:[%s450] sm:$0xff] %v440
        %s452 = smov %s366
        %453 = vst [vmem:[%s452] sm:$0xff] %v441
        %s454 = smov [#allocation29]
        %v455 = vld [vmem:[%s454] ss:$0 sm:$0xff]
        %v456 = vlaneseq
        %v457 = vand.u32 %v456, 127
        %v458 = vmov %v457
        %v459 = vlaneseq
        %v460 = vshrl.u32 %v459, 7
        %v461 = vmov %v460
        %vm463 = vcmp.eq.s32.totalorder %v461, %v458
        %v464 = vsel %vm463, %v455, 0.0
        %465 = vadd.xlane.f32.xlu0 %v464
        %v466 = vpop.xlane.xlu0 %465
        %s467 = smov [#allocation31]
        %468 = vst [vmem:[%s467] sm:$0xff] %v466
        %s469 = smov [#allocation30]
        %v470 = vld [vmem:[%s469] ss:$0 sm:$0xff]
        %v471 = vlaneseq
        %v472 = vand.u32 %v471, 127
        %v473 = vmov %v472
        %v474 = vlaneseq
        %v475 = vshrl.u32 %v474, 7
        %v476 = vmov %v475
        %vm478 = vcmp.eq.s32.totalorder %v476, %v473
        %v479 = vsel %vm478, %v470, 0.0
        %480 = vadd.xlane.f32.xlu0 %v479
        %v481 = vpop.xlane.xlu0 %480
        %s482 = smov [#allocation32]
        %483 = vst [vmem:[%s482] sm:$0xff] %v481
        %s484 = smov [#allocation31]
        %v485 = vld [vmem:[%s484] sm:$0xff]
        %s486 = smov [#allocation32]
        %v487 = vld [vmem:[%s486] sm:$0xff]
        %s488 = smov [#allocation20]
        %s489 = smov [#allocation21]
        %s490 = smov [#allocation22]
        %s491 = smov [#allocation23]
        %v492 = vld [vmem:[%s488] sm:$0x3]
        %v493 = vld [vmem:[%s489] sm:$0x3]
        %v494 = vld [vmem:[%s490] sm:$0x3]
        %v495 = vld [vmem:[%s491] sm:$0x3]
        %v496 = vmul.f32 %v485, %v492
        %v497 = vmul.f32 %v487, %v494
        %v498 = vsub.f32 %v496, %v497
        %v499 = vmul.f32 %v485, %v493
        %v500 = vmul.f32 %v487, %v495
        %v501 = vsub.f32 %v499, %v500
        %v502 = vmul.f32 %v487, %v492
        %v503 = vmul.f32 %v485, %v494
        %v504 = vadd.f32 %v502, %v503
        %v505 = vmul.f32 %v487, %v493
        %v506 = vmul.f32 %v485, %v495
        %v507 = vadd.f32 %v505, %v506
        %508 = vst [vmem:[%s488] sm:$0x3] %v498
        %509 = vst [vmem:[%s489] sm:$0x3] %v501
        %510 = vst [vmem:[%s490] sm:$0x3] %v504
        %511 = vst [vmem:[%s491] sm:$0x3] %v507
        %s512 = smov [#allocation29]
        %v513 = vld [vmem:[%s512] ss:$0 sm:$0xff]
        %s514 = smov [#allocation30]
        %v515 = vld [vmem:[%s514] ss:$0 sm:$0xff]
        %s516 = smov [#allocation20]
        %s517 = smov [#allocation21]
        %s518 = smov [#allocation22]
        %s519 = smov [#allocation23]
        %v520 = vld [vmem:[%s516] sm:$0x3]
        %v521 = vld [vmem:[%s517] sm:$0x3]
        %v522 = vld [vmem:[%s518] sm:$0x3]
        %v523 = vld [vmem:[%s519] sm:$0x3]
        %v524 = vmul.f32 %v513, %v520
        %v525 = vmul.f32 %v515, %v521
        %v526 = vsub.f32 %v524, %v525
        %v527 = vmul.f32 %v515, %v520
        %v528 = vmul.f32 %v513, %v521
        %v529 = vadd.f32 %v527, %v528
        %v530 = vmul.f32 %v513, %v522
        %v531 = vmul.f32 %v515, %v523
        %v532 = vsub.f32 %v530, %v531
        %v533 = vmul.f32 %v515, %v522
        %v534 = vmul.f32 %v513, %v523
        %v535 = vadd.f32 %v533, %v534
        %536 = vst [vmem:[%s516] sm:$0x3] %v526
        %537 = vst [vmem:[%s517] sm:$0x3] %v529
        %538 = vst [vmem:[%s518] sm:$0x3] %v532
        %539 = vst [vmem:[%s519] sm:$0x3] %v535
        %s540 = smov [#allocation20]
        %s541 = smov [#allocation27]
        %v542 = vlaneseq
        %v543 = vand.u32 %v542, 127
        %v544 = vmov %v543
        %v545 = vlaneseq
        %v546 = vshrl.u32 %v545, 7
        %v547 = vmov %v546
        %v548 = vld [vmem:[%s541] ss:$0 sm:$0xff]
        %v549 = vld [vmem:[%s540] sm:$0x3]
        %vm552 = vcmp.eq.s32.totalorder %v547, %v544
        %v553 = vsel %vm552, %v548, %v549
        %554 = vst [vmem:[%s540] sm:$0x3] %v553
        %s555 = smov [#allocation21]
        %v556 = vlaneseq
        %v557 = vand.u32 %v556, 127
        %v558 = vmov %v557
        %v559 = vlaneseq
        %v560 = vshrl.u32 %v559, 7
        %v561 = vmov %v560
        %v562 = vld [vmem:[%s555] sm:$0x3]
        %vm565 = vcmp.eq.s32.totalorder %v561, %v558
        %v566 = vsel %vm565, 0.0, %v562
        %567 = vst [vmem:[%s555] sm:$0x3] %v566
        %s568 = smov [#allocation22]
        %v569 = vlaneseq
        %v570 = vand.u32 %v569, 127
        %v571 = vmov %v570
        %v572 = vlaneseq
        %v573 = vshrl.u32 %v572, 7
        %v574 = vmov %v573
        %v575 = vld [vmem:[%s568] sm:$0x3]
        %vm578 = vcmp.eq.s32.totalorder %v574, %v571
        %v579 = vsel %vm578, 0.0, %v575
        %580 = vst [vmem:[%s568] sm:$0x3] %v579
        %s581 = smov [#allocation23]
        %s582 = smov [#allocation28]
        %v583 = vlaneseq
        %v584 = vand.u32 %v583, 127
        %v585 = vmov %v584
        %v586 = vlaneseq
        %v587 = vshrl.u32 %v586, 7
        %v588 = vmov %v587
        %v589 = vld [vmem:[%s582] ss:$0 sm:$0xff]
        %v590 = vld [vmem:[%s581] sm:$0x3]
        %vm593 = vcmp.eq.s32.totalorder %v588, %v585
        %v594 = vsel %vm593, %v589, %v590
        %595 = vst [vmem:[%s581] sm:$0x3] %v594
        %s596 = smov [#allocation20]
        %s597 = smov [#allocation21]
        %v598 = vld [vmem:[%s597] sm:$0x3]
        %599 = vrot.lane.b32.xlu0 %v598, 1
        %v600 = vpop.permute.xlu0 %599
        %v601 = vld [vmem:[%s596] sm:$0x3]
        %v602 = vld [vmem:[%s596] sm:$0x3]
        %603 = vrot.lane.b32.xlu0 %v602, 1
        %v604 = vpop.permute.xlu0 %603
        %v605 = vlaneseq
        %v606 = vand.u32 %v605, 127
        %vm607 = vcmp.eq.s32.totalorder %v606, 0
        %v608 = vsel %vm607, %v602, %v604
        %v609 = vlaneseq
        %v610 = vand.u32 %v609, 127
        %vm611 = vcmp.eq.s32.totalorder %v610, 1
        %v612 = vsel %vm611, %v600, %v608
        %v613 = vlaneseq
        %v614 = vand.u32 %v613, 127
        %vm615 = vcmp.ge.s32.totalorder %v614, 0
        %vm616 = vcmp.lt.s32.totalorder %v614, 2
        %vm617 = vmand %vm615, %vm616
        %v618 = vsel %vm617, %v612, 0.0
        %v619 = vld [vmem:[%s597] sm:$0x3]
        %620 = vrot.lane.b32.xlu0 %v619, 127
        %v621 = vpop.permute.xlu0 %620
        %v622 = vlaneseq
        %v623 = vand.u32 %v622, 127
        %vm624 = vcmp.eq.s32.totalorder %v623, 1
        %v625 = vsel %vm624, %v601, %v621
        %626 = vst [vmem:[%s596] sm:$0x3] %v618
        %627 = vst [vmem:[%s597] sm:$0x3] %v625
        %s628 = smov [#allocation22]
        %s629 = smov [#allocation23]
        %v630 = vld [vmem:[%s629] sm:$0x3]
        %631 = vrot.lane.b32.xlu0 %v630, 1
        %v632 = vpop.permute.xlu0 %631
        %v633 = vld [vmem:[%s628] sm:$0x3]
        %v634 = vld [vmem:[%s628] sm:$0x3]
        %635 = vrot.lane.b32.xlu0 %v634, 1
        %v636 = vpop.permute.xlu0 %635
        %v637 = vlaneseq
        %v638 = vand.u32 %v637, 127
        %vm639 = vcmp.eq.s32.totalorder %v638, 0
        %v640 = vsel %vm639, %v634, %v636
        %v641 = vlaneseq
        %v642 = vand.u32 %v641, 127
        %vm643 = vcmp.eq.s32.totalorder %v642, 1
        %v644 = vsel %vm643, %v632, %v640
        %v645 = vlaneseq
        %v646 = vand.u32 %v645, 127
        %vm647 = vcmp.ge.s32.totalorder %v646, 0
        %vm648 = vcmp.lt.s32.totalorder %v646, 2
        %vm649 = vmand %vm647, %vm648
        %v650 = vsel %vm649, %v644, 0.0
        %v651 = vld [vmem:[%s629] sm:$0x3]
        %652 = vrot.lane.b32.xlu0 %v651, 127
        %v653 = vpop.permute.xlu0 %652
        %v654 = vlaneseq
        %v655 = vand.u32 %v654, 127
        %vm656 = vcmp.eq.s32.totalorder %v655, 1
        %v657 = vsel %vm656, %v633, %v653
        %658 = vst [vmem:[%s628] sm:$0x3] %v650
        %659 = vst [vmem:[%s629] sm:$0x3] %v657
        %s660 = smov [#allocation20]
        %s661 = smov [#allocation22]
        %v662 = vld [vmem:[%s660] ss:$0 sm:$0xff]
        %s664 = scalar_lea.vmem %s660, 4294967295
        %v665 = vld [vmem:[%s664] sm:$0x2]
        %v666 = vlaneseq
        %v667 = vshrl.u32 %v666, 7
        %vm668 = vcmp.eq.s32.totalorder %v667, 0
        %v669 = vsel %vm668, %v662, %v665
        %s670 = scalar_lea.vmem %s660, 1
        %v671 = vld [vmem:[%s670] ss:$0 sm:$0xff]
        %672 = vst [vmem:[%s660] sm:$0x3] %v669
        %v673 = vld [vmem:[%s661] ss:$0 sm:$0xff]
        %s674 = scalar_lea.vmem %s660, 1
        %675 = vst [vmem:[%s674] sm:$0x1] %v673
        %s676 = scalar_lea.vmem %s661, 1
        %v677 = vld [vmem:[%s676] sm:$0x1]
        %v678 = vlaneseq
        %v679 = vshrl.u32 %v678, 7
        %vm680 = vcmp.eq.s32.totalorder %v679, 1
        %v681 = vsel %vm680, %v671, %v677
        %v682 = vld [vmem:[%s661] ss:$0 sm:$0xff]
        %683 = vst [vmem:[%s661] sm:$0x3] %v681
        %s684 = smov [#allocation21]
        %s685 = smov [#allocation23]
        %v686 = vld [vmem:[%s684] ss:$0 sm:$0xff]
        %s688 = scalar_lea.vmem %s684, 4294967295
        %v689 = vld [vmem:[%s688] sm:$0x2]
        %v690 = vlaneseq
        %v691 = vshrl.u32 %v690, 7
        %vm692 = vcmp.eq.s32.totalorder %v691, 0
        %v693 = vsel %vm692, %v686, %v689
        %s694 = scalar_lea.vmem %s684, 1
        %v695 = vld [vmem:[%s694] ss:$0 sm:$0xff]
        %696 = vst [vmem:[%s684] sm:$0x3] %v693
        %v697 = vld [vmem:[%s685] ss:$0 sm:$0xff]
        %s698 = scalar_lea.vmem %s684, 1
        %699 = vst [vmem:[%s698] sm:$0x1] %v697
        %s700 = scalar_lea.vmem %s685, 1
        %v701 = vld [vmem:[%s700] sm:$0x1]
        %v702 = vlaneseq
        %v703 = vshrl.u32 %v702, 7
        %vm704 = vcmp.eq.s32.totalorder %v703, 1
        %v705 = vsel %vm704, %v695, %v701
        %v706 = vld [vmem:[%s685] ss:$0 sm:$0xff]
        %707 = vst [vmem:[%s685] sm:$0x3] %v705
        %s708 = smov [#allocation31]
        %v709 = vld [vmem:[%s708] sm:$0xff]
        %s710 = smov [#allocation32]
        %v711 = vld [vmem:[%s710] sm:$0xff]
        %s712 = smov [#allocation12]
        %s713 = smov [#allocation14]
        %s714 = smov [#allocation16]
        %s715 = smov [#allocation18]
        %v716 = vld [vmem:[%s712] sm:$0x3]
        %v717 = vld [vmem:[%s713] sm:$0x3]
        %v718 = vld [vmem:[%s714] sm:$0x3]
        %v719 = vld [vmem:[%s715] sm:$0x3]
        %v720 = vmul.f32 %v709, %v716
        %v721 = vmul.f32 %v711, %v718
        %v722 = vsub.f32 %v720, %v721
        %v723 = vmul.f32 %v709, %v717
        %v724 = vmul.f32 %v711, %v719
        %v725 = vsub.f32 %v723, %v724
        %v726 = vmul.f32 %v711, %v716
        %v727 = vmul.f32 %v709, %v718
        %v728 = vadd.f32 %v726, %v727
        %v729 = vmul.f32 %v711, %v717
        %v730 = vmul.f32 %v709, %v719
        %v731 = vadd.f32 %v729, %v730
        %732 = vst [vmem:[%s712] sm:$0x3] %v722
        %733 = vst [vmem:[%s713] sm:$0x3] %v725
        %734 = vst [vmem:[%s714] sm:$0x3] %v728
        %735 = vst [vmem:[%s715] sm:$0x3] %v731
        %s736 = smov [#allocation12]
        %s737 = smov [#allocation16]
        %v738 = vld [vmem:[%s736] ss:$0 sm:$0xff]
        %s740 = scalar_lea.vmem %s736, 4294967295
        %v741 = vld [vmem:[%s740] sm:$0x2]
        %v742 = vlaneseq
        %v743 = vshrl.u32 %v742, 7
        %vm744 = vcmp.eq.s32.totalorder %v743, 0
        %v745 = vsel %vm744, %v738, %v741
        %s746 = scalar_lea.vmem %s736, 1
        %v747 = vld [vmem:[%s746] ss:$0 sm:$0xff]
        %748 = vst [vmem:[%s736] sm:$0x3] %v745
        %v749 = vld [vmem:[%s737] ss:$0 sm:$0xff]
        %s750 = scalar_lea.vmem %s736, 1
        %751 = vst [vmem:[%s750] sm:$0x1] %v749
        %s752 = scalar_lea.vmem %s737, 1
        %v753 = vld [vmem:[%s752] sm:$0x1]
        %v754 = vlaneseq
        %v755 = vshrl.u32 %v754, 7
        %vm756 = vcmp.eq.s32.totalorder %v755, 1
        %v757 = vsel %vm756, %v747, %v753
        %v758 = vld [vmem:[%s737] ss:$0 sm:$0xff]
        %759 = vst [vmem:[%s737] sm:$0x3] %v757
        %s760 = smov [#allocation14]
        %s761 = smov [#allocation18]
        %v762 = vld [vmem:[%s760] ss:$0 sm:$0xff]
        %s764 = scalar_lea.vmem %s760, 4294967295
        %v765 = vld [vmem:[%s764] sm:$0x2]
        %v766 = vlaneseq
        %v767 = vshrl.u32 %v766, 7
        %vm768 = vcmp.eq.s32.totalorder %v767, 0
        %v769 = vsel %vm768, %v762, %v765
        %s770 = scalar_lea.vmem %s760, 1
        %v771 = vld [vmem:[%s770] ss:$0 sm:$0xff]
        %772 = vst [vmem:[%s760] sm:$0x3] %v769
        %v773 = vld [vmem:[%s761] ss:$0 sm:$0xff]
        %s774 = scalar_lea.vmem %s760, 1
        %775 = vst [vmem:[%s774] sm:$0x1] %v773
        %s776 = scalar_lea.vmem %s761, 1
        %v777 = vld [vmem:[%s776] sm:$0x1]
        %v778 = vlaneseq
        %v779 = vshrl.u32 %v778, 7
        %vm780 = vcmp.eq.s32.totalorder %v779, 1
        %v781 = vsel %vm780, %v771, %v777
        %v782 = vld [vmem:[%s761] ss:$0 sm:$0xff]
        %783 = vst [vmem:[%s761] sm:$0x3] %v781
      $region133: #{custom-call.22} parent=125 // loop_footer
        %s304 = sadd.s32 1, %s300
      $region134: #{custom-call.22} parent=125 // loop_footer_branch
        %299 = sbr.rel target = $region130
      $region135: #{custom-call.22} parent=125 // loop_exit
        _
      %s784 = sadd.s32 %s202, 1
    $region126: #{custom-call.22} parent=1 // loop_footer
      _
    $region127: #{custom-call.22} parent=1 // loop_footer_branch
      %201 = sbr.rel target = $region123
    $region128: #{custom-call.22} parent=1 // loop_exit
      _
    %s787 = smov [#allocation20]
    %s788 = smov [#allocation8]
    %v789 = vlaneseq
    %v790 = vand.u32 %v789, 127
    %v791 = vmov %v790
    %v792 = vlaneseq
    %v793 = vshrl.u32 %v792, 7
    %v794 = vmov %v793
    %v795 = vld [vmem:[%s787] sm:$0x3]
    %vm798 = vcmp.eq.s32.totalorder %v794, %v791
    %v799 = vsel %vm798, %v795, 0.0
    %v800 = vrot.slane %v799, 4
    %v801 = vadd.f32 %v799, %v800
    %v802 = vrot.slane %v801, 2
    %v803 = vadd.f32 %v801, %v802
    %v804 = vrot.slane %v803, 1
    %v805 = vadd.f32 %v803, %v804
    %806 = vst [vmem:[%s788] sm:$0x1] %v805
    %s807 = smov [#allocation23]
    %s808 = smov [#allocation10]
    %v809 = vlaneseq
    %v810 = vand.u32 %v809, 127
    %v811 = vmov %v810
    %v812 = vlaneseq
    %v813 = vshrl.u32 %v812, 7
    %v814 = vmov %v813
    %v815 = vld [vmem:[%s807] sm:$0x3]
    %vm818 = vcmp.eq.s32.totalorder %v814, %v811
    %v819 = vsel %vm818, %v815, 0.0
    %v820 = vrot.slane %v819, 4
    %v821 = vadd.f32 %v819, %v820
    %v822 = vrot.slane %v821, 2
    %v823 = vadd.f32 %v821, %v822
    %v824 = vrot.slane %v823, 1
    %v825 = vadd.f32 %v823, %v824
    %826 = vst [vmem:[%s808] sm:$0x1] %v825
    %s828 = ssub.s32 2, 1
    %v829 = vld [vmem:[#allocation8] sm:%s828]
    %s831 = ssub.s32 2, 1
    %832 = vst [vmem:[#allocation9] sm:%s831] %v829
    %s834 = ssub.s32 2, 1
    %v835 = vld [vmem:[#allocation10] sm:%s834]
    %s837 = ssub.s32 2, 1
    %838 = vst [vmem:[#allocation11] sm:%s837] %v835
    %s840 = ssub.s32 4, 1
    %v841 = vld [vmem:[#allocation12] sm:%s840]
    %s843 = ssub.s32 4, 1
    %844 = vst [vmem:[#allocation13] sm:%s843] %v841
    %s846 = ssub.s32 4, 1
    %v847 = vld [vmem:[#allocation14] sm:%s846]
    %s849 = ssub.s32 4, 1
    %850 = vst [vmem:[#allocation15] sm:%s849] %v847
    %s852 = ssub.s32 4, 1
    %v853 = vld [vmem:[#allocation16] sm:%s852]
    %s855 = ssub.s32 4, 1
    %856 = vst [vmem:[#allocation17] sm:%s855] %v853
    %s858 = ssub.s32 4, 1
    %v859 = vld [vmem:[#allocation18] sm:%s858]
    %s861 = ssub.s32 4, 1
    %862 = vst [vmem:[#allocation19] sm:%s861] %v859
    // Predicated region
    $region136: #{custom-call.22} parent=1 // pred_check
      _
    $region137: #{custom-call.22} parent=1 // pred_check_branch
      %864 = sbr.rel (0) target = $region139
    $region138: #{custom-call.22} parent=1 // pred_region
      // Predicated region
      $region140: #{custom-call.22} parent=138 // pred_check
        _
      $region141: #{custom-call.22} parent=138 // pred_check_branch
        %866 = sbr.rel (0) target = $region143
      $region142: #{custom-call.22} parent=138 // pred_region
        // Predicated region
        $region144: #{custom-call.22} parent=142 // pred_check
          _
        $region145: #{custom-call.22} parent=142 // pred_check_branch
          %868 = sbr.rel target = $region147
        $region146: #{custom-call.22} parent=142 // pred_region
          // Predicated region
          $region159: #{custom-call.22} parent=146 // pred_check
            _
          $region160: #{custom-call.22} parent=146 // pred_check_branch
            %884 = sbr.rel (0) target = $region162
          $region161: #{custom-call.22} parent=146 // pred_region
            %s886 = ssub.s32 2, 1
            loop: start=0, step=1, limit=1
            $region163: #{custom-call.22} parent=161 // loop_pre_header
              _
            $region164: #{custom-call.22} parent=161 // loop_header
              %s888 = sphi 0, %s892
              %p889 = scmp.ge.s32.totalorder %s888, 1
              %s893 = sphi [#allocation9], [#allocation9]
              %s894 = sphi %s4, %s4
            $region165: #{custom-call.22} parent=161 // loop_header_branch
              %891 = sbr.rel (%p889) target = $region169
            $region166: #{custom-call.22} parent=161 // loop_body
              %v895 = vld [vmem:[%s893] sm:%s886]
              %896 = vst [vmem:[%s894] sm:%s886] %v895
            $region167: #{custom-call.22} parent=161 // loop_footer
              %s892 = sadd.s32 1, %s888
            $region168: #{custom-call.22} parent=161 // loop_footer_branch
              %887 = sbr.rel target = $region164
            $region169: #{custom-call.22} parent=161 // loop_exit
              _
          $region162: #{custom-call.22} parent=146 // pred_fallthru
            _
        $region147: #{custom-call.22} parent=142 // pred_fallthru
          _
        // Predicated region
        $region148: #{custom-call.22} parent=142 // pred_check
          _
        $region149: #{custom-call.22} parent=142 // pred_check_branch
          %870 = sbr.rel (0) target = $region151
        $region150: #{custom-call.22} parent=142 // pred_region
          %s872 = ssub.s32 2, 1
          loop: start=0, step=1, limit=1
          $region152: #{custom-call.22} parent=150 // loop_pre_header
            _
          $region153: #{custom-call.22} parent=150 // loop_header
            %s874 = sphi 0, %s878
            %p875 = scmp.ge.s32.totalorder %s874, 1
            %s879 = sphi [#allocation9], [#allocation9]
            %s880 = sphi %s4, %s4
          $region154: #{custom-call.22} parent=150 // loop_header_branch
            %877 = sbr.rel (%p875) target = $region158
          $region155: #{custom-call.22} parent=150 // loop_body
            %v881 = vld [vmem:[%s879] sm:%s872]
            %882 = vst [vmem:[%s880] sm:%s872] %v881
          $region156: #{custom-call.22} parent=150 // loop_footer
            %s878 = sadd.s32 1, %s874
          $region157: #{custom-call.22} parent=150 // loop_footer_branch
            %873 = sbr.rel target = $region153
          $region158: #{custom-call.22} parent=150 // loop_exit
            _
        $region151: #{custom-call.22} parent=142 // pred_fallthru
          _
      $region143: #{custom-call.22} parent=138 // pred_fallthru
        _
      %897 = vnop
    $region139: #{custom-call.22} parent=1 // pred_fallthru
      _
    // Predicated region
    $region170: #{custom-call.22} parent=1 // pred_check
      _
    $region171: #{custom-call.22} parent=1 // pred_check_branch
      %899 = sbr.rel (0) target = $region173
    $region172: #{custom-call.22} parent=1 // pred_region
      // Predicated region
      $region174: #{custom-call.22} parent=172 // pred_check
        _
      $region175: #{custom-call.22} parent=172 // pred_check_branch
        %901 = sbr.rel (0) target = $region177
      $region176: #{custom-call.22} parent=172 // pred_region
        // Predicated region
        $region178: #{custom-call.22} parent=176 // pred_check
          _
        $region179: #{custom-call.22} parent=176 // pred_check_branch
          %903 = sbr.rel target = $region181
        $region180: #{custom-call.22} parent=176 // pred_region
          // Predicated region
          $region193: #{custom-call.22} parent=180 // pred_check
            _
          $region194: #{custom-call.22} parent=180 // pred_check_branch
            %919 = sbr.rel (0) target = $region196
          $region195: #{custom-call.22} parent=180 // pred_region
            %s921 = ssub.s32 2, 1
            loop: start=0, step=1, limit=1
            $region197: #{custom-call.22} parent=195 // loop_pre_header
              _
            $region198: #{custom-call.22} parent=195 // loop_header
              %s923 = sphi 0, %s927
              %p924 = scmp.ge.s32.totalorder %s923, 1
              %s928 = sphi [#allocation11], [#allocation11]
              %s929 = sphi %s5, %s5
            $region199: #{custom-call.22} parent=195 // loop_header_branch
              %926 = sbr.rel (%p924) target = $region203
            $region200: #{custom-call.22} parent=195 // loop_body
              %v930 = vld [vmem:[%s928] sm:%s921]
              %931 = vst [vmem:[%s929] sm:%s921] %v930
            $region201: #{custom-call.22} parent=195 // loop_footer
              %s927 = sadd.s32 1, %s923
            $region202: #{custom-call.22} parent=195 // loop_footer_branch
              %922 = sbr.rel target = $region198
            $region203: #{custom-call.22} parent=195 // loop_exit
              _
          $region196: #{custom-call.22} parent=180 // pred_fallthru
            _
        $region181: #{custom-call.22} parent=176 // pred_fallthru
          _
        // Predicated region
        $region182: #{custom-call.22} parent=176 // pred_check
          _
        $region183: #{custom-call.22} parent=176 // pred_check_branch
          %905 = sbr.rel (0) target = $region185
        $region184: #{custom-call.22} parent=176 // pred_region
          %s907 = ssub.s32 2, 1
          loop: start=0, step=1, limit=1
          $region186: #{custom-call.22} parent=184 // loop_pre_header
            _
          $region187: #{custom-call.22} parent=184 // loop_header
            %s909 = sphi 0, %s913
            %p910 = scmp.ge.s32.totalorder %s909, 1
            %s914 = sphi [#allocation11], [#allocation11]
            %s915 = sphi %s5, %s5
          $region188: #{custom-call.22} parent=184 // loop_header_branch
            %912 = sbr.rel (%p910) target = $region192
          $region189: #{custom-call.22} parent=184 // loop_body
            %v916 = vld [vmem:[%s914] sm:%s907]
            %917 = vst [vmem:[%s915] sm:%s907] %v916
          $region190: #{custom-call.22} parent=184 // loop_footer
            %s913 = sadd.s32 1, %s909
          $region191: #{custom-call.22} parent=184 // loop_footer_branch
            %908 = sbr.rel target = $region187
          $region192: #{custom-call.22} parent=184 // loop_exit
            _
        $region185: #{custom-call.22} parent=176 // pred_fallthru
          _
      $region177: #{custom-call.22} parent=172 // pred_fallthru
        _
      %932 = vnop
    $region173: #{custom-call.22} parent=1 // pred_fallthru
      _
    // Predicated region
    $region204: #{custom-call.22} parent=1 // pred_check
      _
    $region205: #{custom-call.22} parent=1 // pred_check_branch
      %934 = sbr.rel (0) target = $region207
    $region206: #{custom-call.22} parent=1 // pred_region
      // Predicated region
      $region208: #{custom-call.22} parent=206 // pred_check
        _
      $region209: #{custom-call.22} parent=206 // pred_check_branch
        %936 = sbr.rel target = $region211
      $region210: #{custom-call.22} parent=206 // pred_region
        // Predicated region
        $region223: #{custom-call.22} parent=210 // pred_check
          _
        $region224: #{custom-call.22} parent=210 // pred_check_branch
          %952 = sbr.rel (0) target = $region226
        $region225: #{custom-call.22} parent=210 // pred_region
          %s954 = ssub.s32 4, 1
          loop: start=0, step=1, limit=1
          $region227: #{custom-call.22} parent=225 // loop_pre_header
            _
          $region228: #{custom-call.22} parent=225 // loop_header
            %s956 = sphi 0, %s960
            %p957 = scmp.ge.s32.totalorder %s956, 1
            %s961 = sphi [#allocation13], [#allocation13]
            %s962 = sphi %s6, %s6
          $region229: #{custom-call.22} parent=225 // loop_header_branch
            %959 = sbr.rel (%p957) target = $region233
          $region230: #{custom-call.22} parent=225 // loop_body
            %v963 = vld [vmem:[%s961] sm:%s954]
            %964 = vst [vmem:[%s962] sm:%s954] %v963
          $region231: #{custom-call.22} parent=225 // loop_footer
            %s960 = sadd.s32 1, %s956
          $region232: #{custom-call.22} parent=225 // loop_footer_branch
            %955 = sbr.rel target = $region228
          $region233: #{custom-call.22} parent=225 // loop_exit
            _
        $region226: #{custom-call.22} parent=210 // pred_fallthru
          _
      $region211: #{custom-call.22} parent=206 // pred_fallthru
        _
      // Predicated region
      $region212: #{custom-call.22} parent=206 // pred_check
        _
      $region213: #{custom-call.22} parent=206 // pred_check_branch
        %938 = sbr.rel (0) target = $region215
      $region214: #{custom-call.22} parent=206 // pred_region
        %s940 = ssub.s32 4, 1
        loop: start=0, step=1, limit=1
        $region216: #{custom-call.22} parent=214 // loop_pre_header
          _
        $region217: #{custom-call.22} parent=214 // loop_header
          %s942 = sphi 0, %s946
          %p943 = scmp.ge.s32.totalorder %s942, 1
          %s947 = sphi [#allocation13], [#allocation13]
          %s948 = sphi %s6, %s6
        $region218: #{custom-call.22} parent=214 // loop_header_branch
          %945 = sbr.rel (%p943) target = $region222
        $region219: #{custom-call.22} parent=214 // loop_body
          %v949 = vld [vmem:[%s947] sm:%s940]
          %950 = vst [vmem:[%s948] sm:%s940] %v949
        $region220: #{custom-call.22} parent=214 // loop_footer
          %s946 = sadd.s32 1, %s942
        $region221: #{custom-call.22} parent=214 // loop_footer_branch
          %941 = sbr.rel target = $region217
        $region222: #{custom-call.22} parent=214 // loop_exit
          _
      $region215: #{custom-call.22} parent=206 // pred_fallthru
        _
    $region207: #{custom-call.22} parent=1 // pred_fallthru
      _
    %965 = vnop
    // Predicated region
    $region234: #{custom-call.22} parent=1 // pred_check
      _
    $region235: #{custom-call.22} parent=1 // pred_check_branch
      %967 = sbr.rel (0) target = $region237
    $region236: #{custom-call.22} parent=1 // pred_region
      // Predicated region
      $region238: #{custom-call.22} parent=236 // pred_check
        _
      $region239: #{custom-call.22} parent=236 // pred_check_branch
        %969 = sbr.rel target = $region241
      $region240: #{custom-call.22} parent=236 // pred_region
        // Predicated region
        $region253: #{custom-call.22} parent=240 // pred_check
          _
        $region254: #{custom-call.22} parent=240 // pred_check_branch
          %985 = sbr.rel (0) target = $region256
        $region255: #{custom-call.22} parent=240 // pred_region
          %s987 = ssub.s32 4, 1
          loop: start=0, step=1, limit=1
          $region257: #{custom-call.22} parent=255 // loop_pre_header
            _
          $region258: #{custom-call.22} parent=255 // loop_header
            %s989 = sphi 0, %s993
            %p990 = scmp.ge.s32.totalorder %s989, 1
            %s994 = sphi [#allocation15], [#allocation15]
            %s995 = sphi %s7, %s7
          $region259: #{custom-call.22} parent=255 // loop_header_branch
            %992 = sbr.rel (%p990) target = $region263
          $region260: #{custom-call.22} parent=255 // loop_body
            %v996 = vld [vmem:[%s994] sm:%s987]
            %997 = vst [vmem:[%s995] sm:%s987] %v996
          $region261: #{custom-call.22} parent=255 // loop_footer
            %s993 = sadd.s32 1, %s989
          $region262: #{custom-call.22} parent=255 // loop_footer_branch
            %988 = sbr.rel target = $region258
          $region263: #{custom-call.22} parent=255 // loop_exit
            _
        $region256: #{custom-call.22} parent=240 // pred_fallthru
          _
      $region241: #{custom-call.22} parent=236 // pred_fallthru
        _
      // Predicated region
      $region242: #{custom-call.22} parent=236 // pred_check
        _
      $region243: #{custom-call.22} parent=236 // pred_check_branch
        %971 = sbr.rel (0) target = $region245
      $region244: #{custom-call.22} parent=236 // pred_region
        %s973 = ssub.s32 4, 1
        loop: start=0, step=1, limit=1
        $region246: #{custom-call.22} parent=244 // loop_pre_header
          _
        $region247: #{custom-call.22} parent=244 // loop_header
          %s975 = sphi 0, %s979
          %p976 = scmp.ge.s32.totalorder %s975, 1
          %s980 = sphi [#allocation15], [#allocation15]
          %s981 = sphi %s7, %s7
        $region248: #{custom-call.22} parent=244 // loop_header_branch
          %978 = sbr.rel (%p976) target = $region252
        $region249: #{custom-call.22} parent=244 // loop_body
          %v982 = vld [vmem:[%s980] sm:%s973]
          %983 = vst [vmem:[%s981] sm:%s973] %v982
        $region250: #{custom-call.22} parent=244 // loop_footer
          %s979 = sadd.s32 1, %s975
        $region251: #{custom-call.22} parent=244 // loop_footer_branch
          %974 = sbr.rel target = $region247
        $region252: #{custom-call.22} parent=244 // loop_exit
          _
      $region245: #{custom-call.22} parent=236 // pred_fallthru
        _
    $region237: #{custom-call.22} parent=1 // pred_fallthru
      _
    %998 = vnop
    // Predicated region
    $region264: #{custom-call.22} parent=1 // pred_check
      _
    $region265: #{custom-call.22} parent=1 // pred_check_branch
      %1000 = sbr.rel (0) target = $region267
    $region266: #{custom-call.22} parent=1 // pred_region
      // Predicated region
      $region268: #{custom-call.22} parent=266 // pred_check
        _
      $region269: #{custom-call.22} parent=266 // pred_check_branch
        %1002 = sbr.rel target = $region271
      $region270: #{custom-call.22} parent=266 // pred_region
        // Predicated region
        $region283: #{custom-call.22} parent=270 // pred_check
          _
        $region284: #{custom-call.22} parent=270 // pred_check_branch
          %1018 = sbr.rel (0) target = $region286
        $region285: #{custom-call.22} parent=270 // pred_region
          %s1020 = ssub.s32 4, 1
          loop: start=0, step=1, limit=1
          $region287: #{custom-call.22} parent=285 // loop_pre_header
            _
          $region288: #{custom-call.22} parent=285 // loop_header
            %s1022 = sphi 0, %s1026
            %p1023 = scmp.ge.s32.totalorder %s1022, 1
            %s1027 = sphi [#allocation17], [#allocation17]
            %s1028 = sphi %s8, %s8
          $region289: #{custom-call.22} parent=285 // loop_header_branch
            %1025 = sbr.rel (%p1023) target = $region293
          $region290: #{custom-call.22} parent=285 // loop_body
            %v1029 = vld [vmem:[%s1027] sm:%s1020]
            %1030 = vst [vmem:[%s1028] sm:%s1020] %v1029
          $region291: #{custom-call.22} parent=285 // loop_footer
            %s1026 = sadd.s32 1, %s1022
          $region292: #{custom-call.22} parent=285 // loop_footer_branch
            %1021 = sbr.rel target = $region288
          $region293: #{custom-call.22} parent=285 // loop_exit
            _
        $region286: #{custom-call.22} parent=270 // pred_fallthru
          _
      $region271: #{custom-call.22} parent=266 // pred_fallthru
        _
      // Predicated region
      $region272: #{custom-call.22} parent=266 // pred_check
        _
      $region273: #{custom-call.22} parent=266 // pred_check_branch
        %1004 = sbr.rel (0) target = $region275
      $region274: #{custom-call.22} parent=266 // pred_region
        %s1006 = ssub.s32 4, 1
        loop: start=0, step=1, limit=1
        $region276: #{custom-call.22} parent=274 // loop_pre_header
          _
        $region277: #{custom-call.22} parent=274 // loop_header
          %s1008 = sphi 0, %s1012
          %p1009 = scmp.ge.s32.totalorder %s1008, 1
          %s1013 = sphi [#allocation17], [#allocation17]
          %s1014 = sphi %s8, %s8
        $region278: #{custom-call.22} parent=274 // loop_header_branch
          %1011 = sbr.rel (%p1009) target = $region282
        $region279: #{custom-call.22} parent=274 // loop_body
          %v1015 = vld [vmem:[%s1013] sm:%s1006]
          %1016 = vst [vmem:[%s1014] sm:%s1006] %v1015
        $region280: #{custom-call.22} parent=274 // loop_footer
          %s1012 = sadd.s32 1, %s1008
        $region281: #{custom-call.22} parent=274 // loop_footer_branch
          %1007 = sbr.rel target = $region277
        $region282: #{custom-call.22} parent=274 // loop_exit
          _
      $region275: #{custom-call.22} parent=266 // pred_fallthru
        _
    $region267: #{custom-call.22} parent=1 // pred_fallthru
      _
    %1031 = vnop
    // Predicated region
    $region294: #{custom-call.22} parent=1 // pred_check
      _
    $region295: #{custom-call.22} parent=1 // pred_check_branch
      %1033 = sbr.rel (0) target = $region297
    $region296: #{custom-call.22} parent=1 // pred_region
      // Predicated region
      $region298: #{custom-call.22} parent=296 // pred_check
        _
      $region299: #{custom-call.22} parent=296 // pred_check_branch
        %1035 = sbr.rel target = $region301
      $region300: #{custom-call.22} parent=296 // pred_region
        // Predicated region
        $region313: #{custom-call.22} parent=300 // pred_check
          _
        $region314: #{custom-call.22} parent=300 // pred_check_branch
          %1051 = sbr.rel (0) target = $region316
        $region315: #{custom-call.22} parent=300 // pred_region
          %s1053 = ssub.s32 4, 1
          loop: start=0, step=1, limit=1
          $region317: #{custom-call.22} parent=315 // loop_pre_header
            _
          $region318: #{custom-call.22} parent=315 // loop_header
            %s1055 = sphi 0, %s1059
            %p1056 = scmp.ge.s32.totalorder %s1055, 1
            %s1060 = sphi [#allocation19], [#allocation19]
            %s1061 = sphi %s9, %s9
          $region319: #{custom-call.22} parent=315 // loop_header_branch
            %1058 = sbr.rel (%p1056) target = $region323
          $region320: #{custom-call.22} parent=315 // loop_body
            %v1062 = vld [vmem:[%s1060] sm:%s1053]
            %1063 = vst [vmem:[%s1061] sm:%s1053] %v1062
          $region321: #{custom-call.22} parent=315 // loop_footer
            %s1059 = sadd.s32 1, %s1055
          $region322: #{custom-call.22} parent=315 // loop_footer_branch
            %1054 = sbr.rel target = $region318
          $region323: #{custom-call.22} parent=315 // loop_exit
            _
        $region316: #{custom-call.22} parent=300 // pred_fallthru
          _
      $region301: #{custom-call.22} parent=296 // pred_fallthru
        _
      // Predicated region
      $region302: #{custom-call.22} parent=296 // pred_check
        _
      $region303: #{custom-call.22} parent=296 // pred_check_branch
        %1037 = sbr.rel (0) target = $region305
      $region304: #{custom-call.22} parent=296 // pred_region
        %s1039 = ssub.s32 4, 1
        loop: start=0, step=1, limit=1
        $region306: #{custom-call.22} parent=304 // loop_pre_header
          _
        $region307: #{custom-call.22} parent=304 // loop_header
          %s1041 = sphi 0, %s1045
          %p1042 = scmp.ge.s32.totalorder %s1041, 1
          %s1046 = sphi [#allocation19], [#allocation19]
          %s1047 = sphi %s9, %s9
        $region308: #{custom-call.22} parent=304 // loop_header_branch
          %1044 = sbr.rel (%p1042) target = $region312
        $region309: #{custom-call.22} parent=304 // loop_body
          %v1048 = vld [vmem:[%s1046] sm:%s1039]
          %1049 = vst [vmem:[%s1047] sm:%s1039] %v1048
        $region310: #{custom-call.22} parent=304 // loop_footer
          %s1045 = sadd.s32 1, %s1041
        $region311: #{custom-call.22} parent=304 // loop_footer_branch
          %1040 = sbr.rel target = $region307
        $region312: #{custom-call.22} parent=304 // loop_exit
          _
      $region305: #{custom-call.22} parent=296 // pred_fallthru
        _
    $region297: #{custom-call.22} parent=1 // pred_fallthru
      _
    %1064 = vnop
    // Predicated region
    $region324: #{custom-call.22} parent=1 // pred_check
      _
    $region325: #{custom-call.22} parent=1 // pred_check_branch
      %1066 = sbr.rel (0) target = $region327
    $region326: #{custom-call.22} parent=1 // pred_region
      _
    $region327: #{custom-call.22} parent=1 // pred_fallthru
      _
    // Predicated region
    $region328: #{custom-call.22} parent=1 // pred_check
      _
    $region329: #{custom-call.22} parent=1 // pred_check_branch
      %1068 = sbr.rel (0) target = $region331
    $region330: #{custom-call.22} parent=1 // pred_region
      _
    $region331: #{custom-call.22} parent=1 // pred_fallthru
      _

// kernel: custom-call.50
$region0: #{custom-call.50}
  %s0 = inlined_call_operand.vmem [shape: f32[1,3,3], index: 0, kind: input, shape index: {}]
  %s1 = inlined_call_operand.vmem [shape: f32[1,3,3], index: 1, kind: output, shape index: {0}]
  %s2 = inlined_call_operand.vmem [shape: f32[1,3], index: 2, kind: output, shape index: {1}]
  %3 = xla_tuple %s1, %s2
  $region1: #{custom-call.50} parent=0
    #allocation0 [shape = 'u8[4096]{0}', space=vmem, size = 0x1000, scoped, tag = 'operand span for operand 0']
    #allocation1 [shape = 'u8[2048]{0}', space=vmem, size = 0x800, scoped, tag = 'packed  for operand 0']
    #allocation2 [shape = 'u8[4096]{0}', space=vmem, size = 0x1000, scoped, tag = 'operand span for operand 1']
    #allocation3 [shape = 'u8[2048]{0}', space=vmem, size = 0x800, scoped, tag = 'packed  for operand 1']
    #allocation4 [shape = 'u8[4096]{0}', space=vmem, size = 0x1000, scoped, tag = 'operand span for operand 2']
    #allocation5 [shape = 'u8[512]{0}', space=vmem, size = 0x400, scoped, tag = 'packed  for operand 2']
    #allocation6 [shape = 'f32[3,128]{1,0}', space=vmem, size = 0x1000, scoped, tag = 'scratch for Householder reflectors']
    // Predicated region
    $region2: #{custom-call.50} parent=1 // pred_check
      _
    $region3: #{custom-call.50} parent=1 // pred_check_branch
      %5 = sbr.rel (0) target = $region5
    $region4: #{custom-call.50} parent=1 // pred_region
      // Predicated region
      $region6: #{custom-call.50} parent=4 // pred_check
        _
      $region7: #{custom-call.50} parent=4 // pred_check_branch
        %7 = sbr.rel target = $region9
      $region8: #{custom-call.50} parent=4 // pred_region
        // Predicated region
        $region21: #{custom-call.50} parent=8 // pred_check
          _
        $region22: #{custom-call.50} parent=8 // pred_check_branch
          %23 = sbr.rel (0) target = $region24
        $region23: #{custom-call.50} parent=8 // pred_region
          %s25 = ssub.s32 16, 1
          loop: start=0, step=1, limit=1
          $region25: #{custom-call.50} parent=23 // loop_pre_header
            _
          $region26: #{custom-call.50} parent=23 // loop_header
            %s27 = sphi 0, %s31
            %p28 = scmp.ge.s32.totalorder %s27, 1
            %s32 = sphi %s0, %s0
            %s33 = sphi [#allocation1], [#allocation1]
          $region27: #{custom-call.50} parent=23 // loop_header_branch
            %30 = sbr.rel (%p28) target = $region31
          $region28: #{custom-call.50} parent=23 // loop_body
            %v34 = vld [vmem:[%s32] sm:%s25]
            %35 = vst [vmem:[%s33] sm:%s25] %v34
          $region29: #{custom-call.50} parent=23 // loop_footer
            %s31 = sadd.s32 1, %s27
          $region30: #{custom-call.50} parent=23 // loop_footer_branch
            %26 = sbr.rel target = $region26
          $region31: #{custom-call.50} parent=23 // loop_exit
            _
        $region24: #{custom-call.50} parent=8 // pred_fallthru
          _
      $region9: #{custom-call.50} parent=4 // pred_fallthru
        _
      // Predicated region
      $region10: #{custom-call.50} parent=4 // pred_check
        _
      $region11: #{custom-call.50} parent=4 // pred_check_branch
        %9 = sbr.rel (0) target = $region13
      $region12: #{custom-call.50} parent=4 // pred_region
        %s11 = ssub.s32 16, 1
        loop: start=0, step=1, limit=1
        $region14: #{custom-call.50} parent=12 // loop_pre_header
          _
        $region15: #{custom-call.50} parent=12 // loop_header
          %s13 = sphi 0, %s17
          %p14 = scmp.ge.s32.totalorder %s13, 1
          %s18 = sphi %s0, %s0
          %s19 = sphi [#allocation1], [#allocation1]
        $region16: #{custom-call.50} parent=12 // loop_header_branch
          %16 = sbr.rel (%p14) target = $region20
        $region17: #{custom-call.50} parent=12 // loop_body
          %v20 = vld [vmem:[%s18] sm:%s11]
          %21 = vst [vmem:[%s19] sm:%s11] %v20
        $region18: #{custom-call.50} parent=12 // loop_footer
          %s17 = sadd.s32 1, %s13
        $region19: #{custom-call.50} parent=12 // loop_footer_branch
          %12 = sbr.rel target = $region15
        $region20: #{custom-call.50} parent=12 // loop_exit
          _
      $region13: #{custom-call.50} parent=4 // pred_fallthru
        _
    $region5: #{custom-call.50} parent=1 // pred_fallthru
      _
    %36 = vnop
    %s38 = ssub.s32 16, 1
    %v39 = vld [vmem:[#allocation1] sm:%s38]
    %40 = vst [vmem:[#allocation0] sm:%s38] %v39
    %s41 = ssub.s32 0, 0
    %s42 = ssub.s32 0, 0
    %v43 = vld [vmem:[#allocation0] sm:$0xff]
    %44 = vst [vmem:[#allocation2] sm:$0xff] %v43
    %45 = vst [vmem:[#allocation4] sm:$0x1] 0.0
    loop: start=0, step=1, limit=3
    $region32: #{custom-call.50} parent=1 // loop_pre_header
      _
    $region33: #{custom-call.50} parent=1 // loop_header
      %s47 = sphi 0, %s51
      %p48 = scmp.ge.s32.totalorder %s47, 3
    $region34: #{custom-call.50} parent=1 // loop_header_branch
      %50 = sbr.rel (%p48) target = $region38
    $region35: #{custom-call.50} parent=1 // loop_body
      %v52 = vld [vmem:[#allocation2] sm:$0xff]
      %v53 = vlaneseq
      %v54 = vshrl.u32 %v53, 7
      %v56 = vstv %s47
      %vm57 = vcmp.gt.s32.totalorder %v54, %v56
      %vm58 = vcmp.lt.s32.totalorder %v54, 3
      %vm59 = vmand %vm57, %vm58
      %v60 = vsel %vm59, %v52, 0.0
      %v61 = vmul.f32 %v60, %v60
      %v62 = vrot.slane %v61, 4
      %v63 = vadd.f32 %v61, %v62
      %v64 = vrot.slane %v63, 2
      %v65 = vadd.f32 %v63, %v64
      %v66 = vrot.slane %v65, 1
      %v67 = vadd.f32 %v65, %v66
      %v68 = vrsqrt.pop %v67
      %v69 = vmul.f32 %v68, %v67
      %v70 = vmul.f32 %v69, %v68
      %v71 = vmul.f32 0.5, %v70
      %v72 = vsub.f32 1.5, %v71
      %v73 = vmul.f32 %v68, %v72
      %v74 = vmul.f32 %v67, %v73
      %vm75 = vcmp.eq.f32.partialorder %v67, inf
      %v76 = vsel %vm75, %v67, %v74
      %vm77 = vcmp.eq.f32.partialorder %v67, 0.0
      %v78 = vand.u32 %v67, 2147483648
      %v79 = vsel %vm77, %v78, %v76
      %vm80 = vcmp.eq.f32.partialorder %v67, 0.0
      %s81 = sshrl.u32 %s47, 3
      %s82 = sand.u32 %s47, 7
      %s83 = smul.addr %s81, 8
      %s84 = sadd.s32 %s82, %s83
      %s85 = scalar_lea.vmem [#allocation2], %s84
      %v86 = vld [vmem:[%s85] ss:$0 sm:$0xff]
      %v87 = vand.u32 2147483647, %v86
      %v88 = vmax.f32 %v87, 0.0
      %v89 = vand.u32 2147483647, %v79
      %v90 = vmax.f32 %v88, %v89
      %v91 = vrcp.pop %v90
      %v92 = vmul.f32 %v90, %v91
      %v93 = vsub.f32 1.0, %v92
      %v94 = vmul.f32 %v91, %v93
      %v95 = vadd.f32 %v91, %v94
      %vm96 = vweird.f32 %v90
      %vm97 = vweird.f32 %v91
      %vm98 = vmor %vm96, %vm97
      %v99 = vsel %vm98, %v91, %v95
      %v100 = vand.u32 2147483647, %v90
      %vm101 = vcmp.eq.f32.partialorder %v100, 8.507059e+37
      %v102 = vand.u32 %v90, 2147483648
      %v103 = vor.u32 1.1754944e-38, %v102
      %v104 = vsel %vm101, %v103, %v99
      %v105 = vmul.f32 %v87, %v104
      %v106 = vmul.f32 %v105, %v105
      %v107 = vrcp.pop %v90
      %v108 = vmul.f32 %v90, %v107
      %v109 = vsub.f32 1.0, %v108
      %v110 = vmul.f32 %v107, %v109
      %v111 = vadd.f32 %v107, %v110
      %vm112 = vweird.f32 %v90
      %vm113 = vweird.f32 %v107
      %vm114 = vmor %vm112, %vm113
      %v115 = vsel %vm114, %v107, %v111
      %v116 = vand.u32 2147483647, %v90
      %vm117 = vcmp.eq.f32.partialorder %v116, 8.507059e+37
      %v118 = vand.u32 %v90, 2147483648
      %v119 = vor.u32 1.1754944e-38, %v118
      %v120 = vsel %vm117, %v119, %v115
      %v121 = vmul.f32 0.0, %v120
      %v122 = vmul.f32 %v121, %v121
      %v123 = vadd.f32 %v106, %v122
      %v124 = vrcp.pop %v90
      %v125 = vmul.f32 %v90, %v124
      %v126 = vsub.f32 1.0, %v125
      %v127 = vmul.f32 %v124, %v126
      %v128 = vadd.f32 %v124, %v127
      %vm129 = vweird.f32 %v90
      %vm130 = vweird.f32 %v124
      %vm131 = vmor %vm129, %vm130
      %v132 = vsel %vm131, %v124, %v128
      %v133 = vand.u32 2147483647, %v90
      %vm134 = vcmp.eq.f32.partialorder %v133, 8.507059e+37
      %v135 = vand.u32 %v90, 2147483648
      %v136 = vor.u32 1.1754944e-38, %v135
      %v137 = vsel %vm134, %v136, %v132
      %v138 = vmul.f32 %v89, %v137
      %v139 = vmul.f32 %v138, %v138
      %v140 = vadd.f32 %v123, %v139
      %vm141 = vcmp.eq.f32.partialorder %v90, 0.0
      %v142 = vrsqrt.pop %v140
      %v143 = vmul.f32 %v142, %v140
      %v144 = vmul.f32 %v143, %v142
      %v145 = vmul.f32 0.5, %v144
      %v146 = vsub.f32 1.5, %v145
      %v147 = vmul.f32 %v142, %v146
      %v148 = vmul.f32 %v140, %v147
      %vm149 = vcmp.eq.f32.partialorder %v140, inf
      %v150 = vsel %vm149, %v140, %v148
      %vm151 = vcmp.eq.f32.partialorder %v140, 0.0
      %v152 = vand.u32 %v140, 2147483648
      %v153 = vsel %vm151, %v152, %v150
      %v154 = vmul.f32 %v90, %v153
      %v155 = vsel %vm141, 0.0, %v154
      %vm156 = vcmp.lt.f32.partialorder %v86, 0.0
      %v157 = vxor.u32 %v155, 2147483648
      %v158 = vsel %vm156, %v155, %v157
      %v159 = vsub.f32 %v158, %v86
      %v160 = vrcp.pop %v158
      %v161 = vmul.f32 %v158, %v160
      %v162 = vsub.f32 1.0, %v161
      %v163 = vmul.f32 %v160, %v162
      %v164 = vadd.f32 %v160, %v163
      %vm165 = vweird.f32 %v158
      %vm166 = vweird.f32 %v160
      %vm167 = vmor %vm165, %vm166
      %v168 = vsel %vm167, %v160, %v164
      %v169 = vand.u32 2147483647, %v158
      %vm170 = vcmp.eq.f32.partialorder %v169, 8.507059e+37
      %v171 = vand.u32 %v158, 2147483648
      %v172 = vor.u32 1.1754944e-38, %v171
      %v173 = vsel %vm170, %v172, %v168
      %v174 = vmul.f32 %v159, %v173
      %v175 = vsel %vm80, %v86, %v158
      %v176 = vsel %vm80, 0.0, %v174
      %v177 = vsub.f32 %v86, %v175
      %s178 = smov [#allocation2]
      %v179 = vlaneseq
      %v180 = vshrl.u32 %v179, 7
      %v181 = vmov %v180
      %v182 = vld [vmem:[%s178] sm:$0xff]
      %v184 = vstv %s47
      %vm185 = vcmp.gt.s32.totalorder %v181, %v184
      %vm186 = vcmp.lt.s32.totalorder %v181, 3
      %vm187 = vmand %vm185, %vm186
      %v188 = vsel %vm187, %v182, 0.0
      %v189 = vrcp.pop %v177
      %v190 = vmul.f32 %v177, %v189
      %v191 = vsub.f32 1.0, %v190
      %v192 = vmul.f32 %v189, %v191
      %v193 = vadd.f32 %v189, %v192
      %vm194 = vweird.f32 %v177
      %vm195 = vweird.f32 %v189
      %vm196 = vmor %vm194, %vm195
      %v197 = vsel %vm196, %v189, %v193
      %v198 = vand.u32 2147483647, %v177
      %vm199 = vcmp.eq.f32.partialorder %v198, 8.507059e+37
      %v200 = vand.u32 %v177, 2147483648
      %v201 = vor.u32 1.1754944e-38, %v200
      %v202 = vsel %vm199, %v201, %v197
      %v203 = vmul.f32 %v188, %v202
      %v204 = vsel %vm80, 0.0, %v203
      %v205 = vstv %s47
      %v206 = vlaneseq
      %v207 = vand.u32 %v206, 127
      %vm208 = vcmp.eq.s32.totalorder %v207, %v205
      %v209 = vsel %vm208, %v204, 0.0
      %210 = vadd.xlane.f32.xlu0 %v209
      %v211 = vpop.xlane.xlu0 %210
      %212 = vst [vmem:[#allocation6] sm:$0xff] %v211
      %s213 = scalar_lea.vmem [#allocation6], %s47
      %214 = vst [vmem:[%s213] sm:$0x1] 1.0
      %v215 = vstv %s47
      %v216 = vlaneseq
      %v217 = vand.u32 %v216, 127
      %vm218 = vcmp.eq.s32.totalorder %v217, %v215
      %v219 = vsel %vm218, %v176, 0.0
      %220 = vadd.xlane.f32.xlu0 %v219
      %v221 = vpop.xlane.xlu0 %220
      %v222 = vstv %s47
      %v223 = vlaneseq
      %v224 = vand.u32 %v223, 127
      %vm225 = vcmp.eq.s32.totalorder %v224, %v222
      %v226 = vld [vmem:[#allocation4] ss:$0 sm:$0xff]
      %v227 = vsel %vm225, %v221, %v226
      %228 = vst [vmem:[#allocation4] sm:$0x1] %v227
      %s229 = smov [#allocation2]
      %s230 = smov [#allocation6]
      %v231 = vlaneseq
      %v232 = vshrl.u32 %v231, 7
      %v233 = vmov %v232
      %v235 = vld [vmem:[%s230] sm:$0xff]
      %v236 = vld [vmem:[%s229] sm:$0xff]
      %v237 = vmul.f32 %v235, %v236
      %vm238 = vcmp.lt.s32.totalorder %v233, 3
      %v239 = vsel %vm238, %v237, 0.0
      %v240 = vrot.slane %v239, 4
      %v241 = vadd.f32 %v239, %v240
      %v242 = vrot.slane %v241, 2
      %v243 = vadd.f32 %v241, %v242
      %v244 = vrot.slane %v243, 1
      %v245 = vadd.f32 %v243, %v244
      %s246 = smov %s229
      %s247 = smov %s230
      %v248 = vlaneseq
      %v249 = vshrl.u32 %v248, 7
      %v250 = vmov %v249
      %v251 = vmul.f32 %v245, %v221
      %v253 = vlaneseq
      %v254 = vand.u32 %v253, 127
      %v255 = vld [vmem:[%s247] sm:$0xff]
      %v256 = vmul.f32 %v255, %v251
      %v257 = vld [vmem:[%s246] sm:$0xff]
      %v258 = vstv %s47
      %vm259 = vcmp.gt.s32.totalorder %v254, %v258
      %v260 = vsub.f32 %v257, %v256
      %v261 = vsel %vm259, %v260, %v257
      %v262 = vstv %s47
      %v263 = vlaneseq
      %v264 = vand.u32 %v263, 127
      %vm265 = vcmp.eq.s32.totalorder %v264, %v262
      %v266 = vstv %s47
      %vm267 = vcmp.ge.s32.totalorder %v250, %v266
      %vm268 = vmand %vm265, %vm267
      %v269 = vsel %vm268, %v255, %v261
      %270 = vst [vmem:[%s246] sm:$0xff] %v269
      %s271 = scalar_lea.vmem %s246, %s47
      %v272 = vld [vmem:[%s271] ss:$0 sm:$0xff]
      %v273 = vstv %s47
      %v274 = vlaneseq
      %v275 = vand.u32 %v274, 127
      %vm276 = vcmp.eq.s32.totalorder %v275, %v273
      %v277 = vsel %vm276, %v175, %v272
      %278 = vst [vmem:[%s271] sm:$0x1] %v277
    $region36: #{custom-call.50} parent=1 // loop_footer
      %s51 = sadd.s32 1, %s47
    $region37: #{custom-call.50} parent=1 // loop_footer_branch
      %46 = sbr.rel target = $region33
    $region38: #{custom-call.50} parent=1 // loop_exit
      _
    %s280 = ssub.s32 16, 1
    %v281 = vld [vmem:[#allocation2] sm:%s280]
    %s283 = ssub.s32 16, 1
    %284 = vst [vmem:[#allocation3] sm:%s283] %v281
    %s286 = ssub.s32 2, 1
    %v287 = vld [vmem:[#allocation4] sm:%s286]
    %s289 = ssub.s32 2, 1
    %290 = vst [vmem:[#allocation5] sm:%s289] %v287
    // Predicated region
    $region39: #{custom-call.50} parent=1 // pred_check
      _
    $region40: #{custom-call.50} parent=1 // pred_check_branch
      %292 = sbr.rel (0) target = $region42
    $region41: #{custom-call.50} parent=1 // pred_region
      // Predicated region
      $region43: #{custom-call.50} parent=41 // pred_check
        _
      $region44: #{custom-call.50} parent=41 // pred_check_branch
        %294 = sbr.rel target = $region46
      $region45: #{custom-call.50} parent=41 // pred_region
        // Predicated region
        $region58: #{custom-call.50} parent=45 // pred_check
          _
        $region59: #{custom-call.50} parent=45 // pred_check_branch
          %310 = sbr.rel (0) target = $region61
        $region60: #{custom-call.50} parent=45 // pred_region
          %s312 = ssub.s32 16, 1
          loop: start=0, step=1, limit=1
          $region62: #{custom-call.50} parent=60 // loop_pre_header
            _
          $region63: #{custom-call.50} parent=60 // loop_header
            %s314 = sphi 0, %s318
            %p315 = scmp.ge.s32.totalorder %s314, 1
            %s319 = sphi [#allocation3], [#allocation3]
            %s320 = sphi %s1, %s1
          $region64: #{custom-call.50} parent=60 // loop_header_branch
            %317 = sbr.rel (%p315) target = $region68
          $region65: #{custom-call.50} parent=60 // loop_body
            %v321 = vld [vmem:[%s319] sm:%s312]
            %322 = vst [vmem:[%s320] sm:%s312] %v321
          $region66: #{custom-call.50} parent=60 // loop_footer
            %s318 = sadd.s32 1, %s314
          $region67: #{custom-call.50} parent=60 // loop_footer_branch
            %313 = sbr.rel target = $region63
          $region68: #{custom-call.50} parent=60 // loop_exit
            _
        $region61: #{custom-call.50} parent=45 // pred_fallthru
          _
      $region46: #{custom-call.50} parent=41 // pred_fallthru
        _
      // Predicated region
      $region47: #{custom-call.50} parent=41 // pred_check
        _
      $region48: #{custom-call.50} parent=41 // pred_check_branch
        %296 = sbr.rel (0) target = $region50
      $region49: #{custom-call.50} parent=41 // pred_region
        %s298 = ssub.s32 16, 1
        loop: start=0, step=1, limit=1
        $region51: #{custom-call.50} parent=49 // loop_pre_header
          _
        $region52: #{custom-call.50} parent=49 // loop_header
          %s300 = sphi 0, %s304
          %p301 = scmp.ge.s32.totalorder %s300, 1
          %s305 = sphi [#allocation3], [#allocation3]
          %s306 = sphi %s1, %s1
        $region53: #{custom-call.50} parent=49 // loop_header_branch
          %303 = sbr.rel (%p301) target = $region57
        $region54: #{custom-call.50} parent=49 // loop_body
          %v307 = vld [vmem:[%s305] sm:%s298]
          %308 = vst [vmem:[%s306] sm:%s298] %v307
        $region55: #{custom-call.50} parent=49 // loop_footer
          %s304 = sadd.s32 1, %s300
        $region56: #{custom-call.50} parent=49 // loop_footer_branch
          %299 = sbr.rel target = $region52
        $region57: #{custom-call.50} parent=49 // loop_exit
          _
      $region50: #{custom-call.50} parent=41 // pred_fallthru
        _
    $region42: #{custom-call.50} parent=1 // pred_fallthru
      _
    %323 = vnop
    // Predicated region
    $region69: #{custom-call.50} parent=1 // pred_check
      _
    $region70: #{custom-call.50} parent=1 // pred_check_branch
      %325 = sbr.rel (0) target = $region72
    $region71: #{custom-call.50} parent=1 // pred_region
      %s326 = ssub.s32 0, 0
      %s327 = ssub.s32 0, 0
      // Predicated region
      $region73: #{custom-call.50} parent=71 // pred_check
        _
      $region74: #{custom-call.50} parent=71 // pred_check_branch
        %329 = sbr.rel (0) target = $region76
      $region75: #{custom-call.50} parent=71 // pred_region
        // Predicated region
        $region77: #{custom-call.50} parent=75 // pred_check
          _
        $region78: #{custom-call.50} parent=75 // pred_check_branch
          %331 = sbr.rel target = $region80
        $region79: #{custom-call.50} parent=75 // pred_region
          // Predicated region
          $region92: #{custom-call.50} parent=79 // pred_check
            _
          $region93: #{custom-call.50} parent=79 // pred_check_branch
            %347 = sbr.rel (0) target = $region95
          $region94: #{custom-call.50} parent=79 // pred_region
            %s349 = ssub.s32 2, 1
            loop: start=0, step=1, limit=1
            $region96: #{custom-call.50} parent=94 // loop_pre_header
              _
            $region97: #{custom-call.50} parent=94 // loop_header
              %s351 = sphi 0, %s355
              %p352 = scmp.ge.s32.totalorder %s351, 1
              %s356 = sphi [#allocation5], [#allocation5]
              %s357 = sphi %s2, %s2
            $region98: #{custom-call.50} parent=94 // loop_header_branch
              %354 = sbr.rel (%p352) target = $region102
            $region99: #{custom-call.50} parent=94 // loop_body
              %v358 = vld [vmem:[%s356] sm:%s349]
              %359 = vst [vmem:[%s357] sm:%s349] %v358
            $region100: #{custom-call.50} parent=94 // loop_footer
              %s355 = sadd.s32 1, %s351
            $region101: #{custom-call.50} parent=94 // loop_footer_branch
              %350 = sbr.rel target = $region97
            $region102: #{custom-call.50} parent=94 // loop_exit
              _
          $region95: #{custom-call.50} parent=79 // pred_fallthru
            _
        $region80: #{custom-call.50} parent=75 // pred_fallthru
          _
        // Predicated region
        $region81: #{custom-call.50} parent=75 // pred_check
          _
        $region82: #{custom-call.50} parent=75 // pred_check_branch
          %333 = sbr.rel (0) target = $region84
        $region83: #{custom-call.50} parent=75 // pred_region
          %s335 = ssub.s32 2, 1
          loop: start=0, step=1, limit=1
          $region85: #{custom-call.50} parent=83 // loop_pre_header
            _
          $region86: #{custom-call.50} parent=83 // loop_header
            %s337 = sphi 0, %s341
            %p338 = scmp.ge.s32.totalorder %s337, 1
            %s342 = sphi [#allocation5], [#allocation5]
            %s343 = sphi %s2, %s2
          $region87: #{custom-call.50} parent=83 // loop_header_branch
            %340 = sbr.rel (%p338) target = $region91
          $region88: #{custom-call.50} parent=83 // loop_body
            %v344 = vld [vmem:[%s342] sm:%s335]
            %345 = vst [vmem:[%s343] sm:%s335] %v344
          $region89: #{custom-call.50} parent=83 // loop_footer
            %s341 = sadd.s32 1, %s337
          $region90: #{custom-call.50} parent=83 // loop_footer_branch
            %336 = sbr.rel target = $region86
          $region91: #{custom-call.50} parent=83 // loop_exit
            _
        $region84: #{custom-call.50} parent=75 // pred_fallthru
          _
      $region76: #{custom-call.50} parent=71 // pred_fallthru
        _
      %360 = vnop
    $region72: #{custom-call.50} parent=1 // pred_fallthru
      _
    // Predicated region
    $region103: #{custom-call.50} parent=1 // pred_check
      _
    $region104: #{custom-call.50} parent=1 // pred_check_branch
      %362 = sbr.rel (0) target = $region106
    $region105: #{custom-call.50} parent=1 // pred_region
      _
    $region106: #{custom-call.50} parent=1 // pred_fallthru
      _

// kernel: weighted_kabsch.1
$region0: #{weighted_kabsch.1}
  #allocation0 [shape = 'u32[]', space=smem, size = 0x4, offset = 0x4, fixed_abs, tag = 'smem constant byte address 0x4 - core index']
  #allocation1 [shape = 'u32[72,128]{1,0:T(1,128)}', space=vmem, size = 0x9000, scoped, tag = 'internal scratch']
  %s0 = inlined_call_operand.vmem [shape: f32[1,1,128], index: 0, kind: input, shape index: {}]
  %s1 = inlined_call_operand.vmem [shape: f32[1,3,128], index: 1, kind: input, shape index: {}]
  %s2 = inlined_call_operand.vmem [shape: f32[1,3,128], index: 2, kind: input, shape index: {}]
  %s3 = inlined_call_operand.vmem [shape: f32[1,1,8,128], index: 3, kind: output, shape index: {}]
  %s4 = sld [smem:[#allocation0]]
  $region26: #{weighted_kabsch.1} parent=0
    _
  %s6 = ssub.s32 1, %s4
  %s7 = scalar_select 0, %s6, %s4
  // Predicated region
  $region2: #{weighted_kabsch.1} parent=0 // pred_check
    _
  $region3: #{weighted_kabsch.1} parent=0 // pred_check_branch
    %9 = sbr.rel (0) target = $region5
  $region4: #{weighted_kabsch.1} parent=0 // pred_region
    %s10 = sadd.s32 0, 0
    %p11 = scmp.lt.s32.totalorder %s10, 0
    %s12 = scalar_select %p11, %s10, 0
    %s13 = scalar_lea.vmem %s0, %s12
    %s14 = sadd.s32 0, 0
  $region5: #{weighted_kabsch.1} parent=0 // pred_fallthru
    _
  // Predicated region
  $region6: #{weighted_kabsch.1} parent=0 // pred_check
    _
  $region7: #{weighted_kabsch.1} parent=0 // pred_check_branch
    %16 = sbr.rel (0) target = $region9
  $region8: #{weighted_kabsch.1} parent=0 // pred_region
    %s17 = sadd.s32 0, 0
    %p18 = scmp.lt.s32.totalorder %s17, 0
    %s19 = scalar_select %p18, %s17, 0
    %s20 = smul.addr %s19, 4
    %s21 = scalar_lea.vmem %s1, %s20
    %s22 = sadd.s32 0, 0
  $region9: #{weighted_kabsch.1} parent=0 // pred_fallthru
    _
  // Predicated region
  $region10: #{weighted_kabsch.1} parent=0 // pred_check
    _
  $region11: #{weighted_kabsch.1} parent=0 // pred_check_branch
    %24 = sbr.rel (0) target = $region13
  $region12: #{weighted_kabsch.1} parent=0 // pred_region
    %s25 = sadd.s32 0, 0
    %p26 = scmp.lt.s32.totalorder %s25, 0
    %s27 = scalar_select %p26, %s25, 0
    %s28 = smul.addr %s27, 4
    %s29 = scalar_lea.vmem %s2, %s28
    %s30 = sadd.s32 0, 0
  $region13: #{weighted_kabsch.1} parent=0 // pred_fallthru
    _
  %s31 = sadd.s32 0, 0
  %p32 = scmp.lt.s32.totalorder %s31, 0
  %s33 = scalar_select %p32, %s31, 0
  %s34 = scalar_lea.vmem %s0, %s33
  %s35 = sadd.s32 0, 0
  %p36 = scmp.lt.s32.totalorder %s35, 0
  %s37 = scalar_select %p36, %s35, 0
  %s38 = smul.addr %s37, 4
  %s39 = scalar_lea.vmem %s1, %s38
  %s40 = sadd.s32 0, 0
  %p41 = scmp.lt.s32.totalorder %s40, 0
  %s42 = scalar_select %p41, %s40, 0
  %s43 = smul.addr %s42, 4
  %s44 = scalar_lea.vmem %s2, %s43
  %s45 = sadd.s32 0, 0
  %p46 = scmp.lt.s32.totalorder %s45, 0
  %s47 = scalar_select %p46, %s45, 0
  %s48 = scalar_lea.vmem %s0, %s47
  %s49 = sadd.s32 0, 0
  %s50 = sadd.s32 0, 0
  %p51 = scmp.lt.s32.totalorder %s50, 0
  %s52 = scalar_select %p51, %s50, 0
  %s53 = smul.addr %s52, 4
  %s54 = scalar_lea.vmem %s1, %s53
  %s55 = sadd.s32 0, 0
  %s56 = sadd.s32 0, 0
  %p57 = scmp.lt.s32.totalorder %s56, 0
  %s58 = scalar_select %p57, %s56, 0
  %s59 = smul.addr %s58, 4
  %s60 = scalar_lea.vmem %s2, %s59
  %s61 = sadd.s32 0, 0
  %p62 = scmp.eq.s32.totalorder 0, 0
  // Predicated region
  $region14: #{weighted_kabsch.1} parent=0 // pred_check
    %p63 = pneg %p62
  $region15: #{weighted_kabsch.1} parent=0 // pred_check_branch
    %65 = sbr.rel (%p63) target = $region17
  $region16: #{weighted_kabsch.1} parent=0 // pred_region
    %66 = vst [vmem:[%s3] sm:$0xff] 0.0
  $region17: #{weighted_kabsch.1} parent=0 // pred_fallthru
    _
  %v67 = vld [vmem:[%s48] sm:$0x1]
  %v68 = vld [vmem:[%s54] sm:$0x7]
  %v69 = vld [vmem:[%s60] sm:$0x7]
  %v71 = vperm.slane %v67, 0
  %v73 = vmul.f32 %v71, %v69
  %v75 = vrot.slane %v69, 5
  %vm77 = vcmask 1042432
  %v78 = vsel %vm77, %v73, %v75
  %vm79 = vcmask 1045504
  %v80 = vsel %vm79, %v78, %v71
  %vm81 = vcmask 1046528
  %v82 = vsel %vm81, %v80, 1.0
  %vm83 = vcmp.gt.f32.partialorder %v67, 0.0
  %v84 = vsel %vm83, 1, 0
  %v85 = vcvt.s32.f32 %v84
  %v87 = vperm.slane %v85, 0
  %v89 = vsel %vm77, %v68, 1.0
  %vm90 = vcmask 1043456
  %v91 = vsel %vm90, %v89, %v87
  %92 = vmatpush.xpose.msra.mxu0 0.0
  %93 = vmatpush.xpose.msra.mxu0 0.0
  %94 = vmatpush.xpose.msra.mxu0 0.0
  %95 = vmatpush.xpose.msra.mxu0 0.0
  %96 = vmatpush.xpose.msra.mxu0 0.0
  %97 = vmatpush.xpose.msra.mxu0 0.0
  %98 = vmatpush.xpose.msra.mxu0 0.0
  %99 = vmatpush.xpose.msra.mxu0 0.0
  %100 = vmatpush.xpose.msra.mxu0 0.0
  %101 = vmatpush.xpose.msra.mxu0 0.0
  %102 = vmatpush.xpose.msra.mxu0 0.0
  %103 = vmatpush.xpose.msra.mxu0 0.0
  %104 = vmatpush.xpose.msra.mxu0 0.0
  %105 = vmatpush.xpose.msra.mxu0 0.0
  %106 = vmatpush.xpose.msra.mxu0 0.0
  %107 = vmatpush.xpose.msra.mxu0 %v91
  %108 = vmatmul.f32.gmra.mxu0 %v82
  %v109 = vpop.f32.mrf.mxu0
  %v110 = vadd.f32 0.0, %v109
  %111 = vdwg.mxu0
  %v112 = vld [vmem:[%s3] sm:$0xff]
  %v113 = vadd.f32 %v112, %v110
  %vm114 = vcmask 39936
  %115 = vst.msk [vmem:[%s3] sm:$0xff] %vm114, %v113
  // Predicated region
  $region18: #{weighted_kabsch.1} parent=0 // pred_check
    _
  $region19: #{weighted_kabsch.1} parent=0 // pred_check_branch
    %117 = sbr.rel (0) target = $region21
  $region20: #{weighted_kabsch.1} parent=0 // pred_region
    _
  $region21: #{weighted_kabsch.1} parent=0 // pred_fallthru
    _
  // Predicated region
  $region22: #{weighted_kabsch.1} parent=0 // pred_check
    _
  $region23: #{weighted_kabsch.1} parent=0 // pred_check_branch
    %119 = sbr.rel (0) target = $region25
  $region24: #{weighted_kabsch.1} parent=0 // pred_region
    _
  $region25: #{weighted_kabsch.1} parent=0 // pred_fallthru
    _

</llo_original>
